<compile_context>
chip_gen: v5e
topology: v5e:2x2
jax: 0.10.0
libtpu: 0.0.40
codegen_flags: <defaults>
</compile_context>

<pallas_src>
import jax
import jax.numpy as jnp
from jax.experimental import pallas as pl
from jax.experimental.pallas import tpu as pltpu

NUM_CLASSES = 9          # PathMNIST has 9 classes
LANES = 128              # pad every output-channel dim to a full lane group
CONV_TILE_ROWS = 512     # row tile for the conv kernels (multiple of 8)
FC_TILE_ROWS = 256       # row tile for the fc head kernel


def _round_up(x, m):
    return (x + m - 1) // m * m


def _resident_spec(shape):
    """Block == full array, same block for every grid step (stays in VMEM)."""
    return pl.BlockSpec(shape, lambda i: (0,) * len(shape))


# ----------------------------------------------------------------------------
# Pallas kernels
# ----------------------------------------------------------------------------
def conv_bn_relu_pool_kernel(p0_ref, p1_ref, p2_ref, p3_ref,
                             w_ref, scale_ref, shift_ref, o_ref):
    """relu( max over the 2x2 pool window of (patches_p @ W) * scale + shift )."""
    w = w_ref[...]
    scale = scale_ref[...]
    shift = shift_ref[...]

    def tap(p_ref):
        acc = jnp.dot(p_ref[...], w, preferred_element_type=jnp.float32)
        return acc * scale + shift

    y = jnp.maximum(jnp.maximum(tap(p0_ref), tap(p1_ref)),
                    jnp.maximum(tap(p2_ref), tap(p3_ref)))
    o_ref[...] = jnp.maximum(y, 0.0).astype(o_ref.dtype)


def fc_head_kernel(x_ref, w1_ref, b1_ref, w2_ref, b2_ref, o_ref):
    """Fused fc1 + ReLU (+ eval dropout = id) + fc2 + log_softmax."""
    h = jnp.dot(x_ref[...], w1_ref[...], preferred_element_type=jnp.float32)
    h = jnp.maximum(h + b1_ref[...], 0.0)
    logits = jnp.dot(h.astype(w2_ref.dtype), w2_ref[...],
                     preferred_element_type=jnp.float32)
    logits = logits + b2_ref[...]
    m = jnp.max(logits, axis=-1, keepdims=True)
    lse = m + jnp.log(jnp.sum(jnp.exp(logits - m), axis=-1, keepdims=True))
    o_ref[...] = (logits - lse).astype(o_ref.dtype)


# ----------------------------------------------------------------------------
# Conv block wrapper (im2col gather per pool-tap is layout glue in plain JAX)
# ----------------------------------------------------------------------------
def _conv_block(x_nhwc, w_mat, scale, shift):
    """x_nhwc: (N, H, W, Cin) bf16 -> pooled activation (N, H//2, W//2, LANES) bf16."""
    N, H, W, Cin = x_nhwc.shape
    Ho, Wo = H // 2, W // 2           # MaxPool2d(2) floor semantics
    K = Cin * 9
    xp = jnp.pad(x_nhwc, ((0, 0), (1, 1), (1, 1), (0, 0)))

    def patches_for(dh, dw):
        # conv output positions (2i+dh, 2j+dw) for i<Ho, j<Wo; positions that
        # the floor-pool would drop are never computed.
        taps = [
            xp[:, dh + kh: dh + kh + 2 * Ho: 2, dw + kw: dw + kw + 2 * Wo: 2, :]
            for kh in range(3) for kw in range(3)
        ]
        # feature order (cin, kh, kw) matches the PyTorch weight reshape
        return jnp.stack(taps, axis=-1).reshape(N * Ho * Wo, K)

    R = N * Ho * Wo
    tile = min(CONV_TILE_ROWS, _round_up(R, 8))
    R_pad = _round_up(R, tile)

    def pad_rows(p):
        return jnp.pad(p, ((0, R_pad - R), (0, 0)))

    ps = [pad_rows(patches_for(dh, dw)) for dh in range(2) for dw in range(2)]

    row_in_spec = pl.BlockSpec((tile, K), lambda i: (i, 0))
    flops = 2 * R_pad * K * LANES * 4
    bytes_accessed = (4 * R_pad * K * 2 + K * LANES * 2
                      + 2 * LANES * 4 + R_pad * LANES * 2)

    out = pl.pallas_call(
        conv_bn_relu_pool_kernel,
        out_shape=jax.ShapeDtypeStruct((R_pad, LANES), jnp.bfloat16),
        grid=(R_pad // tile,),
        in_specs=[row_in_spec] * 4 + [
            _resident_spec((K, LANES)),
            _resident_spec((1, LANES)),
            _resident_spec((1, LANES)),
        ],
        out_specs=pl.BlockSpec((tile, LANES), lambda i: (i, 0)),
        compiler_params=pltpu.CompilerParams(
            dimension_semantics=("parallel",)),
        cost_estimate=pl.CostEstimate(
            flops=flops, transcendentals=0, bytes_accessed=bytes_accessed),
    )(*ps, w_mat, scale, shift)

    return out[:R].reshape(N, Ho, Wo, LANES)


def _fc_head(flat_bf16, w1, b1, w2, b2):
    N, F = flat_bf16.shape
    tile = min(FC_TILE_ROWS, _round_up(N, 8))
    N_pad = _round_up(N, tile)
    x = jnp.pad(flat_bf16, ((0, N_pad - N), (0, 0)))

    out = pl.pallas_call(
        fc_head_kernel,
        out_shape=jax.ShapeDtypeStruct((N_pad, LANES), jnp.float32),
        grid=(N_pad // tile,),
        in_specs=[
            pl.BlockSpec((tile, F), lambda i: (i, 0)),
            _resident_spec((F, LANES)),
            _resident_spec((1, LANES)),
            _resident_spec((LANES, LANES)),
            _resident_spec((1, LANES)),
        ],
        out_specs=pl.BlockSpec((tile, LANES), lambda i: (i, 0)),
        compiler_params=pltpu.CompilerParams(
            dimension_semantics=("parallel",)),
        cost_estimate=pl.CostEstimate(
            flops=2 * N_pad * (F * LANES + LANES * LANES),
            transcendentals=N_pad * LANES,
            bytes_accessed=(N_pad * F * 2 + F * LANES * 2
                            + LANES * LANES * 2 + N_pad * LANES * 4)),
    )(x, w1, b1, w2, b2)
    return out[:N, :NUM_CLASSES]


# ----------------------------------------------------------------------------
# Parameters (PyTorch layout, deterministic synthetic init) & prep
# ----------------------------------------------------------------------------
def init_params(key):
    ks = jax.random.split(key, 10)

    def conv_params(k, cin, cout):
        kw, kb = jax.random.split(k)
        return dict(
            w=jax.random.normal(kw, (cout, cin, 3, 3), jnp.float32) * 0.05,
            b=jax.random.normal(kb, (cout,), jnp.float32) * 0.05,
            gamma=jnp.ones((cout,), jnp.float32),
            beta=jnp.zeros((cout,), jnp.float32),
            mean=jnp.zeros((cout,), jnp.float32),
            var=jnp.ones((cout,), jnp.float32),
        )

    def fc_params(k, fin, fout):
        kw, kb = jax.random.split(k)
        return dict(
            w=jax.random.normal(kw, (fout, fin), jnp.float32) * 0.05,
            b=jax.random.normal(kb, (fout,), jnp.float32) * 0.05,
        )

    return dict(
        layer1=conv_params(ks[0], 1, 32),
        layer2=conv_params(ks[1], 32, 64),
        layer3=conv_params(ks[2], 64, 128),
        fc1=fc_params(ks[3], 3 * 3 * 128, 128),
        fc2=fc_params(ks[4], 128, NUM_CLASSES),
    )


def prepare_params(params, eps=1e-5):
    """Fold BN + conv bias, pad channel dims to 128 lanes, cast matmul operands to bf16."""
    prepped = {}
    for name in ("layer1", "layer2", "layer3"):
        p = params[name]
        cout, cin = p["w"].shape[0], p["w"].shape[1]
        w_mat = p["w"].reshape(cout, cin * 9).T                  # (K, Cout), (cin,kh,kw) order
        scale = p["gamma"] / jnp.sqrt(p["var"] + eps)            # (Cout,)
        shift = p["beta"] + (p["b"] - p["mean"]) * scale         # conv bias folded in
        pad_c = LANES - cout
        prepped[name] = dict(
            w=jnp.pad(w_mat, ((0, 0), (0, pad_c))).astype(jnp.bfloat16),
            scale=jnp.pad(scale, (0, pad_c))[None, :].astype(jnp.float32),
            shift=jnp.pad(shift, (0, pad_c))[None, :].astype(jnp.float32),
        )
    # fc1: permute columns from PyTorch (C,H,W) flatten order to our NHWC flatten.
    w1 = params["fc1"]["w"]                                      # (128, 1152), cols = c*9+h*3+w
    w1 = w1.reshape(w1.shape[0], 128, 3, 3).transpose(0, 2, 3, 1).reshape(w1.shape[0], 3 * 3 * 128)
    prepped["fc1"] = dict(w=w1.T.astype(jnp.bfloat16),           # (1152, 128)
                          b=params["fc1"]["b"][None, :].astype(jnp.float32))
    # fc2: pad 9 -> 128 output lanes; padded logits get -1e30 bias so they
    # contribute nothing to the log_softmax normalizer.
    pad = LANES - NUM_CLASSES
    prepped["fc2"] = dict(
        w=jnp.pad(params["fc2"]["w"].T, ((0, 0), (0, pad))).astype(jnp.bfloat16),
        b=jnp.pad(params["fc2"]["b"], (0, pad),
                  constant_values=-1e30)[None, :].astype(jnp.float32))
    return prepped


# ----------------------------------------------------------------------------
# Forward
# ----------------------------------------------------------------------------
@jax.jit
def cnn_pathmnist_forward(prepped, x):
    # x: (N, 1, 28, 28) NCHW float32 (PyTorch convention).
    x = jnp.transpose(x, (0, 2, 3, 1)).astype(jnp.bfloat16)      # NHWC once, at the boundary

    l1, l2, l3 = prepped["layer1"], prepped["layer2"], prepped["layer3"]
    x = _conv_block(x, l1["w"], l1["scale"], l1["shift"])[..., :32]   # (N,14,14,32)
    x = _conv_block(x, l2["w"], l2["scale"], l2["shift"])[..., :64]   # (N, 7, 7,64)
    x = _conv_block(x, l3["w"], l3["scale"], l3["shift"])             # (N, 3, 3,128)

    N = x.shape[0]
    flat = x.reshape(N, 3 * 3 * 128)   # NHWC flatten; fc1 columns were permuted to match
    return _fc_head(flat, prepped["fc1"]["w"], prepped["fc1"]["b"],
                    prepped["fc2"]["w"], prepped["fc2"]["b"])


if __name__ == "__main__":
    key = jax.random.PRNGKey(0)
    x = jax.random.normal(key, (2, 1, 28, 28), jnp.float32)
    params = init_params(jax.random.PRNGKey(42))
    prepped = prepare_params(params)

    out = cnn_pathmnist_forward(prepped, x)
    out = jax.block_until_ready(out)

    assert out.shape == (2, NUM_CLASSES), out.shape
    # log_softmax rows must sum (in prob space) to ~1
    assert jnp.allclose(jnp.sum(jnp.exp(out), axis=1), 1.0, atol=1e-3)
    assert bool(jnp.all(jnp.isfinite(out)))
    print("KERNEL_OK")
</pallas_src>

<mosaic_0001>
module attributes {stable_mosaic.version = 11 : i64} {
  func.func @conv_bn_relu_pool_kernel(%arg0: i32, %arg1: memref<392x9xbf16, #tpu.memory_space<vmem>>, %arg2: memref<392x9xbf16, #tpu.memory_space<vmem>>, %arg3: memref<392x9xbf16, #tpu.memory_space<vmem>>, %arg4: memref<392x9xbf16, #tpu.memory_space<vmem>>, %arg5: memref<9x128xbf16, #tpu.memory_space<vmem>>, %arg6: memref<1x128xf32, #tpu.memory_space<vmem>>, %arg7: memref<1x128xf32, #tpu.memory_space<vmem>>, %arg8: memref<392x128xbf16, #tpu.memory_space<vmem>>) attributes {dimension_semantics = [#tpu.dimension_semantics<parallel>], iteration_bounds = array<i64: 1>, scalar_prefetch = 0 : i64, scratch_operands = 0 : i64, tpu.core_type = #tpu.core_type<tc>, window_params = [{transform_indices = @transform_0, window_bounds = array<i64: 392, 9>}, {transform_indices = @transform_1, window_bounds = array<i64: 392, 9>}, {transform_indices = @transform_2, window_bounds = array<i64: 392, 9>}, {transform_indices = @transform_3, window_bounds = array<i64: 392, 9>}, {pipeline_mode = #tpu.pipeline_mode<synchronous>, transform_indices = @transform_4, window_bounds = array<i64: 9, 128>}, {pipeline_mode = #tpu.pipeline_mode<synchronous>, transform_indices = @transform_5, window_bounds = array<i64: 1, 128>}, {pipeline_mode = #tpu.pipeline_mode<synchronous>, transform_indices = @transform_6, window_bounds = array<i64: 1, 128>}, {transform_indices = @transform_7, window_bounds = array<i64: 392, 128>}]} {
    %c0 = arith.constant 0 : index
    %c0_0 = arith.constant 0 : index
    %0 = vector.load %arg5[%c0, %c0_0] : memref<9x128xbf16, #tpu.memory_space<vmem>>, vector<9x128xbf16>
    %c0_1 = arith.constant 0 : index
    %c0_2 = arith.constant 0 : index
    %1 = vector.load %arg6[%c0_1, %c0_2] : memref<1x128xf32, #tpu.memory_space<vmem>>, vector<1x128xf32>
    %c0_3 = arith.constant 0 : index
    %c0_4 = arith.constant 0 : index
    %2 = vector.load %arg7[%c0_3, %c0_4] : memref<1x128xf32, #tpu.memory_space<vmem>>, vector<1x128xf32>
    %c0_5 = arith.constant 0 : index
    %c0_6 = arith.constant 0 : index
    %3 = vector.load %arg1[%c0_5, %c0_6] : memref<392x9xbf16, #tpu.memory_space<vmem>>, vector<392x9xbf16>
    %cst = arith.constant dense<0.000000e+00> : vector<392x128xf32>
    %4 = tpu.matmul %3, %0, %cst {dimension_numbers = #tpu.dot_dimension_numbers<[1], [0], [0], [1], [0, 0, 1, 1], [], []>} : vector<392x9xbf16>, vector<9x128xbf16>, vector<392x128xf32> -> vector<392x128xf32>
    %5 = vector.broadcast %1 : vector<1x128xf32> to vector<392x128xf32>
    %6 = arith.mulf %4, %5 : vector<392x128xf32>
    %7 = vector.broadcast %2 : vector<1x128xf32> to vector<392x128xf32>
    %8 = arith.addf %6, %7 : vector<392x128xf32>
    %c0_7 = arith.constant 0 : index
    %c0_8 = arith.constant 0 : index
    %9 = vector.load %arg2[%c0_7, %c0_8] : memref<392x9xbf16, #tpu.memory_space<vmem>>, vector<392x9xbf16>
    %cst_9 = arith.constant dense<0.000000e+00> : vector<392x128xf32>
    %10 = tpu.matmul %9, %0, %cst_9 {dimension_numbers = #tpu.dot_dimension_numbers<[1], [0], [0], [1], [0, 0, 1, 1], [], []>} : vector<392x9xbf16>, vector<9x128xbf16>, vector<392x128xf32> -> vector<392x128xf32>
    %11 = vector.broadcast %1 : vector<1x128xf32> to vector<392x128xf32>
    %12 = arith.mulf %10, %11 : vector<392x128xf32>
    %13 = vector.broadcast %2 : vector<1x128xf32> to vector<392x128xf32>
    %14 = arith.addf %12, %13 : vector<392x128xf32>
    %15 = arith.maximumf %8, %14 : vector<392x128xf32>
    %c0_10 = arith.constant 0 : index
    %c0_11 = arith.constant 0 : index
    %16 = vector.load %arg3[%c0_10, %c0_11] : memref<392x9xbf16, #tpu.memory_space<vmem>>, vector<392x9xbf16>
    %cst_12 = arith.constant dense<0.000000e+00> : vector<392x128xf32>
    %17 = tpu.matmul %16, %0, %cst_12 {dimension_numbers = #tpu.dot_dimension_numbers<[1], [0], [0], [1], [0, 0, 1, 1], [], []>} : vector<392x9xbf16>, vector<9x128xbf16>, vector<392x128xf32> -> vector<392x128xf32>
    %18 = vector.broadcast %1 : vector<1x128xf32> to vector<392x128xf32>
    %19 = arith.mulf %17, %18 : vector<392x128xf32>
    %20 = vector.broadcast %2 : vector<1x128xf32> to vector<392x128xf32>
    %21 = arith.addf %19, %20 : vector<392x128xf32>
    %c0_13 = arith.constant 0 : index
    %c0_14 = arith.constant 0 : index
    %22 = vector.load %arg4[%c0_13, %c0_14] : memref<392x9xbf16, #tpu.memory_space<vmem>>, vector<392x9xbf16>
    %cst_15 = arith.constant dense<0.000000e+00> : vector<392x128xf32>
    %23 = tpu.matmul %22, %0, %cst_15 {dimension_numbers = #tpu.dot_dimension_numbers<[1], [0], [0], [1], [0, 0, 1, 1], [], []>} : vector<392x9xbf16>, vector<9x128xbf16>, vector<392x128xf32> -> vector<392x128xf32>
    %24 = vector.broadcast %1 : vector<1x128xf32> to vector<392x128xf32>
    %25 = arith.mulf %23, %24 : vector<392x128xf32>
    %26 = vector.broadcast %2 : vector<1x128xf32> to vector<392x128xf32>
    %27 = arith.addf %25, %26 : vector<392x128xf32>
    %28 = arith.maximumf %21, %27 : vector<392x128xf32>
    %29 = arith.maximumf %15, %28 : vector<392x128xf32>
    %cst_16 = arith.constant 0.000000e+00 : f32
    %30 = vector.broadcast %cst_16 : f32 to vector<392x128xf32>
    %31 = arith.maximumf %29, %30 : vector<392x128xf32>
    %32 = arith.truncf %31 : vector<392x128xf32> to vector<392x128xbf16>
    %c0_17 = arith.constant 0 : index
    %c0_18 = arith.constant 0 : index
    %33 = vector.load %arg8[%c0_17, %c0_18] : memref<392x128xbf16, #tpu.memory_space<vmem>>, vector<392x128xbf16>
    tpu.vector_store %arg8[%c0_17, %c0_18], %32 {strides = array<i32>} : memref<392x128xbf16, #tpu.memory_space<vmem>>, vector<392x128xbf16>,
    return
  }
  func.func @transform_0(%arg0: i32) -> (i32, i32) {
    %c0_i32 = arith.constant 0 : i32
    %c0_i32_0 = arith.constant 0 : i32
    return %arg0, %c0_i32 : i32, i32
  }
  func.func @transform_1(%arg0: i32) -> (i32, i32) {
    %c0_i32 = arith.constant 0 : i32
    %c0_i32_0 = arith.constant 0 : i32
    return %arg0, %c0_i32 : i32, i32
  }
  func.func @transform_2(%arg0: i32) -> (i32, i32) {
    %c0_i32 = arith.constant 0 : i32
    %c0_i32_0 = arith.constant 0 : i32
    return %arg0, %c0_i32 : i32, i32
  }
  func.func @transform_3(%arg0: i32) -> (i32, i32) {
    %c0_i32 = arith.constant 0 : i32
    %c0_i32_0 = arith.constant 0 : i32
    return %arg0, %c0_i32 : i32, i32
  }
  func.func @transform_4(%arg0: i32) -> (i32, i32) {
    %c0_i32 = arith.constant 0 : i32
    %c0_i32_0 = arith.constant 0 : i32
    %c0_i32_1 = arith.constant 0 : i32
    return %c0_i32, %c0_i32_0 : i32, i32
  }
  func.func @transform_5(%arg0: i32) -> (i32, i32) {
    %c0_i32 = arith.constant 0 : i32
    %c0_i32_0 = arith.constant 0 : i32
    %c0_i32_1 = arith.constant 0 : i32
    return %c0_i32, %c0_i32_0 : i32, i32
  }
  func.func @transform_6(%arg0: i32) -> (i32, i32) {
    %c0_i32 = arith.constant 0 : i32
    %c0_i32_0 = arith.constant 0 : i32
    %c0_i32_1 = arith.constant 0 : i32
    return %c0_i32, %c0_i32_0 : i32, i32
  }
  func.func @transform_7(%arg0: i32) -> (i32, i32) {
    %c0_i32 = arith.constant 0 : i32
    %c0_i32_0 = arith.constant 0 : i32
    return %arg0, %c0_i32 : i32, i32
  }
}

module attributes {stable_mosaic.version = 11 : i64} {
  func.func @conv_bn_relu_pool_kernel(%arg0: i32, %arg1: memref<104x288xbf16, #tpu.memory_space<vmem>>, %arg2: memref<104x288xbf16, #tpu.memory_space<vmem>>, %arg3: memref<104x288xbf16, #tpu.memory_space<vmem>>, %arg4: memref<104x288xbf16, #tpu.memory_space<vmem>>, %arg5: memref<288x128xbf16, #tpu.memory_space<vmem>>, %arg6: memref<1x128xf32, #tpu.memory_space<vmem>>, %arg7: memref<1x128xf32, #tpu.memory_space<vmem>>, %arg8: memref<104x128xbf16, #tpu.memory_space<vmem>>) attributes {dimension_semantics = [#tpu.dimension_semantics<parallel>], iteration_bounds = array<i64: 1>, scalar_prefetch = 0 : i64, scratch_operands = 0 : i64, tpu.core_type = #tpu.core_type<tc>, window_params = [{transform_indices = @transform_0, window_bounds = array<i64: 104, 288>}, {transform_indices = @transform_1, window_bounds = array<i64: 104, 288>}, {transform_indices = @transform_2, window_bounds = array<i64: 104, 288>}, {transform_indices = @transform_3, window_bounds = array<i64: 104, 288>}, {pipeline_mode = #tpu.pipeline_mode<synchronous>, transform_indices = @transform_4, window_bounds = array<i64: 288, 128>}, {pipeline_mode = #tpu.pipeline_mode<synchronous>, transform_indices = @transform_5, window_bounds = array<i64: 1, 128>}, {pipeline_mode = #tpu.pipeline_mode<synchronous>, transform_indices = @transform_6, window_bounds = array<i64: 1, 128>}, {transform_indices = @transform_7, window_bounds = array<i64: 104, 128>}]} {
    %c0 = arith.constant 0 : index
    %c0_0 = arith.constant 0 : index
    %0 = vector.load %arg5[%c0, %c0_0] : memref<288x128xbf16, #tpu.memory_space<vmem>>, vector<288x128xbf16>
    %c0_1 = arith.constant 0 : index
    %c0_2 = arith.constant 0 : index
    %1 = vector.load %arg6[%c0_1, %c0_2] : memref<1x128xf32, #tpu.memory_space<vmem>>, vector<1x128xf32>
    %c0_3 = arith.constant 0 : index
    %c0_4 = arith.constant 0 : index
    %2 = vector.load %arg7[%c0_3, %c0_4] : memref<1x128xf32, #tpu.memory_space<vmem>>, vector<1x128xf32>
    %c0_5 = arith.constant 0 : index
    %c0_6 = arith.constant 0 : index
    %3 = vector.load %arg1[%c0_5, %c0_6] : memref<104x288xbf16, #tpu.memory_space<vmem>>, vector<104x288xbf16>
    %cst = arith.constant dense<0.000000e+00> : vector<104x128xf32>
    %4 = tpu.matmul %3, %0, %cst {dimension_numbers = #tpu.dot_dimension_numbers<[1], [0], [0], [1], [0, 0, 1, 1], [], []>} : vector<104x288xbf16>, vector<288x128xbf16>, vector<104x128xf32> -> vector<104x128xf32>
    %5 = vector.broadcast %1 : vector<1x128xf32> to vector<104x128xf32>
    %6 = arith.mulf %4, %5 : vector<104x128xf32>
    %7 = vector.broadcast %2 : vector<1x128xf32> to vector<104x128xf32>
    %8 = arith.addf %6, %7 : vector<104x128xf32>
    %c0_7 = arith.constant 0 : index
    %c0_8 = arith.constant 0 : index
    %9 = vector.load %arg2[%c0_7, %c0_8] : memref<104x288xbf16, #tpu.memory_space<vmem>>, vector<104x288xbf16>
    %cst_9 = arith.constant dense<0.000000e+00> : vector<104x128xf32>
    %10 = tpu.matmul %9, %0, %cst_9 {dimension_numbers = #tpu.dot_dimension_numbers<[1], [0], [0], [1], [0, 0, 1, 1], [], []>} : vector<104x288xbf16>, vector<288x128xbf16>, vector<104x128xf32> -> vector<104x128xf32>
    %11 = vector.broadcast %1 : vector<1x128xf32> to vector<104x128xf32>
    %12 = arith.mulf %10, %11 : vector<104x128xf32>
    %13 = vector.broadcast %2 : vector<1x128xf32> to vector<104x128xf32>
    %14 = arith.addf %12, %13 : vector<104x128xf32>
    %15 = arith.maximumf %8, %14 : vector<104x128xf32>
    %c0_10 = arith.constant 0 : index
    %c0_11 = arith.constant 0 : index
    %16 = vector.load %arg3[%c0_10, %c0_11] : memref<104x288xbf16, #tpu.memory_space<vmem>>, vector<104x288xbf16>
    %cst_12 = arith.constant dense<0.000000e+00> : vector<104x128xf32>
    %17 = tpu.matmul %16, %0, %cst_12 {dimension_numbers = #tpu.dot_dimension_numbers<[1], [0], [0], [1], [0, 0, 1, 1], [], []>} : vector<104x288xbf16>, vector<288x128xbf16>, vector<104x128xf32> -> vector<104x128xf32>
    %18 = vector.broadcast %1 : vector<1x128xf32> to vector<104x128xf32>
    %19 = arith.mulf %17, %18 : vector<104x128xf32>
    %20 = vector.broadcast %2 : vector<1x128xf32> to vector<104x128xf32>
    %21 = arith.addf %19, %20 : vector<104x128xf32>
    %c0_13 = arith.constant 0 : index
    %c0_14 = arith.constant 0 : index
    %22 = vector.load %arg4[%c0_13, %c0_14] : memref<104x288xbf16, #tpu.memory_space<vmem>>, vector<104x288xbf16>
    %cst_15 = arith.constant dense<0.000000e+00> : vector<104x128xf32>
    %23 = tpu.matmul %22, %0, %cst_15 {dimension_numbers = #tpu.dot_dimension_numbers<[1], [0], [0], [1], [0, 0, 1, 1], [], []>} : vector<104x288xbf16>, vector<288x128xbf16>, vector<104x128xf32> -> vector<104x128xf32>
    %24 = vector.broadcast %1 : vector<1x128xf32> to vector<104x128xf32>
    %25 = arith.mulf %23, %24 : vector<104x128xf32>
    %26 = vector.broadcast %2 : vector<1x128xf32> to vector<104x128xf32>
    %27 = arith.addf %25, %26 : vector<104x128xf32>
    %28 = arith.maximumf %21, %27 : vector<104x128xf32>
    %29 = arith.maximumf %15, %28 : vector<104x128xf32>
    %cst_16 = arith.constant 0.000000e+00 : f32
    %30 = vector.broadcast %cst_16 : f32 to vector<104x128xf32>
    %31 = arith.maximumf %29, %30 : vector<104x128xf32>
    %32 = arith.truncf %31 : vector<104x128xf32> to vector<104x128xbf16>
    %c0_17 = arith.constant 0 : index
    %c0_18 = arith.constant 0 : index
    %33 = vector.load %arg8[%c0_17, %c0_18] : memref<104x128xbf16, #tpu.memory_space<vmem>>, vector<104x128xbf16>
    tpu.vector_store %arg8[%c0_17, %c0_18], %32 {strides = array<i32>} : memref<104x128xbf16, #tpu.memory_space<vmem>>, vector<104x128xbf16>,
    return
  }
  func.func @transform_0(%arg0: i32) -> (i32, i32) {
    %c0_i32 = arith.constant 0 : i32
    %c0_i32_0 = arith.constant 0 : i32
    return %arg0, %c0_i32 : i32, i32
  }
  func.func @transform_1(%arg0: i32) -> (i32, i32) {
    %c0_i32 = arith.constant 0 : i32
    %c0_i32_0 = arith.constant 0 : i32
    return %arg0, %c0_i32 : i32, i32
  }
  func.func @transform_2(%arg0: i32) -> (i32, i32) {
    %c0_i32 = arith.constant 0 : i32
    %c0_i32_0 = arith.constant 0 : i32
    return %arg0, %c0_i32 : i32, i32
  }
  func.func @transform_3(%arg0: i32) -> (i32, i32) {
    %c0_i32 = arith.constant 0 : i32
    %c0_i32_0 = arith.constant 0 : i32
    return %arg0, %c0_i32 : i32, i32
  }
  func.func @transform_4(%arg0: i32) -> (i32, i32) {
    %c0_i32 = arith.constant 0 : i32
    %c0_i32_0 = arith.constant 0 : i32
    %c0_i32_1 = arith.constant 0 : i32
    return %c0_i32, %c0_i32_0 : i32, i32
  }
  func.func @transform_5(%arg0: i32) -> (i32, i32) {
    %c0_i32 = arith.constant 0 : i32
    %c0_i32_0 = arith.constant 0 : i32
    %c0_i32_1 = arith.constant 0 : i32
    return %c0_i32, %c0_i32_0 : i32, i32
  }
  func.func @transform_6(%arg0: i32) -> (i32, i32) {
    %c0_i32 = arith.constant 0 : i32
    %c0_i32_0 = arith.constant 0 : i32
    %c0_i32_1 = arith.constant 0 : i32
    return %c0_i32, %c0_i32_0 : i32, i32
  }
  func.func @transform_7(%arg0: i32) -> (i32, i32) {
    %c0_i32 = arith.constant 0 : i32
    %c0_i32_0 = arith.constant 0 : i32
    return %arg0, %c0_i32 : i32, i32
  }
}

module attributes {stable_mosaic.version = 11 : i64} {
  func.func @conv_bn_relu_pool_kernel(%arg0: i32, %arg1: memref<24x576xbf16, #tpu.memory_space<vmem>>, %arg2: memref<24x576xbf16, #tpu.memory_space<vmem>>, %arg3: memref<24x576xbf16, #tpu.memory_space<vmem>>, %arg4: memref<24x576xbf16, #tpu.memory_space<vmem>>, %arg5: memref<576x128xbf16, #tpu.memory_space<vmem>>, %arg6: memref<1x128xf32, #tpu.memory_space<vmem>>, %arg7: memref<1x128xf32, #tpu.memory_space<vmem>>, %arg8: memref<24x128xbf16, #tpu.memory_space<vmem>>) attributes {dimension_semantics = [#tpu.dimension_semantics<parallel>], iteration_bounds = array<i64: 1>, scalar_prefetch = 0 : i64, scratch_operands = 0 : i64, tpu.core_type = #tpu.core_type<tc>, window_params = [{transform_indices = @transform_0, window_bounds = array<i64: 24, 576>}, {transform_indices = @transform_1, window_bounds = array<i64: 24, 576>}, {transform_indices = @transform_2, window_bounds = array<i64: 24, 576>}, {transform_indices = @transform_3, window_bounds = array<i64: 24, 576>}, {pipeline_mode = #tpu.pipeline_mode<synchronous>, transform_indices = @transform_4, window_bounds = array<i64: 576, 128>}, {pipeline_mode = #tpu.pipeline_mode<synchronous>, transform_indices = @transform_5, window_bounds = array<i64: 1, 128>}, {pipeline_mode = #tpu.pipeline_mode<synchronous>, transform_indices = @transform_6, window_bounds = array<i64: 1, 128>}, {transform_indices = @transform_7, window_bounds = array<i64: 24, 128>}]} {
    %c0 = arith.constant 0 : index
    %c0_0 = arith.constant 0 : index
    %0 = vector.load %arg5[%c0, %c0_0] : memref<576x128xbf16, #tpu.memory_space<vmem>>, vector<576x128xbf16>
    %c0_1 = arith.constant 0 : index
    %c0_2 = arith.constant 0 : index
    %1 = vector.load %arg6[%c0_1, %c0_2] : memref<1x128xf32, #tpu.memory_space<vmem>>, vector<1x128xf32>
    %c0_3 = arith.constant 0 : index
    %c0_4 = arith.constant 0 : index
    %2 = vector.load %arg7[%c0_3, %c0_4] : memref<1x128xf32, #tpu.memory_space<vmem>>, vector<1x128xf32>
    %c0_5 = arith.constant 0 : index
    %c0_6 = arith.constant 0 : index
    %3 = vector.load %arg1[%c0_5, %c0_6] : memref<24x576xbf16, #tpu.memory_space<vmem>>, vector<24x576xbf16>
    %cst = arith.constant dense<0.000000e+00> : vector<24x128xf32>
    %4 = tpu.matmul %3, %0, %cst {dimension_numbers = #tpu.dot_dimension_numbers<[1], [0], [0], [1], [0, 0, 1, 1], [], []>} : vector<24x576xbf16>, vector<576x128xbf16>, vector<24x128xf32> -> vector<24x128xf32>
    %5 = vector.broadcast %1 : vector<1x128xf32> to vector<24x128xf32>
    %6 = arith.mulf %4, %5 : vector<24x128xf32>
    %7 = vector.broadcast %2 : vector<1x128xf32> to vector<24x128xf32>
    %8 = arith.addf %6, %7 : vector<24x128xf32>
    %c0_7 = arith.constant 0 : index
    %c0_8 = arith.constant 0 : index
    %9 = vector.load %arg2[%c0_7, %c0_8] : memref<24x576xbf16, #tpu.memory_space<vmem>>, vector<24x576xbf16>
    %cst_9 = arith.constant dense<0.000000e+00> : vector<24x128xf32>
    %10 = tpu.matmul %9, %0, %cst_9 {dimension_numbers = #tpu.dot_dimension_numbers<[1], [0], [0], [1], [0, 0, 1, 1], [], []>} : vector<24x576xbf16>, vector<576x128xbf16>, vector<24x128xf32> -> vector<24x128xf32>
    %11 = vector.broadcast %1 : vector<1x128xf32> to vector<24x128xf32>
    %12 = arith.mulf %10, %11 : vector<24x128xf32>
    %13 = vector.broadcast %2 : vector<1x128xf32> to vector<24x128xf32>
    %14 = arith.addf %12, %13 : vector<24x128xf32>
    %15 = arith.maximumf %8, %14 : vector<24x128xf32>
    %c0_10 = arith.constant 0 : index
    %c0_11 = arith.constant 0 : index
    %16 = vector.load %arg3[%c0_10, %c0_11] : memref<24x576xbf16, #tpu.memory_space<vmem>>, vector<24x576xbf16>
    %cst_12 = arith.constant dense<0.000000e+00> : vector<24x128xf32>
    %17 = tpu.matmul %16, %0, %cst_12 {dimension_numbers = #tpu.dot_dimension_numbers<[1], [0], [0], [1], [0, 0, 1, 1], [], []>} : vector<24x576xbf16>, vector<576x128xbf16>, vector<24x128xf32> -> vector<24x128xf32>
    %18 = vector.broadcast %1 : vector<1x128xf32> to vector<24x128xf32>
    %19 = arith.mulf %17, %18 : vector<24x128xf32>
    %20 = vector.broadcast %2 : vector<1x128xf32> to vector<24x128xf32>
    %21 = arith.addf %19, %20 : vector<24x128xf32>
    %c0_13 = arith.constant 0 : index
    %c0_14 = arith.constant 0 : index
    %22 = vector.load %arg4[%c0_13, %c0_14] : memref<24x576xbf16, #tpu.memory_space<vmem>>, vector<24x576xbf16>
    %cst_15 = arith.constant dense<0.000000e+00> : vector<24x128xf32>
    %23 = tpu.matmul %22, %0, %cst_15 {dimension_numbers = #tpu.dot_dimension_numbers<[1], [0], [0], [1], [0, 0, 1, 1], [], []>} : vector<24x576xbf16>, vector<576x128xbf16>, vector<24x128xf32> -> vector<24x128xf32>
    %24 = vector.broadcast %1 : vector<1x128xf32> to vector<24x128xf32>
    %25 = arith.mulf %23, %24 : vector<24x128xf32>
    %26 = vector.broadcast %2 : vector<1x128xf32> to vector<24x128xf32>
    %27 = arith.addf %25, %26 : vector<24x128xf32>
    %28 = arith.maximumf %21, %27 : vector<24x128xf32>
    %29 = arith.maximumf %15, %28 : vector<24x128xf32>
    %cst_16 = arith.constant 0.000000e+00 : f32
    %30 = vector.broadcast %cst_16 : f32 to vector<24x128xf32>
    %31 = arith.maximumf %29, %30 : vector<24x128xf32>
    %32 = arith.truncf %31 : vector<24x128xf32> to vector<24x128xbf16>
    %c0_17 = arith.constant 0 : index
    %c0_18 = arith.constant 0 : index
    %33 = vector.load %arg8[%c0_17, %c0_18] : memref<24x128xbf16, #tpu.memory_space<vmem>>, vector<24x128xbf16>
    tpu.vector_store %arg8[%c0_17, %c0_18], %32 {strides = array<i32>} : memref<24x128xbf16, #tpu.memory_space<vmem>>, vector<24x128xbf16>,
    return
  }
  func.func @transform_0(%arg0: i32) -> (i32, i32) {
    %c0_i32 = arith.constant 0 : i32
    %c0_i32_0 = arith.constant 0 : i32
    return %arg0, %c0_i32 : i32, i32
  }
  func.func @transform_1(%arg0: i32) -> (i32, i32) {
    %c0_i32 = arith.constant 0 : i32
    %c0_i32_0 = arith.constant 0 : i32
    return %arg0, %c0_i32 : i32, i32
  }
  func.func @transform_2(%arg0: i32) -> (i32, i32) {
    %c0_i32 = arith.constant 0 : i32
    %c0_i32_0 = arith.constant 0 : i32
    return %arg0, %c0_i32 : i32, i32
  }
  func.func @transform_3(%arg0: i32) -> (i32, i32) {
    %c0_i32 = arith.constant 0 : i32
    %c0_i32_0 = arith.constant 0 : i32
    return %arg0, %c0_i32 : i32, i32
  }
  func.func @transform_4(%arg0: i32) -> (i32, i32) {
    %c0_i32 = arith.constant 0 : i32
    %c0_i32_0 = arith.constant 0 : i32
    %c0_i32_1 = arith.constant 0 : i32
    return %c0_i32, %c0_i32_0 : i32, i32
  }
  func.func @transform_5(%arg0: i32) -> (i32, i32) {
    %c0_i32 = arith.constant 0 : i32
    %c0_i32_0 = arith.constant 0 : i32
    %c0_i32_1 = arith.constant 0 : i32
    return %c0_i32, %c0_i32_0 : i32, i32
  }
  func.func @transform_6(%arg0: i32) -> (i32, i32) {
    %c0_i32 = arith.constant 0 : i32
    %c0_i32_0 = arith.constant 0 : i32
    %c0_i32_1 = arith.constant 0 : i32
    return %c0_i32, %c0_i32_0 : i32, i32
  }
  func.func @transform_7(%arg0: i32) -> (i32, i32) {
    %c0_i32 = arith.constant 0 : i32
    %c0_i32_0 = arith.constant 0 : i32
    return %arg0, %c0_i32 : i32, i32
  }
}

module attributes {stable_mosaic.version = 11 : i64} {
  func.func @fc_head_kernel(%arg0: i32, %arg1: memref<8x1152xbf16, #tpu.memory_space<vmem>>, %arg2: memref<1152x128xbf16, #tpu.memory_space<vmem>>, %arg3: memref<1x128xf32, #tpu.memory_space<vmem>>, %arg4: memref<128x128xbf16, #tpu.memory_space<vmem>>, %arg5: memref<1x128xf32, #tpu.memory_space<vmem>>, %arg6: memref<8x128xf32, #tpu.memory_space<vmem>>) attributes {dimension_semantics = [#tpu.dimension_semantics<parallel>], iteration_bounds = array<i64: 1>, scalar_prefetch = 0 : i64, scratch_operands = 0 : i64, tpu.core_type = #tpu.core_type<tc>, window_params = [{transform_indices = @transform_0, window_bounds = array<i64: 8, 1152>}, {pipeline_mode = #tpu.pipeline_mode<synchronous>, transform_indices = @transform_1, window_bounds = array<i64: 1152, 128>}, {pipeline_mode = #tpu.pipeline_mode<synchronous>, transform_indices = @transform_2, window_bounds = array<i64: 1, 128>}, {pipeline_mode = #tpu.pipeline_mode<synchronous>, transform_indices = @transform_3, window_bounds = array<i64: 128, 128>}, {pipeline_mode = #tpu.pipeline_mode<synchronous>, transform_indices = @transform_4, window_bounds = array<i64: 1, 128>}, {transform_indices = @transform_5, window_bounds = array<i64: 8, 128>}]} {
    %c0 = arith.constant 0 : index
    %c0_0 = arith.constant 0 : index
    %0 = vector.load %arg1[%c0, %c0_0] : memref<8x1152xbf16, #tpu.memory_space<vmem>>, vector<8x1152xbf16>
    %c0_1 = arith.constant 0 : index
    %c0_2 = arith.constant 0 : index
    %1 = vector.load %arg2[%c0_1, %c0_2] : memref<1152x128xbf16, #tpu.memory_space<vmem>>, vector<1152x128xbf16>
    %cst = arith.constant dense<0.000000e+00> : vector<8x128xf32>
    %2 = tpu.matmul %0, %1, %cst {dimension_numbers = #tpu.dot_dimension_numbers<[1], [0], [0], [1], [0, 0, 1, 1], [], []>} : vector<8x1152xbf16>, vector<1152x128xbf16>, vector<8x128xf32> -> vector<8x128xf32>
    %c0_3 = arith.constant 0 : index
    %c0_4 = arith.constant 0 : index
    %3 = vector.load %arg3[%c0_3, %c0_4] : memref<1x128xf32, #tpu.memory_space<vmem>>, vector<1x128xf32>
    %4 = vector.broadcast %3 : vector<1x128xf32> to vector<8x128xf32>
    %5 = arith.addf %2, %4 : vector<8x128xf32>
    %cst_5 = arith.constant 0.000000e+00 : f32
    %6 = vector.broadcast %cst_5 : f32 to vector<8x128xf32>
    %7 = arith.maximumf %5, %6 : vector<8x128xf32>
    %8 = arith.truncf %7 : vector<8x128xf32> to vector<8x128xbf16>
    %c0_6 = arith.constant 0 : index
    %c0_7 = arith.constant 0 : index
    %9 = vector.load %arg4[%c0_6, %c0_7] : memref<128x128xbf16, #tpu.memory_space<vmem>>, vector<128x128xbf16>
    %cst_8 = arith.constant dense<0.000000e+00> : vector<8x128xf32>
    %10 = tpu.matmul %8, %9, %cst_8 {dimension_numbers = #tpu.dot_dimension_numbers<[1], [0], [0], [1], [0, 0, 1, 1], [], []>} : vector<8x128xbf16>, vector<128x128xbf16>, vector<8x128xf32> -> vector<8x128xf32>
    %c0_9 = arith.constant 0 : index
    %c0_10 = arith.constant 0 : index
    %11 = vector.load %arg5[%c0_9, %c0_10] : memref<1x128xf32, #tpu.memory_space<vmem>>, vector<1x128xf32>
    %12 = vector.broadcast %11 : vector<1x128xf32> to vector<8x128xf32>
    %13 = arith.addf %10, %12 : vector<8x128xf32>
    %cst_11 = arith.constant dense<0xFF800000> : vector<8xf32>
    %14 = vector.multi_reduction <maximumf>, %13, %cst_11 [1] : vector<8x128xf32> to vector<8xf32>
    %15 = vector.shape_cast %14 : vector<8xf32> to vector<8x1xf32>
    %16 = vector.broadcast %15 : vector<8x1xf32> to vector<8x128xf32>
    %17 = arith.subf %13, %16 : vector<8x128xf32>
    %18 = math.exp %17 : vector<8x128xf32>
    %cst_12 = arith.constant dense<0.000000e+00> : vector<8xf32>
    %19 = vector.multi_reduction <add>, %18, %cst_12 [1] : vector<8x128xf32> to vector<8xf32>
    %20 = vector.shape_cast %19 : vector<8xf32> to vector<8x1xf32>
    %21 = math.log %20 : vector<8x1xf32>
    %22 = arith.addf %15, %21 : vector<8x1xf32>
    %23 = vector.broadcast %22 : vector<8x1xf32> to vector<8x128xf32>
    %24 = arith.subf %13, %23 : vector<8x128xf32>
    %c0_13 = arith.constant 0 : index
    %c0_14 = arith.constant 0 : index
    %25 = vector.load %arg6[%c0_13, %c0_14] : memref<8x128xf32, #tpu.memory_space<vmem>>, vector<8x128xf32>
    tpu.vector_store %arg6[%c0_13, %c0_14], %24 {strides = array<i32>} : memref<8x128xf32, #tpu.memory_space<vmem>>, vector<8x128xf32>,
    return
  }
  func.func @transform_0(%arg0: i32) -> (i32, i32) {
    %c0_i32 = arith.constant 0 : i32
    %c0_i32_0 = arith.constant 0 : i32
    return %arg0, %c0_i32 : i32, i32
  }
  func.func @transform_1(%arg0: i32) -> (i32, i32) {
    %c0_i32 = arith.constant 0 : i32
    %c0_i32_0 = arith.constant 0 : i32
    %c0_i32_1 = arith.constant 0 : i32
    return %c0_i32, %c0_i32_0 : i32, i32
  }
  func.func @transform_2(%arg0: i32) -> (i32, i32) {
    %c0_i32 = arith.constant 0 : i32
    %c0_i32_0 = arith.constant 0 : i32
    %c0_i32_1 = arith.constant 0 : i32
    return %c0_i32, %c0_i32_0 : i32, i32
  }
  func.func @transform_3(%arg0: i32) -> (i32, i32) {
    %c0_i32 = arith.constant 0 : i32
    %c0_i32_0 = arith.constant 0 : i32
    %c0_i32_1 = arith.constant 0 : i32
    return %c0_i32, %c0_i32_0 : i32, i32
  }
  func.func @transform_4(%arg0: i32) -> (i32, i32) {
    %c0_i32 = arith.constant 0 : i32
    %c0_i32_0 = arith.constant 0 : i32
    %c0_i32_1 = arith.constant 0 : i32
    return %c0_i32, %c0_i32_0 : i32, i32
  }
  func.func @transform_5(%arg0: i32) -> (i32, i32) {
    %c0_i32 = arith.constant 0 : i32
    %c0_i32_0 = arith.constant 0 : i32
    return %arg0, %c0_i32 : i32, i32
  }
}

</mosaic_0001>

<llo_original>
// kernel: cnn_pathmnist_forward.4
$region0: #{cnn_pathmnist_forward.4}
  #allocation0 [shape = 'u32[]', space=smem, size = 0x4, offset = 0x4, fixed_abs, tag = 'smem constant byte address 0x4 - core index']
  #allocation1 [shape = 'u32[72,128]{1,0:T(1,128)}', space=vmem, size = 0x9000, scoped, tag = 'internal scratch']
  %s0 = inlined_call_operand.vmem [shape: bf16[392,9], index: 0, kind: input, shape index: {}]
  %s1 = inlined_call_operand.vmem [shape: bf16[392,9], index: 1, kind: input, shape index: {}]
  %s2 = inlined_call_operand.vmem [shape: bf16[392,9], index: 2, kind: input, shape index: {}]
  %s3 = inlined_call_operand.vmem [shape: bf16[392,9], index: 3, kind: input, shape index: {}]
  %s4 = inlined_call_operand.vmem [shape: bf16[9,128], index: 4, kind: input, shape index: {}]
  %s5 = inlined_call_operand.vmem [shape: f32[1,128], index: 5, kind: input, shape index: {}]
  %s6 = inlined_call_operand.vmem [shape: f32[1,128], index: 6, kind: input, shape index: {}]
  %s7 = inlined_call_operand.vmem [shape: bf16[392,128], index: 7, kind: output, shape index: {}]
  %s8 = sld [smem:[#allocation0]]
  $region38: #{cnn_pathmnist_forward.4} parent=0
    _
  %s10 = ssub.s32 1, %s8
  %s11 = scalar_select 0, %s10, %s8
  // Predicated region
  $region2: #{cnn_pathmnist_forward.4} parent=0 // pred_check
    _
  $region3: #{cnn_pathmnist_forward.4} parent=0 // pred_check_branch
    %13 = sbr.rel (0) target = $region5
  $region4: #{cnn_pathmnist_forward.4} parent=0 // pred_region
    _
  $region5: #{cnn_pathmnist_forward.4} parent=0 // pred_fallthru
    _
  // Predicated region
  $region6: #{cnn_pathmnist_forward.4} parent=0 // pred_check
    _
  $region7: #{cnn_pathmnist_forward.4} parent=0 // pred_check_branch
    %15 = sbr.rel (0) target = $region9
  $region8: #{cnn_pathmnist_forward.4} parent=0 // pred_region
    _
  $region9: #{cnn_pathmnist_forward.4} parent=0 // pred_fallthru
    _
  // Predicated region
  $region10: #{cnn_pathmnist_forward.4} parent=0 // pred_check
    _
  $region11: #{cnn_pathmnist_forward.4} parent=0 // pred_check_branch
    %17 = sbr.rel (0) target = $region13
  $region12: #{cnn_pathmnist_forward.4} parent=0 // pred_region
    _
  $region13: #{cnn_pathmnist_forward.4} parent=0 // pred_fallthru
    _
  // Predicated region
  $region14: #{cnn_pathmnist_forward.4} parent=0 // pred_check
    _
  $region15: #{cnn_pathmnist_forward.4} parent=0 // pred_check_branch
    %19 = sbr.rel (0) target = $region17
  $region16: #{cnn_pathmnist_forward.4} parent=0 // pred_region
    _
  $region17: #{cnn_pathmnist_forward.4} parent=0 // pred_fallthru
    _
  // Predicated region
  $region18: #{cnn_pathmnist_forward.4} parent=0 // pred_check
    _
  $region19: #{cnn_pathmnist_forward.4} parent=0 // pred_check_branch
    %21 = sbr.rel (0) target = $region21
  $region20: #{cnn_pathmnist_forward.4} parent=0 // pred_region
    _
  $region21: #{cnn_pathmnist_forward.4} parent=0 // pred_fallthru
    _
  // Predicated region
  $region22: #{cnn_pathmnist_forward.4} parent=0 // pred_check
    _
  $region23: #{cnn_pathmnist_forward.4} parent=0 // pred_check_branch
    %23 = sbr.rel (0) target = $region25
  $region24: #{cnn_pathmnist_forward.4} parent=0 // pred_region
    _
  $region25: #{cnn_pathmnist_forward.4} parent=0 // pred_fallthru
    _
  // Predicated region
  $region26: #{cnn_pathmnist_forward.4} parent=0 // pred_check
    _
  $region27: #{cnn_pathmnist_forward.4} parent=0 // pred_check_branch
    %25 = sbr.rel (0) target = $region29
  $region28: #{cnn_pathmnist_forward.4} parent=0 // pred_region
    _
  $region29: #{cnn_pathmnist_forward.4} parent=0 // pred_fallthru
    _
  %v27 = vld [vmem:[%s4] sm:$0xf]
  %v28 = vld [vmem:[%s4 + $0x4] sm:$0x1]
  %v29 = vld [vmem:[%s5] sm:$0x1]
  %v30 = vld [vmem:[%s6] sm:$0x1]
  %v31 = vld [vmem:[%s0] sm:$0xf]
  %v32 = vld [vmem:[%s0 + $0x4] sm:$0xf]
  %v33 = vld [vmem:[%s0 + $0x8] sm:$0xf]
  %v34 = vld [vmem:[%s0 + $0xc] sm:$0xf]
  %v35 = vld [vmem:[%s0 + $0x10] sm:$0xf]
  %v36 = vld [vmem:[%s0 + $0x14] sm:$0xf]
  %v37 = vld [vmem:[%s0 + $0x18] sm:$0xf]
  %v38 = vld [vmem:[%s0 + $0x1c] sm:$0xf]
  %v39 = vld [vmem:[%s0 + $0x20] sm:$0xf]
  %v40 = vld [vmem:[%s0 + $0x24] sm:$0xf]
  %v41 = vld [vmem:[%s0 + $0x28] sm:$0xf]
  %v42 = vld [vmem:[%s0 + $0x2c] sm:$0xf]
  %v43 = vld [vmem:[%s0 + $0x30] sm:$0xf]
  %v44 = vld [vmem:[%s0 + $0x34] sm:$0xf]
  %v45 = vld [vmem:[%s0 + $0x38] sm:$0xf]
  %v46 = vld [vmem:[%s0 + $0x3c] sm:$0xf]
  %v47 = vld [vmem:[%s0 + $0x40] sm:$0xf]
  %v48 = vld [vmem:[%s0 + $0x44] sm:$0xf]
  %v49 = vld [vmem:[%s0 + $0x48] sm:$0xf]
  %v50 = vld [vmem:[%s0 + $0x4c] sm:$0xf]
  %v51 = vld [vmem:[%s0 + $0x50] sm:$0xf]
  %v52 = vld [vmem:[%s0 + $0x54] sm:$0xf]
  %v53 = vld [vmem:[%s0 + $0x58] sm:$0xf]
  %v54 = vld [vmem:[%s0 + $0x5c] sm:$0xf]
  %v55 = vld [vmem:[%s0 + $0x60] sm:$0xf]
  %v56 = vld [vmem:[%s0 + $0x64] sm:$0xf]
  %v57 = vld [vmem:[%s0 + $0x68] sm:$0xf]
  %v58 = vld [vmem:[%s0 + $0x6c] sm:$0xf]
  %v59 = vld [vmem:[%s0 + $0x70] sm:$0xf]
  %v60 = vld [vmem:[%s0 + $0x74] sm:$0xf]
  %v61 = vld [vmem:[%s0 + $0x78] sm:$0xf]
  %v62 = vld [vmem:[%s0 + $0x7c] sm:$0xf]
  %v63 = vld [vmem:[%s0 + $0x80] sm:$0xf]
  %v64 = vld [vmem:[%s0 + $0x84] sm:$0xf]
  %v65 = vld [vmem:[%s0 + $0x88] sm:$0xf]
  %v66 = vld [vmem:[%s0 + $0x8c] sm:$0xf]
  %v67 = vld [vmem:[%s0 + $0x90] sm:$0xf]
  %v68 = vld [vmem:[%s0 + $0x94] sm:$0xf]
  %v69 = vld [vmem:[%s0 + $0x98] sm:$0xf]
  %v70 = vld [vmem:[%s0 + $0x9c] sm:$0xf]
  %v71 = vld [vmem:[%s0 + $0xa0] sm:$0xf]
  %v72 = vld [vmem:[%s0 + $0xa4] sm:$0xf]
  %v73 = vld [vmem:[%s0 + $0xa8] sm:$0xf]
  %v74 = vld [vmem:[%s0 + $0xac] sm:$0xf]
  %v75 = vld [vmem:[%s0 + $0xb0] sm:$0xf]
  %v76 = vld [vmem:[%s0 + $0xb4] sm:$0xf]
  %v77 = vld [vmem:[%s0 + $0xb8] sm:$0xf]
  %v78 = vld [vmem:[%s0 + $0xbc] sm:$0xf]
  %v79 = vld [vmem:[%s0 + $0xc0] sm:$0xf]
  %v129 = vunpack.c.l.b16 %v31
  %v130 = vunpack.c.l.b16 %v32
  %v131 = vunpack.c.l.b16 %v33
  %v132 = vunpack.c.l.b16 %v34
  %v133 = vunpack.c.l.b16 %v35
  %v134 = vunpack.c.l.b16 %v36
  %v135 = vunpack.c.l.b16 %v37
  %v136 = vunpack.c.l.b16 %v38
  %v137 = vunpack.c.l.b16 %v39
  %v138 = vunpack.c.l.b16 %v40
  %v139 = vunpack.c.l.b16 %v41
  %v140 = vunpack.c.l.b16 %v42
  %v141 = vunpack.c.l.b16 %v43
  %v142 = vunpack.c.l.b16 %v44
  %v143 = vunpack.c.l.b16 %v45
  %v144 = vunpack.c.l.b16 %v46
  %v145 = vunpack.c.l.b16 %v47
  %v146 = vunpack.c.l.b16 %v48
  %v147 = vunpack.c.l.b16 %v49
  %v148 = vunpack.c.l.b16 %v50
  %v149 = vunpack.c.l.b16 %v51
  %v150 = vunpack.c.l.b16 %v52
  %v151 = vunpack.c.l.b16 %v53
  %v152 = vunpack.c.l.b16 %v54
  %v153 = vunpack.c.l.b16 %v55
  %v154 = vunpack.c.l.b16 %v56
  %v155 = vunpack.c.l.b16 %v57
  %v156 = vunpack.c.l.b16 %v58
  %v157 = vunpack.c.l.b16 %v59
  %v158 = vunpack.c.l.b16 %v60
  %v159 = vunpack.c.l.b16 %v61
  %v160 = vunpack.c.l.b16 %v62
  %v161 = vunpack.c.l.b16 %v63
  %v162 = vunpack.c.l.b16 %v64
  %v163 = vunpack.c.l.b16 %v65
  %v164 = vunpack.c.l.b16 %v66
  %v165 = vunpack.c.l.b16 %v67
  %v166 = vunpack.c.l.b16 %v68
  %v167 = vunpack.c.l.b16 %v69
  %v168 = vunpack.c.l.b16 %v70
  %v169 = vunpack.c.l.b16 %v71
  %v170 = vunpack.c.l.b16 %v72
  %v171 = vunpack.c.l.b16 %v73
  %v172 = vunpack.c.l.b16 %v74
  %v173 = vunpack.c.l.b16 %v75
  %v174 = vunpack.c.l.b16 %v76
  %v175 = vunpack.c.l.b16 %v77
  %v176 = vunpack.c.l.b16 %v78
  %v177 = vunpack.c.l.b16 %v79
  %v178 = vpack.c.b16 %v130, %v129
  %v179 = vpack.c.b16 %v132, %v131
  %v180 = vpack.c.b16 %v134, %v133
  %v181 = vpack.c.b16 %v136, %v135
  %v182 = vpack.c.b16 %v138, %v137
  %v183 = vpack.c.b16 %v140, %v139
  %v184 = vpack.c.b16 %v142, %v141
  %v185 = vpack.c.b16 %v144, %v143
  %v186 = vpack.c.b16 %v146, %v145
  %v187 = vpack.c.b16 %v148, %v147
  %v188 = vpack.c.b16 %v150, %v149
  %v189 = vpack.c.b16 %v152, %v151
  %v190 = vpack.c.b16 %v154, %v153
  %v191 = vpack.c.b16 %v156, %v155
  %v192 = vpack.c.b16 %v158, %v157
  %v193 = vpack.c.b16 %v160, %v159
  %v194 = vpack.c.b16 %v162, %v161
  %v195 = vpack.c.b16 %v164, %v163
  %v196 = vpack.c.b16 %v166, %v165
  %v197 = vpack.c.b16 %v168, %v167
  %v198 = vpack.c.b16 %v170, %v169
  %v199 = vpack.c.b16 %v172, %v171
  %v200 = vpack.c.b16 %v174, %v173
  %v201 = vpack.c.b16 %v176, %v175
  %v202 = vpack.c.b16 %v177, %v177
  %v205 = vunpack.c.l.b16 %v27
  %v206 = vunpack.c.l.b16 %v28
  %v207 = vpack.c.b16 %v206, %v205
  %vm208 = vcmask 72704
  %v210 = vsel %vm208, %v178, 0
  %v213 = vsel %vm208, %v179, 0
  %v216 = vsel %vm208, %v180, 0
  %v219 = vsel %vm208, %v181, 0
  %v222 = vsel %vm208, %v182, 0
  %v225 = vsel %vm208, %v183, 0
  %v228 = vsel %vm208, %v184, 0
  %v231 = vsel %vm208, %v185, 0
  %v234 = vsel %vm208, %v186, 0
  %v237 = vsel %vm208, %v187, 0
  %v240 = vsel %vm208, %v188, 0
  %v243 = vsel %vm208, %v189, 0
  %v246 = vsel %vm208, %v190, 0
  %v249 = vsel %vm208, %v191, 0
  %v252 = vsel %vm208, %v192, 0
  %v255 = vsel %vm208, %v193, 0
  %v258 = vsel %vm208, %v194, 0
  %v261 = vsel %vm208, %v195, 0
  %v264 = vsel %vm208, %v196, 0
  %v267 = vsel %vm208, %v197, 0
  %v270 = vsel %vm208, %v198, 0
  %v273 = vsel %vm208, %v199, 0
  %v276 = vsel %vm208, %v200, 0
  %v279 = vsel %vm208, %v201, 0
  %v282 = vsel %vm208, %v202, 0
  %vm284 = vcmask 1043456
  %vm285 = vcmask 1044480
  %v286 = vsel %vm284, 4294967295, 65535
  %v287 = vsel %vm285, %v286, 0
  %v289 = vand.u32 %v207, %v287
  %291 = vmatpush.bf16.msra.mxu0 0
  %292 = vmatpush.bf16.msra.mxu0 0
  %293 = vmatpush.bf16.msra.mxu0 0
  %294 = vmatpush.bf16.msra.mxu0 0
  %295 = vmatpush.bf16.msra.mxu0 0
  %296 = vmatpush.bf16.msra.mxu0 0
  %297 = vmatpush.bf16.msra.mxu0 0
  %298 = vmatpush.bf16.msra.mxu0 %v289
  %299 = vmatmul.bf16.gmra.mxu0 %v210
  %v300 = vpop.f32.mrf.mxu0
  %v301 = vadd.f32 0.0, %v300
  %v302 = vpop.f32.mrf.mxu0
  %v303 = vadd.f32 0.0, %v302
  %304 = vmatmul.bf16.gmra.mxu0 %v213
  %v305 = vpop.f32.mrf.mxu0
  %v306 = vadd.f32 0.0, %v305
  %v307 = vpop.f32.mrf.mxu0
  %v308 = vadd.f32 0.0, %v307
  %309 = vmatmul.bf16.gmra.mxu0 %v216
  %v310 = vpop.f32.mrf.mxu0
  %v311 = vadd.f32 0.0, %v310
  %v312 = vpop.f32.mrf.mxu0
  %v313 = vadd.f32 0.0, %v312
  %314 = vmatmul.bf16.gmra.mxu0 %v219
  %v315 = vpop.f32.mrf.mxu0
  %v316 = vadd.f32 0.0, %v315
  %v317 = vpop.f32.mrf.mxu0
  %v318 = vadd.f32 0.0, %v317
  %319 = vmatmul.bf16.gmra.mxu0 %v222
  %v320 = vpop.f32.mrf.mxu0
  %v321 = vadd.f32 0.0, %v320
  %v322 = vpop.f32.mrf.mxu0
  %v323 = vadd.f32 0.0, %v322
  %324 = vmatmul.bf16.gmra.mxu0 %v225
  %v325 = vpop.f32.mrf.mxu0
  %v326 = vadd.f32 0.0, %v325
  %v327 = vpop.f32.mrf.mxu0
  %v328 = vadd.f32 0.0, %v327
  %329 = vmatmul.bf16.gmra.mxu0 %v228
  %v330 = vpop.f32.mrf.mxu0
  %v331 = vadd.f32 0.0, %v330
  %v332 = vpop.f32.mrf.mxu0
  %v333 = vadd.f32 0.0, %v332
  %334 = vmatmul.bf16.gmra.mxu0 %v231
  %v335 = vpop.f32.mrf.mxu0
  %v336 = vadd.f32 0.0, %v335
  %v337 = vpop.f32.mrf.mxu0
  %v338 = vadd.f32 0.0, %v337
  %339 = vmatmul.bf16.gmra.mxu0 %v234
  %v340 = vpop.f32.mrf.mxu0
  %v341 = vadd.f32 0.0, %v340
  %v342 = vpop.f32.mrf.mxu0
  %v343 = vadd.f32 0.0, %v342
  %344 = vmatmul.bf16.gmra.mxu0 %v237
  %v345 = vpop.f32.mrf.mxu0
  %v346 = vadd.f32 0.0, %v345
  %v347 = vpop.f32.mrf.mxu0
  %v348 = vadd.f32 0.0, %v347
  %349 = vmatmul.bf16.gmra.mxu0 %v240
  %v350 = vpop.f32.mrf.mxu0
  %v351 = vadd.f32 0.0, %v350
  %v352 = vpop.f32.mrf.mxu0
  %v353 = vadd.f32 0.0, %v352
  %354 = vmatmul.bf16.gmra.mxu0 %v243
  %v355 = vpop.f32.mrf.mxu0
  %v356 = vadd.f32 0.0, %v355
  %v357 = vpop.f32.mrf.mxu0
  %v358 = vadd.f32 0.0, %v357
  %359 = vmatmul.bf16.gmra.mxu0 %v246
  %v360 = vpop.f32.mrf.mxu0
  %v361 = vadd.f32 0.0, %v360
  %v362 = vpop.f32.mrf.mxu0
  %v363 = vadd.f32 0.0, %v362
  %364 = vmatmul.bf16.gmra.mxu0 %v249
  %v365 = vpop.f32.mrf.mxu0
  %v366 = vadd.f32 0.0, %v365
  %v367 = vpop.f32.mrf.mxu0
  %v368 = vadd.f32 0.0, %v367
  %369 = vmatmul.bf16.gmra.mxu0 %v252
  %v370 = vpop.f32.mrf.mxu0
  %v371 = vadd.f32 0.0, %v370
  %v372 = vpop.f32.mrf.mxu0
  %v373 = vadd.f32 0.0, %v372
  %374 = vmatmul.bf16.gmra.mxu0 %v255
  %v375 = vpop.f32.mrf.mxu0
  %v376 = vadd.f32 0.0, %v375
  %v377 = vpop.f32.mrf.mxu0
  %v378 = vadd.f32 0.0, %v377
  %379 = vmatmul.bf16.gmra.mxu0 %v258
  %v380 = vpop.f32.mrf.mxu0
  %v381 = vadd.f32 0.0, %v380
  %v382 = vpop.f32.mrf.mxu0
  %v383 = vadd.f32 0.0, %v382
  %384 = vmatmul.bf16.gmra.mxu0 %v261
  %v385 = vpop.f32.mrf.mxu0
  %v386 = vadd.f32 0.0, %v385
  %v387 = vpop.f32.mrf.mxu0
  %v388 = vadd.f32 0.0, %v387
  %389 = vmatmul.bf16.gmra.mxu0 %v264
  %v390 = vpop.f32.mrf.mxu0
  %v391 = vadd.f32 0.0, %v390
  %v392 = vpop.f32.mrf.mxu0
  %v393 = vadd.f32 0.0, %v392
  %394 = vmatmul.bf16.gmra.mxu0 %v267
  %v395 = vpop.f32.mrf.mxu0
  %v396 = vadd.f32 0.0, %v395
  %v397 = vpop.f32.mrf.mxu0
  %v398 = vadd.f32 0.0, %v397
  %399 = vmatmul.bf16.gmra.mxu0 %v270
  %v400 = vpop.f32.mrf.mxu0
  %v401 = vadd.f32 0.0, %v400
  %v402 = vpop.f32.mrf.mxu0
  %v403 = vadd.f32 0.0, %v402
  %404 = vmatmul.bf16.gmra.mxu0 %v273
  %v405 = vpop.f32.mrf.mxu0
  %v406 = vadd.f32 0.0, %v405
  %v407 = vpop.f32.mrf.mxu0
  %v408 = vadd.f32 0.0, %v407
  %409 = vmatmul.bf16.gmra.mxu0 %v276
  %v410 = vpop.f32.mrf.mxu0
  %v411 = vadd.f32 0.0, %v410
  %v412 = vpop.f32.mrf.mxu0
  %v413 = vadd.f32 0.0, %v412
  %414 = vmatmul.bf16.gmra.mxu0 %v279
  %v415 = vpop.f32.mrf.mxu0
  %v416 = vadd.f32 0.0, %v415
  %v417 = vpop.f32.mrf.mxu0
  %v418 = vadd.f32 0.0, %v417
  %419 = vmatmul.bf16.gmra.mxu0 %v282
  %v420 = vpop.f32.mrf.mxu0
  %v421 = vadd.f32 0.0, %v420
  %v422 = vpop.f32.mrf.mxu0
  %423 = vdwg.mxu0
  %v425 = vperm.slane %v29, 0
  %v427 = vmul.f32 %v301, %v425
  %v428 = vmul.f32 %v303, %v425
  %v429 = vmul.f32 %v306, %v425
  %v430 = vmul.f32 %v308, %v425
  %v431 = vmul.f32 %v311, %v425
  %v432 = vmul.f32 %v313, %v425
  %v433 = vmul.f32 %v316, %v425
  %v434 = vmul.f32 %v318, %v425
  %v435 = vmul.f32 %v321, %v425
  %v436 = vmul.f32 %v323, %v425
  %v437 = vmul.f32 %v326, %v425
  %v438 = vmul.f32 %v328, %v425
  %v439 = vmul.f32 %v331, %v425
  %v440 = vmul.f32 %v333, %v425
  %v441 = vmul.f32 %v336, %v425
  %v442 = vmul.f32 %v338, %v425
  %v443 = vmul.f32 %v341, %v425
  %v444 = vmul.f32 %v343, %v425
  %v445 = vmul.f32 %v346, %v425
  %v446 = vmul.f32 %v348, %v425
  %v447 = vmul.f32 %v351, %v425
  %v448 = vmul.f32 %v353, %v425
  %v449 = vmul.f32 %v356, %v425
  %v450 = vmul.f32 %v358, %v425
  %v451 = vmul.f32 %v361, %v425
  %v452 = vmul.f32 %v363, %v425
  %v453 = vmul.f32 %v366, %v425
  %v454 = vmul.f32 %v368, %v425
  %v455 = vmul.f32 %v371, %v425
  %v456 = vmul.f32 %v373, %v425
  %v457 = vmul.f32 %v376, %v425
  %v458 = vmul.f32 %v378, %v425
  %v459 = vmul.f32 %v381, %v425
  %v460 = vmul.f32 %v383, %v425
  %v461 = vmul.f32 %v386, %v425
  %v462 = vmul.f32 %v388, %v425
  %v463 = vmul.f32 %v391, %v425
  %v464 = vmul.f32 %v393, %v425
  %v465 = vmul.f32 %v396, %v425
  %v466 = vmul.f32 %v398, %v425
  %v467 = vmul.f32 %v401, %v425
  %v468 = vmul.f32 %v403, %v425
  %v469 = vmul.f32 %v406, %v425
  %v470 = vmul.f32 %v408, %v425
  %v471 = vmul.f32 %v411, %v425
  %v472 = vmul.f32 %v413, %v425
  %v473 = vmul.f32 %v416, %v425
  %v474 = vmul.f32 %v418, %v425
  %v475 = vmul.f32 %v421, %v425
  %v477 = vperm.slane %v30, 0
  %v479 = vadd.f32 %v427, %v477
  %v480 = vadd.f32 %v428, %v477
  %v481 = vadd.f32 %v429, %v477
  %v482 = vadd.f32 %v430, %v477
  %v483 = vadd.f32 %v431, %v477
  %v484 = vadd.f32 %v432, %v477
  %v485 = vadd.f32 %v433, %v477
  %v486 = vadd.f32 %v434, %v477
  %v487 = vadd.f32 %v435, %v477
  %v488 = vadd.f32 %v436, %v477
  %v489 = vadd.f32 %v437, %v477
  %v490 = vadd.f32 %v438, %v477
  %v491 = vadd.f32 %v439, %v477
  %v492 = vadd.f32 %v440, %v477
  %v493 = vadd.f32 %v441, %v477
  %v494 = vadd.f32 %v442, %v477
  %v495 = vadd.f32 %v443, %v477
  %v496 = vadd.f32 %v444, %v477
  %v497 = vadd.f32 %v445, %v477
  %v498 = vadd.f32 %v446, %v477
  %v499 = vadd.f32 %v447, %v477
  %v500 = vadd.f32 %v448, %v477
  %v501 = vadd.f32 %v449, %v477
  %v502 = vadd.f32 %v450, %v477
  %v503 = vadd.f32 %v451, %v477
  %v504 = vadd.f32 %v452, %v477
  %v505 = vadd.f32 %v453, %v477
  %v506 = vadd.f32 %v454, %v477
  %v507 = vadd.f32 %v455, %v477
  %v508 = vadd.f32 %v456, %v477
  %v509 = vadd.f32 %v457, %v477
  %v510 = vadd.f32 %v458, %v477
  %v511 = vadd.f32 %v459, %v477
  %v512 = vadd.f32 %v460, %v477
  %v513 = vadd.f32 %v461, %v477
  %v514 = vadd.f32 %v462, %v477
  %v515 = vadd.f32 %v463, %v477
  %v516 = vadd.f32 %v464, %v477
  %v517 = vadd.f32 %v465, %v477
  %v518 = vadd.f32 %v466, %v477
  %v519 = vadd.f32 %v467, %v477
  %v520 = vadd.f32 %v468, %v477
  %v521 = vadd.f32 %v469, %v477
  %v522 = vadd.f32 %v470, %v477
  %v523 = vadd.f32 %v471, %v477
  %v524 = vadd.f32 %v472, %v477
  %v525 = vadd.f32 %v473, %v477
  %v526 = vadd.f32 %v474, %v477
  %v527 = vadd.f32 %v475, %v477
  %v528 = vld [vmem:[%s1] sm:$0xf]
  %v529 = vld [vmem:[%s1 + $0x4] sm:$0xf]
  %v530 = vld [vmem:[%s1 + $0x8] sm:$0xf]
  %v531 = vld [vmem:[%s1 + $0xc] sm:$0xf]
  %v532 = vld [vmem:[%s1 + $0x10] sm:$0xf]
  %v533 = vld [vmem:[%s1 + $0x14] sm:$0xf]
  %v534 = vld [vmem:[%s1 + $0x18] sm:$0xf]
  %v535 = vld [vmem:[%s1 + $0x1c] sm:$0xf]
  %v536 = vld [vmem:[%s1 + $0x20] sm:$0xf]
  %v537 = vld [vmem:[%s1 + $0x24] sm:$0xf]
  %v538 = vld [vmem:[%s1 + $0x28] sm:$0xf]
  %v539 = vld [vmem:[%s1 + $0x2c] sm:$0xf]
  %v540 = vld [vmem:[%s1 + $0x30] sm:$0xf]
  %v541 = vld [vmem:[%s1 + $0x34] sm:$0xf]
  %v542 = vld [vmem:[%s1 + $0x38] sm:$0xf]
  %v543 = vld [vmem:[%s1 + $0x3c] sm:$0xf]
  %v544 = vld [vmem:[%s1 + $0x40] sm:$0xf]
  %v545 = vld [vmem:[%s1 + $0x44] sm:$0xf]
  %v546 = vld [vmem:[%s1 + $0x48] sm:$0xf]
  %v547 = vld [vmem:[%s1 + $0x4c] sm:$0xf]
  %v548 = vld [vmem:[%s1 + $0x50] sm:$0xf]
  %v549 = vld [vmem:[%s1 + $0x54] sm:$0xf]
  %v550 = vld [vmem:[%s1 + $0x58] sm:$0xf]
  %v551 = vld [vmem:[%s1 + $0x5c] sm:$0xf]
  %v552 = vld [vmem:[%s1 + $0x60] sm:$0xf]
  %v553 = vld [vmem:[%s1 + $0x64] sm:$0xf]
  %v554 = vld [vmem:[%s1 + $0x68] sm:$0xf]
  %v555 = vld [vmem:[%s1 + $0x6c] sm:$0xf]
  %v556 = vld [vmem:[%s1 + $0x70] sm:$0xf]
  %v557 = vld [vmem:[%s1 + $0x74] sm:$0xf]
  %v558 = vld [vmem:[%s1 + $0x78] sm:$0xf]
  %v559 = vld [vmem:[%s1 + $0x7c] sm:$0xf]
  %v560 = vld [vmem:[%s1 + $0x80] sm:$0xf]
  %v561 = vld [vmem:[%s1 + $0x84] sm:$0xf]
  %v562 = vld [vmem:[%s1 + $0x88] sm:$0xf]
  %v563 = vld [vmem:[%s1 + $0x8c] sm:$0xf]
  %v564 = vld [vmem:[%s1 + $0x90] sm:$0xf]
  %v565 = vld [vmem:[%s1 + $0x94] sm:$0xf]
  %v566 = vld [vmem:[%s1 + $0x98] sm:$0xf]
  %v567 = vld [vmem:[%s1 + $0x9c] sm:$0xf]
  %v568 = vld [vmem:[%s1 + $0xa0] sm:$0xf]
  %v569 = vld [vmem:[%s1 + $0xa4] sm:$0xf]
  %v570 = vld [vmem:[%s1 + $0xa8] sm:$0xf]
  %v571 = vld [vmem:[%s1 + $0xac] sm:$0xf]
  %v572 = vld [vmem:[%s1 + $0xb0] sm:$0xf]
  %v573 = vld [vmem:[%s1 + $0xb4] sm:$0xf]
  %v574 = vld [vmem:[%s1 + $0xb8] sm:$0xf]
  %v575 = vld [vmem:[%s1 + $0xbc] sm:$0xf]
  %v576 = vld [vmem:[%s1 + $0xc0] sm:$0xf]
  %v626 = vunpack.c.l.b16 %v528
  %v627 = vunpack.c.l.b16 %v529
  %v628 = vunpack.c.l.b16 %v530
  %v629 = vunpack.c.l.b16 %v531
  %v630 = vunpack.c.l.b16 %v532
  %v631 = vunpack.c.l.b16 %v533
  %v632 = vunpack.c.l.b16 %v534
  %v633 = vunpack.c.l.b16 %v535
  %v634 = vunpack.c.l.b16 %v536
  %v635 = vunpack.c.l.b16 %v537
  %v636 = vunpack.c.l.b16 %v538
  %v637 = vunpack.c.l.b16 %v539
  %v638 = vunpack.c.l.b16 %v540
  %v639 = vunpack.c.l.b16 %v541
  %v640 = vunpack.c.l.b16 %v542
  %v641 = vunpack.c.l.b16 %v543
  %v642 = vunpack.c.l.b16 %v544
  %v643 = vunpack.c.l.b16 %v545
  %v644 = vunpack.c.l.b16 %v546
  %v645 = vunpack.c.l.b16 %v547
  %v646 = vunpack.c.l.b16 %v548
  %v647 = vunpack.c.l.b16 %v549
  %v648 = vunpack.c.l.b16 %v550
  %v649 = vunpack.c.l.b16 %v551
  %v650 = vunpack.c.l.b16 %v552
  %v651 = vunpack.c.l.b16 %v553
  %v652 = vunpack.c.l.b16 %v554
  %v653 = vunpack.c.l.b16 %v555
  %v654 = vunpack.c.l.b16 %v556
  %v655 = vunpack.c.l.b16 %v557
  %v656 = vunpack.c.l.b16 %v558
  %v657 = vunpack.c.l.b16 %v559
  %v658 = vunpack.c.l.b16 %v560
  %v659 = vunpack.c.l.b16 %v561
  %v660 = vunpack.c.l.b16 %v562
  %v661 = vunpack.c.l.b16 %v563
  %v662 = vunpack.c.l.b16 %v564
  %v663 = vunpack.c.l.b16 %v565
  %v664 = vunpack.c.l.b16 %v566
  %v665 = vunpack.c.l.b16 %v567
  %v666 = vunpack.c.l.b16 %v568
  %v667 = vunpack.c.l.b16 %v569
  %v668 = vunpack.c.l.b16 %v570
  %v669 = vunpack.c.l.b16 %v571
  %v670 = vunpack.c.l.b16 %v572
  %v671 = vunpack.c.l.b16 %v573
  %v672 = vunpack.c.l.b16 %v574
  %v673 = vunpack.c.l.b16 %v575
  %v674 = vunpack.c.l.b16 %v576
  %v675 = vpack.c.b16 %v627, %v626
  %v676 = vpack.c.b16 %v629, %v628
  %v677 = vpack.c.b16 %v631, %v630
  %v678 = vpack.c.b16 %v633, %v632
  %v679 = vpack.c.b16 %v635, %v634
  %v680 = vpack.c.b16 %v637, %v636
  %v681 = vpack.c.b16 %v639, %v638
  %v682 = vpack.c.b16 %v641, %v640
  %v683 = vpack.c.b16 %v643, %v642
  %v684 = vpack.c.b16 %v645, %v644
  %v685 = vpack.c.b16 %v647, %v646
  %v686 = vpack.c.b16 %v649, %v648
  %v687 = vpack.c.b16 %v651, %v650
  %v688 = vpack.c.b16 %v653, %v652
  %v689 = vpack.c.b16 %v655, %v654
  %v690 = vpack.c.b16 %v657, %v656
  %v691 = vpack.c.b16 %v659, %v658
  %v692 = vpack.c.b16 %v661, %v660
  %v693 = vpack.c.b16 %v663, %v662
  %v694 = vpack.c.b16 %v665, %v664
  %v695 = vpack.c.b16 %v667, %v666
  %v696 = vpack.c.b16 %v669, %v668
  %v697 = vpack.c.b16 %v671, %v670
  %v698 = vpack.c.b16 %v673, %v672
  %v699 = vpack.c.b16 %v674, %v674
  %v701 = vsel %vm208, %v675, 0
  %v704 = vsel %vm208, %v676, 0
  %v707 = vsel %vm208, %v677, 0
  %v710 = vsel %vm208, %v678, 0
  %v713 = vsel %vm208, %v679, 0
  %v716 = vsel %vm208, %v680, 0
  %v719 = vsel %vm208, %v681, 0
  %v722 = vsel %vm208, %v682, 0
  %v725 = vsel %vm208, %v683, 0
  %v728 = vsel %vm208, %v684, 0
  %v731 = vsel %vm208, %v685, 0
  %v734 = vsel %vm208, %v686, 0
  %v737 = vsel %vm208, %v687, 0
  %v740 = vsel %vm208, %v688, 0
  %v743 = vsel %vm208, %v689, 0
  %v746 = vsel %vm208, %v690, 0
  %v749 = vsel %vm208, %v691, 0
  %v752 = vsel %vm208, %v692, 0
  %v755 = vsel %vm208, %v693, 0
  %v758 = vsel %vm208, %v694, 0
  %v761 = vsel %vm208, %v695, 0
  %v764 = vsel %vm208, %v696, 0
  %v767 = vsel %vm208, %v697, 0
  %v770 = vsel %vm208, %v698, 0
  %v773 = vsel %vm208, %v699, 0
  %775 = vmatpush.bf16.msra.mxu0 0
  %776 = vmatpush.bf16.msra.mxu0 0
  %777 = vmatpush.bf16.msra.mxu0 0
  %778 = vmatpush.bf16.msra.mxu0 0
  %779 = vmatpush.bf16.msra.mxu0 0
  %780 = vmatpush.bf16.msra.mxu0 0
  %781 = vmatpush.bf16.msra.mxu0 0
  %782 = vmatpush.bf16.msra.mxu0 %v289
  %783 = vmatmul.bf16.gmra.mxu0 %v701
  %v784 = vpop.f32.mrf.mxu0
  %v785 = vadd.f32 0.0, %v784
  %v786 = vpop.f32.mrf.mxu0
  %v787 = vadd.f32 0.0, %v786
  %788 = vmatmul.bf16.gmra.mxu0 %v704
  %v789 = vpop.f32.mrf.mxu0
  %v790 = vadd.f32 0.0, %v789
  %v791 = vpop.f32.mrf.mxu0
  %v792 = vadd.f32 0.0, %v791
  %793 = vmatmul.bf16.gmra.mxu0 %v707
  %v794 = vpop.f32.mrf.mxu0
  %v795 = vadd.f32 0.0, %v794
  %v796 = vpop.f32.mrf.mxu0
  %v797 = vadd.f32 0.0, %v796
  %798 = vmatmul.bf16.gmra.mxu0 %v710
  %v799 = vpop.f32.mrf.mxu0
  %v800 = vadd.f32 0.0, %v799
  %v801 = vpop.f32.mrf.mxu0
  %v802 = vadd.f32 0.0, %v801
  %803 = vmatmul.bf16.gmra.mxu0 %v713
  %v804 = vpop.f32.mrf.mxu0
  %v805 = vadd.f32 0.0, %v804
  %v806 = vpop.f32.mrf.mxu0
  %v807 = vadd.f32 0.0, %v806
  %808 = vmatmul.bf16.gmra.mxu0 %v716
  %v809 = vpop.f32.mrf.mxu0
  %v810 = vadd.f32 0.0, %v809
  %v811 = vpop.f32.mrf.mxu0
  %v812 = vadd.f32 0.0, %v811
  %813 = vmatmul.bf16.gmra.mxu0 %v719
  %v814 = vpop.f32.mrf.mxu0
  %v815 = vadd.f32 0.0, %v814
  %v816 = vpop.f32.mrf.mxu0
  %v817 = vadd.f32 0.0, %v816
  %818 = vmatmul.bf16.gmra.mxu0 %v722
  %v819 = vpop.f32.mrf.mxu0
  %v820 = vadd.f32 0.0, %v819
  %v821 = vpop.f32.mrf.mxu0
  %v822 = vadd.f32 0.0, %v821
  %823 = vmatmul.bf16.gmra.mxu0 %v725
  %v824 = vpop.f32.mrf.mxu0
  %v825 = vadd.f32 0.0, %v824
  %v826 = vpop.f32.mrf.mxu0
  %v827 = vadd.f32 0.0, %v826
  %828 = vmatmul.bf16.gmra.mxu0 %v728
  %v829 = vpop.f32.mrf.mxu0
  %v830 = vadd.f32 0.0, %v829
  %v831 = vpop.f32.mrf.mxu0
  %v832 = vadd.f32 0.0, %v831
  %833 = vmatmul.bf16.gmra.mxu0 %v731
  %v834 = vpop.f32.mrf.mxu0
  %v835 = vadd.f32 0.0, %v834
  %v836 = vpop.f32.mrf.mxu0
  %v837 = vadd.f32 0.0, %v836
  %838 = vmatmul.bf16.gmra.mxu0 %v734
  %v839 = vpop.f32.mrf.mxu0
  %v840 = vadd.f32 0.0, %v839
  %v841 = vpop.f32.mrf.mxu0
  %v842 = vadd.f32 0.0, %v841
  %843 = vmatmul.bf16.gmra.mxu0 %v737
  %v844 = vpop.f32.mrf.mxu0
  %v845 = vadd.f32 0.0, %v844
  %v846 = vpop.f32.mrf.mxu0
  %v847 = vadd.f32 0.0, %v846
  %848 = vmatmul.bf16.gmra.mxu0 %v740
  %v849 = vpop.f32.mrf.mxu0
  %v850 = vadd.f32 0.0, %v849
  %v851 = vpop.f32.mrf.mxu0
  %v852 = vadd.f32 0.0, %v851
  %853 = vmatmul.bf16.gmra.mxu0 %v743
  %v854 = vpop.f32.mrf.mxu0
  %v855 = vadd.f32 0.0, %v854
  %v856 = vpop.f32.mrf.mxu0
  %v857 = vadd.f32 0.0, %v856
  %858 = vmatmul.bf16.gmra.mxu0 %v746
  %v859 = vpop.f32.mrf.mxu0
  %v860 = vadd.f32 0.0, %v859
  %v861 = vpop.f32.mrf.mxu0
  %v862 = vadd.f32 0.0, %v861
  %863 = vmatmul.bf16.gmra.mxu0 %v749
  %v864 = vpop.f32.mrf.mxu0
  %v865 = vadd.f32 0.0, %v864
  %v866 = vpop.f32.mrf.mxu0
  %v867 = vadd.f32 0.0, %v866
  %868 = vmatmul.bf16.gmra.mxu0 %v752
  %v869 = vpop.f32.mrf.mxu0
  %v870 = vadd.f32 0.0, %v869
  %v871 = vpop.f32.mrf.mxu0
  %v872 = vadd.f32 0.0, %v871
  %873 = vmatmul.bf16.gmra.mxu0 %v755
  %v874 = vpop.f32.mrf.mxu0
  %v875 = vadd.f32 0.0, %v874
  %v876 = vpop.f32.mrf.mxu0
  %v877 = vadd.f32 0.0, %v876
  %878 = vmatmul.bf16.gmra.mxu0 %v758
  %v879 = vpop.f32.mrf.mxu0
  %v880 = vadd.f32 0.0, %v879
  %v881 = vpop.f32.mrf.mxu0
  %v882 = vadd.f32 0.0, %v881
  %883 = vmatmul.bf16.gmra.mxu0 %v761
  %v884 = vpop.f32.mrf.mxu0
  %v885 = vadd.f32 0.0, %v884
  %v886 = vpop.f32.mrf.mxu0
  %v887 = vadd.f32 0.0, %v886
  %888 = vmatmul.bf16.gmra.mxu0 %v764
  %v889 = vpop.f32.mrf.mxu0
  %v890 = vadd.f32 0.0, %v889
  %v891 = vpop.f32.mrf.mxu0
  %v892 = vadd.f32 0.0, %v891
  %893 = vmatmul.bf16.gmra.mxu0 %v767
  %v894 = vpop.f32.mrf.mxu0
  %v895 = vadd.f32 0.0, %v894
  %v896 = vpop.f32.mrf.mxu0
  %v897 = vadd.f32 0.0, %v896
  %898 = vmatmul.bf16.gmra.mxu0 %v770
  %v899 = vpop.f32.mrf.mxu0
  %v900 = vadd.f32 0.0, %v899
  %v901 = vpop.f32.mrf.mxu0
  %v902 = vadd.f32 0.0, %v901
  %903 = vmatmul.bf16.gmra.mxu0 %v773
  %v904 = vpop.f32.mrf.mxu0
  %v905 = vadd.f32 0.0, %v904
  %v906 = vpop.f32.mrf.mxu0
  %907 = vdwg.mxu0
  %v908 = vmul.f32 %v785, %v425
  %v909 = vmul.f32 %v787, %v425
  %v910 = vmul.f32 %v790, %v425
  %v911 = vmul.f32 %v792, %v425
  %v912 = vmul.f32 %v795, %v425
  %v913 = vmul.f32 %v797, %v425
  %v914 = vmul.f32 %v800, %v425
  %v915 = vmul.f32 %v802, %v425
  %v916 = vmul.f32 %v805, %v425
  %v917 = vmul.f32 %v807, %v425
  %v918 = vmul.f32 %v810, %v425
  %v919 = vmul.f32 %v812, %v425
  %v920 = vmul.f32 %v815, %v425
  %v921 = vmul.f32 %v817, %v425
  %v922 = vmul.f32 %v820, %v425
  %v923 = vmul.f32 %v822, %v425
  %v924 = vmul.f32 %v825, %v425
  %v925 = vmul.f32 %v827, %v425
  %v926 = vmul.f32 %v830, %v425
  %v927 = vmul.f32 %v832, %v425
  %v928 = vmul.f32 %v835, %v425
  %v929 = vmul.f32 %v837, %v425
  %v930 = vmul.f32 %v840, %v425
  %v931 = vmul.f32 %v842, %v425
  %v932 = vmul.f32 %v845, %v425
  %v933 = vmul.f32 %v847, %v425
  %v934 = vmul.f32 %v850, %v425
  %v935 = vmul.f32 %v852, %v425
  %v936 = vmul.f32 %v855, %v425
  %v937 = vmul.f32 %v857, %v425
  %v938 = vmul.f32 %v860, %v425
  %v939 = vmul.f32 %v862, %v425
  %v940 = vmul.f32 %v865, %v425
  %v941 = vmul.f32 %v867, %v425
  %v942 = vmul.f32 %v870, %v425
  %v943 = vmul.f32 %v872, %v425
  %v944 = vmul.f32 %v875, %v425
  %v945 = vmul.f32 %v877, %v425
  %v946 = vmul.f32 %v880, %v425
  %v947 = vmul.f32 %v882, %v425
  %v948 = vmul.f32 %v885, %v425
  %v949 = vmul.f32 %v887, %v425
  %v950 = vmul.f32 %v890, %v425
  %v951 = vmul.f32 %v892, %v425
  %v952 = vmul.f32 %v895, %v425
  %v953 = vmul.f32 %v897, %v425
  %v954 = vmul.f32 %v900, %v425
  %v955 = vmul.f32 %v902, %v425
  %v956 = vmul.f32 %v905, %v425
  %v957 = vadd.f32 %v908, %v477
  %v958 = vadd.f32 %v909, %v477
  %v959 = vadd.f32 %v910, %v477
  %v960 = vadd.f32 %v911, %v477
  %v961 = vadd.f32 %v912, %v477
  %v962 = vadd.f32 %v913, %v477
  %v963 = vadd.f32 %v914, %v477
  %v964 = vadd.f32 %v915, %v477
  %v965 = vadd.f32 %v916, %v477
  %v966 = vadd.f32 %v917, %v477
  %v967 = vadd.f32 %v918, %v477
  %v968 = vadd.f32 %v919, %v477
  %v969 = vadd.f32 %v920, %v477
  %v970 = vadd.f32 %v921, %v477
  %v971 = vadd.f32 %v922, %v477
  %v972 = vadd.f32 %v923, %v477
  %v973 = vadd.f32 %v924, %v477
  %v974 = vadd.f32 %v925, %v477
  %v975 = vadd.f32 %v926, %v477
  %v976 = vadd.f32 %v927, %v477
  %v977 = vadd.f32 %v928, %v477
  %v978 = vadd.f32 %v929, %v477
  %v979 = vadd.f32 %v930, %v477
  %v980 = vadd.f32 %v931, %v477
  %v981 = vadd.f32 %v932, %v477
  %v982 = vadd.f32 %v933, %v477
  %v983 = vadd.f32 %v934, %v477
  %v984 = vadd.f32 %v935, %v477
  %v985 = vadd.f32 %v936, %v477
  %v986 = vadd.f32 %v937, %v477
  %v987 = vadd.f32 %v938, %v477
  %v988 = vadd.f32 %v939, %v477
  %v989 = vadd.f32 %v940, %v477
  %v990 = vadd.f32 %v941, %v477
  %v991 = vadd.f32 %v942, %v477
  %v992 = vadd.f32 %v943, %v477
  %v993 = vadd.f32 %v944, %v477
  %v994 = vadd.f32 %v945, %v477
  %v995 = vadd.f32 %v946, %v477
  %v996 = vadd.f32 %v947, %v477
  %v997 = vadd.f32 %v948, %v477
  %v998 = vadd.f32 %v949, %v477
  %v999 = vadd.f32 %v950, %v477
  %v1000 = vadd.f32 %v951, %v477
  %v1001 = vadd.f32 %v952, %v477
  %v1002 = vadd.f32 %v953, %v477
  %v1003 = vadd.f32 %v954, %v477
  %v1004 = vadd.f32 %v955, %v477
  %v1005 = vadd.f32 %v956, %v477
  %v1006 = vmax.f32 %v479, %v957
  %v1007 = vmax.f32 %v480, %v958
  %v1008 = vmax.f32 %v481, %v959
  %v1009 = vmax.f32 %v482, %v960
  %v1010 = vmax.f32 %v483, %v961
  %v1011 = vmax.f32 %v484, %v962
  %v1012 = vmax.f32 %v485, %v963
  %v1013 = vmax.f32 %v486, %v964
  %v1014 = vmax.f32 %v487, %v965
  %v1015 = vmax.f32 %v488, %v966
  %v1016 = vmax.f32 %v489, %v967
  %v1017 = vmax.f32 %v490, %v968
  %v1018 = vmax.f32 %v491, %v969
  %v1019 = vmax.f32 %v492, %v970
  %v1020 = vmax.f32 %v493, %v971
  %v1021 = vmax.f32 %v494, %v972
  %v1022 = vmax.f32 %v495, %v973
  %v1023 = vmax.f32 %v496, %v974
  %v1024 = vmax.f32 %v497, %v975
  %v1025 = vmax.f32 %v498, %v976
  %v1026 = vmax.f32 %v499, %v977
  %v1027 = vmax.f32 %v500, %v978
  %v1028 = vmax.f32 %v501, %v979
  %v1029 = vmax.f32 %v502, %v980
  %v1030 = vmax.f32 %v503, %v981
  %v1031 = vmax.f32 %v504, %v982
  %v1032 = vmax.f32 %v505, %v983
  %v1033 = vmax.f32 %v506, %v984
  %v1034 = vmax.f32 %v507, %v985
  %v1035 = vmax.f32 %v508, %v986
  %v1036 = vmax.f32 %v509, %v987
  %v1037 = vmax.f32 %v510, %v988
  %v1038 = vmax.f32 %v511, %v989
  %v1039 = vmax.f32 %v512, %v990
  %v1040 = vmax.f32 %v513, %v991
  %v1041 = vmax.f32 %v514, %v992
  %v1042 = vmax.f32 %v515, %v993
  %v1043 = vmax.f32 %v516, %v994
  %v1044 = vmax.f32 %v517, %v995
  %v1045 = vmax.f32 %v518, %v996
  %v1046 = vmax.f32 %v519, %v997
  %v1047 = vmax.f32 %v520, %v998
  %v1048 = vmax.f32 %v521, %v999
  %v1049 = vmax.f32 %v522, %v1000
  %v1050 = vmax.f32 %v523, %v1001
  %v1051 = vmax.f32 %v524, %v1002
  %v1052 = vmax.f32 %v525, %v1003
  %v1053 = vmax.f32 %v526, %v1004
  %v1054 = vmax.f32 %v527, %v1005
  %v1055 = vld [vmem:[%s2] sm:$0xf]
  %v1056 = vld [vmem:[%s2 + $0x4] sm:$0xf]
  %v1057 = vld [vmem:[%s2 + $0x8] sm:$0xf]
  %v1058 = vld [vmem:[%s2 + $0xc] sm:$0xf]
  %v1059 = vld [vmem:[%s2 + $0x10] sm:$0xf]
  %v1060 = vld [vmem:[%s2 + $0x14] sm:$0xf]
  %v1061 = vld [vmem:[%s2 + $0x18] sm:$0xf]
  %v1062 = vld [vmem:[%s2 + $0x1c] sm:$0xf]
  %v1063 = vld [vmem:[%s2 + $0x20] sm:$0xf]
  %v1064 = vld [vmem:[%s2 + $0x24] sm:$0xf]
  %v1065 = vld [vmem:[%s2 + $0x28] sm:$0xf]
  %v1066 = vld [vmem:[%s2 + $0x2c] sm:$0xf]
  %v1067 = vld [vmem:[%s2 + $0x30] sm:$0xf]
  %v1068 = vld [vmem:[%s2 + $0x34] sm:$0xf]
  %v1069 = vld [vmem:[%s2 + $0x38] sm:$0xf]
  %v1070 = vld [vmem:[%s2 + $0x3c] sm:$0xf]
  %v1071 = vld [vmem:[%s2 + $0x40] sm:$0xf]
  %v1072 = vld [vmem:[%s2 + $0x44] sm:$0xf]
  %v1073 = vld [vmem:[%s2 + $0x48] sm:$0xf]
  %v1074 = vld [vmem:[%s2 + $0x4c] sm:$0xf]
  %v1075 = vld [vmem:[%s2 + $0x50] sm:$0xf]
  %v1076 = vld [vmem:[%s2 + $0x54] sm:$0xf]
  %v1077 = vld [vmem:[%s2 + $0x58] sm:$0xf]
  %v1078 = vld [vmem:[%s2 + $0x5c] sm:$0xf]
  %v1079 = vld [vmem:[%s2 + $0x60] sm:$0xf]
  %v1080 = vld [vmem:[%s2 + $0x64] sm:$0xf]
  %v1081 = vld [vmem:[%s2 + $0x68] sm:$0xf]
  %v1082 = vld [vmem:[%s2 + $0x6c] sm:$0xf]
  %v1083 = vld [vmem:[%s2 + $0x70] sm:$0xf]
  %v1084 = vld [vmem:[%s2 + $0x74] sm:$0xf]
  %v1085 = vld [vmem:[%s2 + $0x78] sm:$0xf]
  %v1086 = vld [vmem:[%s2 + $0x7c] sm:$0xf]
  %v1087 = vld [vmem:[%s2 + $0x80] sm:$0xf]
  %v1088 = vld [vmem:[%s2 + $0x84] sm:$0xf]
  %v1089 = vld [vmem:[%s2 + $0x88] sm:$0xf]
  %v1090 = vld [vmem:[%s2 + $0x8c] sm:$0xf]
  %v1091 = vld [vmem:[%s2 + $0x90] sm:$0xf]
  %v1092 = vld [vmem:[%s2 + $0x94] sm:$0xf]
  %v1093 = vld [vmem:[%s2 + $0x98] sm:$0xf]
  %v1094 = vld [vmem:[%s2 + $0x9c] sm:$0xf]
  %v1095 = vld [vmem:[%s2 + $0xa0] sm:$0xf]
  %v1096 = vld [vmem:[%s2 + $0xa4] sm:$0xf]
  %v1097 = vld [vmem:[%s2 + $0xa8] sm:$0xf]
  %v1098 = vld [vmem:[%s2 + $0xac] sm:$0xf]
  %v1099 = vld [vmem:[%s2 + $0xb0] sm:$0xf]
  %v1100 = vld [vmem:[%s2 + $0xb4] sm:$0xf]
  %v1101 = vld [vmem:[%s2 + $0xb8] sm:$0xf]
  %v1102 = vld [vmem:[%s2 + $0xbc] sm:$0xf]
  %v1103 = vld [vmem:[%s2 + $0xc0] sm:$0xf]
  %v1153 = vunpack.c.l.b16 %v1055
  %v1154 = vunpack.c.l.b16 %v1056
  %v1155 = vunpack.c.l.b16 %v1057
  %v1156 = vunpack.c.l.b16 %v1058
  %v1157 = vunpack.c.l.b16 %v1059
  %v1158 = vunpack.c.l.b16 %v1060
  %v1159 = vunpack.c.l.b16 %v1061
  %v1160 = vunpack.c.l.b16 %v1062
  %v1161 = vunpack.c.l.b16 %v1063
  %v1162 = vunpack.c.l.b16 %v1064
  %v1163 = vunpack.c.l.b16 %v1065
  %v1164 = vunpack.c.l.b16 %v1066
  %v1165 = vunpack.c.l.b16 %v1067
  %v1166 = vunpack.c.l.b16 %v1068
  %v1167 = vunpack.c.l.b16 %v1069
  %v1168 = vunpack.c.l.b16 %v1070
  %v1169 = vunpack.c.l.b16 %v1071
  %v1170 = vunpack.c.l.b16 %v1072
  %v1171 = vunpack.c.l.b16 %v1073
  %v1172 = vunpack.c.l.b16 %v1074
  %v1173 = vunpack.c.l.b16 %v1075
  %v1174 = vunpack.c.l.b16 %v1076
  %v1175 = vunpack.c.l.b16 %v1077
  %v1176 = vunpack.c.l.b16 %v1078
  %v1177 = vunpack.c.l.b16 %v1079
  %v1178 = vunpack.c.l.b16 %v1080
  %v1179 = vunpack.c.l.b16 %v1081
  %v1180 = vunpack.c.l.b16 %v1082
  %v1181 = vunpack.c.l.b16 %v1083
  %v1182 = vunpack.c.l.b16 %v1084
  %v1183 = vunpack.c.l.b16 %v1085
  %v1184 = vunpack.c.l.b16 %v1086
  %v1185 = vunpack.c.l.b16 %v1087
  %v1186 = vunpack.c.l.b16 %v1088
  %v1187 = vunpack.c.l.b16 %v1089
  %v1188 = vunpack.c.l.b16 %v1090
  %v1189 = vunpack.c.l.b16 %v1091
  %v1190 = vunpack.c.l.b16 %v1092
  %v1191 = vunpack.c.l.b16 %v1093
  %v1192 = vunpack.c.l.b16 %v1094
  %v1193 = vunpack.c.l.b16 %v1095
  %v1194 = vunpack.c.l.b16 %v1096
  %v1195 = vunpack.c.l.b16 %v1097
  %v1196 = vunpack.c.l.b16 %v1098
  %v1197 = vunpack.c.l.b16 %v1099
  %v1198 = vunpack.c.l.b16 %v1100
  %v1199 = vunpack.c.l.b16 %v1101
  %v1200 = vunpack.c.l.b16 %v1102
  %v1201 = vunpack.c.l.b16 %v1103
  %v1202 = vpack.c.b16 %v1154, %v1153
  %v1203 = vpack.c.b16 %v1156, %v1155
  %v1204 = vpack.c.b16 %v1158, %v1157
  %v1205 = vpack.c.b16 %v1160, %v1159
  %v1206 = vpack.c.b16 %v1162, %v1161
  %v1207 = vpack.c.b16 %v1164, %v1163
  %v1208 = vpack.c.b16 %v1166, %v1165
  %v1209 = vpack.c.b16 %v1168, %v1167
  %v1210 = vpack.c.b16 %v1170, %v1169
  %v1211 = vpack.c.b16 %v1172, %v1171
  %v1212 = vpack.c.b16 %v1174, %v1173
  %v1213 = vpack.c.b16 %v1176, %v1175
  %v1214 = vpack.c.b16 %v1178, %v1177
  %v1215 = vpack.c.b16 %v1180, %v1179
  %v1216 = vpack.c.b16 %v1182, %v1181
  %v1217 = vpack.c.b16 %v1184, %v1183
  %v1218 = vpack.c.b16 %v1186, %v1185
  %v1219 = vpack.c.b16 %v1188, %v1187
  %v1220 = vpack.c.b16 %v1190, %v1189
  %v1221 = vpack.c.b16 %v1192, %v1191
  %v1222 = vpack.c.b16 %v1194, %v1193
  %v1223 = vpack.c.b16 %v1196, %v1195
  %v1224 = vpack.c.b16 %v1198, %v1197
  %v1225 = vpack.c.b16 %v1200, %v1199
  %v1226 = vpack.c.b16 %v1201, %v1201
  %v1228 = vsel %vm208, %v1202, 0
  %v1231 = vsel %vm208, %v1203, 0
  %v1234 = vsel %vm208, %v1204, 0
  %v1237 = vsel %vm208, %v1205, 0
  %v1240 = vsel %vm208, %v1206, 0
  %v1243 = vsel %vm208, %v1207, 0
  %v1246 = vsel %vm208, %v1208, 0
  %v1249 = vsel %vm208, %v1209, 0
  %v1252 = vsel %vm208, %v1210, 0
  %v1255 = vsel %vm208, %v1211, 0
  %v1258 = vsel %vm208, %v1212, 0
  %v1261 = vsel %vm208, %v1213, 0
  %v1264 = vsel %vm208, %v1214, 0
  %v1267 = vsel %vm208, %v1215, 0
  %v1270 = vsel %vm208, %v1216, 0
  %v1273 = vsel %vm208, %v1217, 0
  %v1276 = vsel %vm208, %v1218, 0
  %v1279 = vsel %vm208, %v1219, 0
  %v1282 = vsel %vm208, %v1220, 0
  %v1285 = vsel %vm208, %v1221, 0
  %v1288 = vsel %vm208, %v1222, 0
  %v1291 = vsel %vm208, %v1223, 0
  %v1294 = vsel %vm208, %v1224, 0
  %v1297 = vsel %vm208, %v1225, 0
  %v1300 = vsel %vm208, %v1226, 0
  %1302 = vmatpush.bf16.msra.mxu0 0
  %1303 = vmatpush.bf16.msra.mxu0 0
  %1304 = vmatpush.bf16.msra.mxu0 0
  %1305 = vmatpush.bf16.msra.mxu0 0
  %1306 = vmatpush.bf16.msra.mxu0 0
  %1307 = vmatpush.bf16.msra.mxu0 0
  %1308 = vmatpush.bf16.msra.mxu0 0
  %1309 = vmatpush.bf16.msra.mxu0 %v289
  %1310 = vmatmul.bf16.gmra.mxu0 %v1228
  %v1311 = vpop.f32.mrf.mxu0
  %v1312 = vadd.f32 0.0, %v1311
  %v1313 = vpop.f32.mrf.mxu0
  %v1314 = vadd.f32 0.0, %v1313
  %1315 = vmatmul.bf16.gmra.mxu0 %v1231
  %v1316 = vpop.f32.mrf.mxu0
  %v1317 = vadd.f32 0.0, %v1316
  %v1318 = vpop.f32.mrf.mxu0
  %v1319 = vadd.f32 0.0, %v1318
  %1320 = vmatmul.bf16.gmra.mxu0 %v1234
  %v1321 = vpop.f32.mrf.mxu0
  %v1322 = vadd.f32 0.0, %v1321
  %v1323 = vpop.f32.mrf.mxu0
  %v1324 = vadd.f32 0.0, %v1323
  %1325 = vmatmul.bf16.gmra.mxu0 %v1237
  %v1326 = vpop.f32.mrf.mxu0
  %v1327 = vadd.f32 0.0, %v1326
  %v1328 = vpop.f32.mrf.mxu0
  %v1329 = vadd.f32 0.0, %v1328
  %1330 = vmatmul.bf16.gmra.mxu0 %v1240
  %v1331 = vpop.f32.mrf.mxu0
  %v1332 = vadd.f32 0.0, %v1331
  %v1333 = vpop.f32.mrf.mxu0
  %v1334 = vadd.f32 0.0, %v1333
  %1335 = vmatmul.bf16.gmra.mxu0 %v1243
  %v1336 = vpop.f32.mrf.mxu0
  %v1337 = vadd.f32 0.0, %v1336
  %v1338 = vpop.f32.mrf.mxu0
  %v1339 = vadd.f32 0.0, %v1338
  %1340 = vmatmul.bf16.gmra.mxu0 %v1246
  %v1341 = vpop.f32.mrf.mxu0
  %v1342 = vadd.f32 0.0, %v1341
  %v1343 = vpop.f32.mrf.mxu0
  %v1344 = vadd.f32 0.0, %v1343
  %1345 = vmatmul.bf16.gmra.mxu0 %v1249
  %v1346 = vpop.f32.mrf.mxu0
  %v1347 = vadd.f32 0.0, %v1346
  %v1348 = vpop.f32.mrf.mxu0
  %v1349 = vadd.f32 0.0, %v1348
  %1350 = vmatmul.bf16.gmra.mxu0 %v1252
  %v1351 = vpop.f32.mrf.mxu0
  %v1352 = vadd.f32 0.0, %v1351
  %v1353 = vpop.f32.mrf.mxu0
  %v1354 = vadd.f32 0.0, %v1353
  %1355 = vmatmul.bf16.gmra.mxu0 %v1255
  %v1356 = vpop.f32.mrf.mxu0
  %v1357 = vadd.f32 0.0, %v1356
  %v1358 = vpop.f32.mrf.mxu0
  %v1359 = vadd.f32 0.0, %v1358
  %1360 = vmatmul.bf16.gmra.mxu0 %v1258
  %v1361 = vpop.f32.mrf.mxu0
  %v1362 = vadd.f32 0.0, %v1361
  %v1363 = vpop.f32.mrf.mxu0
  %v1364 = vadd.f32 0.0, %v1363
  %1365 = vmatmul.bf16.gmra.mxu0 %v1261
  %v1366 = vpop.f32.mrf.mxu0
  %v1367 = vadd.f32 0.0, %v1366
  %v1368 = vpop.f32.mrf.mxu0
  %v1369 = vadd.f32 0.0, %v1368
  %1370 = vmatmul.bf16.gmra.mxu0 %v1264
  %v1371 = vpop.f32.mrf.mxu0
  %v1372 = vadd.f32 0.0, %v1371
  %v1373 = vpop.f32.mrf.mxu0
  %v1374 = vadd.f32 0.0, %v1373
  %1375 = vmatmul.bf16.gmra.mxu0 %v1267
  %v1376 = vpop.f32.mrf.mxu0
  %v1377 = vadd.f32 0.0, %v1376
  %v1378 = vpop.f32.mrf.mxu0
  %v1379 = vadd.f32 0.0, %v1378
  %1380 = vmatmul.bf16.gmra.mxu0 %v1270
  %v1381 = vpop.f32.mrf.mxu0
  %v1382 = vadd.f32 0.0, %v1381
  %v1383 = vpop.f32.mrf.mxu0
  %v1384 = vadd.f32 0.0, %v1383
  %1385 = vmatmul.bf16.gmra.mxu0 %v1273
  %v1386 = vpop.f32.mrf.mxu0
  %v1387 = vadd.f32 0.0, %v1386
  %v1388 = vpop.f32.mrf.mxu0
  %v1389 = vadd.f32 0.0, %v1388
  %1390 = vmatmul.bf16.gmra.mxu0 %v1276
  %v1391 = vpop.f32.mrf.mxu0
  %v1392 = vadd.f32 0.0, %v1391
  %v1393 = vpop.f32.mrf.mxu0
  %v1394 = vadd.f32 0.0, %v1393
  %1395 = vmatmul.bf16.gmra.mxu0 %v1279
  %v1396 = vpop.f32.mrf.mxu0
  %v1397 = vadd.f32 0.0, %v1396
  %v1398 = vpop.f32.mrf.mxu0
  %v1399 = vadd.f32 0.0, %v1398
  %1400 = vmatmul.bf16.gmra.mxu0 %v1282
  %v1401 = vpop.f32.mrf.mxu0
  %v1402 = vadd.f32 0.0, %v1401
  %v1403 = vpop.f32.mrf.mxu0
  %v1404 = vadd.f32 0.0, %v1403
  %1405 = vmatmul.bf16.gmra.mxu0 %v1285
  %v1406 = vpop.f32.mrf.mxu0
  %v1407 = vadd.f32 0.0, %v1406
  %v1408 = vpop.f32.mrf.mxu0
  %v1409 = vadd.f32 0.0, %v1408
  %1410 = vmatmul.bf16.gmra.mxu0 %v1288
  %v1411 = vpop.f32.mrf.mxu0
  %v1412 = vadd.f32 0.0, %v1411
  %v1413 = vpop.f32.mrf.mxu0
  %v1414 = vadd.f32 0.0, %v1413
  %1415 = vmatmul.bf16.gmra.mxu0 %v1291
  %v1416 = vpop.f32.mrf.mxu0
  %v1417 = vadd.f32 0.0, %v1416
  %v1418 = vpop.f32.mrf.mxu0
  %v1419 = vadd.f32 0.0, %v1418
  %1420 = vmatmul.bf16.gmra.mxu0 %v1294
  %v1421 = vpop.f32.mrf.mxu0
  %v1422 = vadd.f32 0.0, %v1421
  %v1423 = vpop.f32.mrf.mxu0
  %v1424 = vadd.f32 0.0, %v1423
  %1425 = vmatmul.bf16.gmra.mxu0 %v1297
  %v1426 = vpop.f32.mrf.mxu0
  %v1427 = vadd.f32 0.0, %v1426
  %v1428 = vpop.f32.mrf.mxu0
  %v1429 = vadd.f32 0.0, %v1428
  %1430 = vmatmul.bf16.gmra.mxu0 %v1300
  %v1431 = vpop.f32.mrf.mxu0
  %v1432 = vadd.f32 0.0, %v1431
  %v1433 = vpop.f32.mrf.mxu0
  %1434 = vdwg.mxu0
  %v1435 = vmul.f32 %v1312, %v425
  %v1436 = vmul.f32 %v1314, %v425
  %v1437 = vmul.f32 %v1317, %v425
  %v1438 = vmul.f32 %v1319, %v425
  %v1439 = vmul.f32 %v1322, %v425
  %v1440 = vmul.f32 %v1324, %v425
  %v1441 = vmul.f32 %v1327, %v425
  %v1442 = vmul.f32 %v1329, %v425
  %v1443 = vmul.f32 %v1332, %v425
  %v1444 = vmul.f32 %v1334, %v425
  %v1445 = vmul.f32 %v1337, %v425
  %v1446 = vmul.f32 %v1339, %v425
  %v1447 = vmul.f32 %v1342, %v425
  %v1448 = vmul.f32 %v1344, %v425
  %v1449 = vmul.f32 %v1347, %v425
  %v1450 = vmul.f32 %v1349, %v425
  %v1451 = vmul.f32 %v1352, %v425
  %v1452 = vmul.f32 %v1354, %v425
  %v1453 = vmul.f32 %v1357, %v425
  %v1454 = vmul.f32 %v1359, %v425
  %v1455 = vmul.f32 %v1362, %v425
  %v1456 = vmul.f32 %v1364, %v425
  %v1457 = vmul.f32 %v1367, %v425
  %v1458 = vmul.f32 %v1369, %v425
  %v1459 = vmul.f32 %v1372, %v425
  %v1460 = vmul.f32 %v1374, %v425
  %v1461 = vmul.f32 %v1377, %v425
  %v1462 = vmul.f32 %v1379, %v425
  %v1463 = vmul.f32 %v1382, %v425
  %v1464 = vmul.f32 %v1384, %v425
  %v1465 = vmul.f32 %v1387, %v425
  %v1466 = vmul.f32 %v1389, %v425
  %v1467 = vmul.f32 %v1392, %v425
  %v1468 = vmul.f32 %v1394, %v425
  %v1469 = vmul.f32 %v1397, %v425
  %v1470 = vmul.f32 %v1399, %v425
  %v1471 = vmul.f32 %v1402, %v425
  %v1472 = vmul.f32 %v1404, %v425
  %v1473 = vmul.f32 %v1407, %v425
  %v1474 = vmul.f32 %v1409, %v425
  %v1475 = vmul.f32 %v1412, %v425
  %v1476 = vmul.f32 %v1414, %v425
  %v1477 = vmul.f32 %v1417, %v425
  %v1478 = vmul.f32 %v1419, %v425
  %v1479 = vmul.f32 %v1422, %v425
  %v1480 = vmul.f32 %v1424, %v425
  %v1481 = vmul.f32 %v1427, %v425
  %v1482 = vmul.f32 %v1429, %v425
  %v1483 = vmul.f32 %v1432, %v425
  %v1484 = vadd.f32 %v1435, %v477
  %v1485 = vadd.f32 %v1436, %v477
  %v1486 = vadd.f32 %v1437, %v477
  %v1487 = vadd.f32 %v1438, %v477
  %v1488 = vadd.f32 %v1439, %v477
  %v1489 = vadd.f32 %v1440, %v477
  %v1490 = vadd.f32 %v1441, %v477
  %v1491 = vadd.f32 %v1442, %v477
  %v1492 = vadd.f32 %v1443, %v477
  %v1493 = vadd.f32 %v1444, %v477
  %v1494 = vadd.f32 %v1445, %v477
  %v1495 = vadd.f32 %v1446, %v477
  %v1496 = vadd.f32 %v1447, %v477
  %v1497 = vadd.f32 %v1448, %v477
  %v1498 = vadd.f32 %v1449, %v477
  %v1499 = vadd.f32 %v1450, %v477
  %v1500 = vadd.f32 %v1451, %v477
  %v1501 = vadd.f32 %v1452, %v477
  %v1502 = vadd.f32 %v1453, %v477
  %v1503 = vadd.f32 %v1454, %v477
  %v1504 = vadd.f32 %v1455, %v477
  %v1505 = vadd.f32 %v1456, %v477
  %v1506 = vadd.f32 %v1457, %v477
  %v1507 = vadd.f32 %v1458, %v477
  %v1508 = vadd.f32 %v1459, %v477
  %v1509 = vadd.f32 %v1460, %v477
  %v1510 = vadd.f32 %v1461, %v477
  %v1511 = vadd.f32 %v1462, %v477
  %v1512 = vadd.f32 %v1463, %v477
  %v1513 = vadd.f32 %v1464, %v477
  %v1514 = vadd.f32 %v1465, %v477
  %v1515 = vadd.f32 %v1466, %v477
  %v1516 = vadd.f32 %v1467, %v477
  %v1517 = vadd.f32 %v1468, %v477
  %v1518 = vadd.f32 %v1469, %v477
  %v1519 = vadd.f32 %v1470, %v477
  %v1520 = vadd.f32 %v1471, %v477
  %v1521 = vadd.f32 %v1472, %v477
  %v1522 = vadd.f32 %v1473, %v477
  %v1523 = vadd.f32 %v1474, %v477
  %v1524 = vadd.f32 %v1475, %v477
  %v1525 = vadd.f32 %v1476, %v477
  %v1526 = vadd.f32 %v1477, %v477
  %v1527 = vadd.f32 %v1478, %v477
  %v1528 = vadd.f32 %v1479, %v477
  %v1529 = vadd.f32 %v1480, %v477
  %v1530 = vadd.f32 %v1481, %v477
  %v1531 = vadd.f32 %v1482, %v477
  %v1532 = vadd.f32 %v1483, %v477
  %v1533 = vld [vmem:[%s3] sm:$0xf]
  %v1534 = vld [vmem:[%s3 + $0x4] sm:$0xf]
  %v1535 = vld [vmem:[%s3 + $0x8] sm:$0xf]
  %v1536 = vld [vmem:[%s3 + $0xc] sm:$0xf]
  %v1537 = vld [vmem:[%s3 + $0x10] sm:$0xf]
  %v1538 = vld [vmem:[%s3 + $0x14] sm:$0xf]
  %v1539 = vld [vmem:[%s3 + $0x18] sm:$0xf]
  %v1540 = vld [vmem:[%s3 + $0x1c] sm:$0xf]
  %v1541 = vld [vmem:[%s3 + $0x20] sm:$0xf]
  %v1542 = vld [vmem:[%s3 + $0x24] sm:$0xf]
  %v1543 = vld [vmem:[%s3 + $0x28] sm:$0xf]
  %v1544 = vld [vmem:[%s3 + $0x2c] sm:$0xf]
  %v1545 = vld [vmem:[%s3 + $0x30] sm:$0xf]
  %v1546 = vld [vmem:[%s3 + $0x34] sm:$0xf]
  %v1547 = vld [vmem:[%s3 + $0x38] sm:$0xf]
  %v1548 = vld [vmem:[%s3 + $0x3c] sm:$0xf]
  %v1549 = vld [vmem:[%s3 + $0x40] sm:$0xf]
  %v1550 = vld [vmem:[%s3 + $0x44] sm:$0xf]
  %v1551 = vld [vmem:[%s3 + $0x48] sm:$0xf]
  %v1552 = vld [vmem:[%s3 + $0x4c] sm:$0xf]
  %v1553 = vld [vmem:[%s3 + $0x50] sm:$0xf]
  %v1554 = vld [vmem:[%s3 + $0x54] sm:$0xf]
  %v1555 = vld [vmem:[%s3 + $0x58] sm:$0xf]
  %v1556 = vld [vmem:[%s3 + $0x5c] sm:$0xf]
  %v1557 = vld [vmem:[%s3 + $0x60] sm:$0xf]
  %v1558 = vld [vmem:[%s3 + $0x64] sm:$0xf]
  %v1559 = vld [vmem:[%s3 + $0x68] sm:$0xf]
  %v1560 = vld [vmem:[%s3 + $0x6c] sm:$0xf]
  %v1561 = vld [vmem:[%s3 + $0x70] sm:$0xf]
  %v1562 = vld [vmem:[%s3 + $0x74] sm:$0xf]
  %v1563 = vld [vmem:[%s3 + $0x78] sm:$0xf]
  %v1564 = vld [vmem:[%s3 + $0x7c] sm:$0xf]
  %v1565 = vld [vmem:[%s3 + $0x80] sm:$0xf]
  %v1566 = vld [vmem:[%s3 + $0x84] sm:$0xf]
  %v1567 = vld [vmem:[%s3 + $0x88] sm:$0xf]
  %v1568 = vld [vmem:[%s3 + $0x8c] sm:$0xf]
  %v1569 = vld [vmem:[%s3 + $0x90] sm:$0xf]
  %v1570 = vld [vmem:[%s3 + $0x94] sm:$0xf]
  %v1571 = vld [vmem:[%s3 + $0x98] sm:$0xf]
  %v1572 = vld [vmem:[%s3 + $0x9c] sm:$0xf]
  %v1573 = vld [vmem:[%s3 + $0xa0] sm:$0xf]
  %v1574 = vld [vmem:[%s3 + $0xa4] sm:$0xf]
  %v1575 = vld [vmem:[%s3 + $0xa8] sm:$0xf]
  %v1576 = vld [vmem:[%s3 + $0xac] sm:$0xf]
  %v1577 = vld [vmem:[%s3 + $0xb0] sm:$0xf]
  %v1578 = vld [vmem:[%s3 + $0xb4] sm:$0xf]
  %v1579 = vld [vmem:[%s3 + $0xb8] sm:$0xf]
  %v1580 = vld [vmem:[%s3 + $0xbc] sm:$0xf]
  %v1581 = vld [vmem:[%s3 + $0xc0] sm:$0xf]
  %v1631 = vunpack.c.l.b16 %v1533
  %v1632 = vunpack.c.l.b16 %v1534
  %v1633 = vunpack.c.l.b16 %v1535
  %v1634 = vunpack.c.l.b16 %v1536
  %v1635 = vunpack.c.l.b16 %v1537
  %v1636 = vunpack.c.l.b16 %v1538
  %v1637 = vunpack.c.l.b16 %v1539
  %v1638 = vunpack.c.l.b16 %v1540
  %v1639 = vunpack.c.l.b16 %v1541
  %v1640 = vunpack.c.l.b16 %v1542
  %v1641 = vunpack.c.l.b16 %v1543
  %v1642 = vunpack.c.l.b16 %v1544
  %v1643 = vunpack.c.l.b16 %v1545
  %v1644 = vunpack.c.l.b16 %v1546
  %v1645 = vunpack.c.l.b16 %v1547
  %v1646 = vunpack.c.l.b16 %v1548
  %v1647 = vunpack.c.l.b16 %v1549
  %v1648 = vunpack.c.l.b16 %v1550
  %v1649 = vunpack.c.l.b16 %v1551
  %v1650 = vunpack.c.l.b16 %v1552
  %v1651 = vunpack.c.l.b16 %v1553
  %v1652 = vunpack.c.l.b16 %v1554
  %v1653 = vunpack.c.l.b16 %v1555
  %v1654 = vunpack.c.l.b16 %v1556
  %v1655 = vunpack.c.l.b16 %v1557
  %v1656 = vunpack.c.l.b16 %v1558
  %v1657 = vunpack.c.l.b16 %v1559
  %v1658 = vunpack.c.l.b16 %v1560
  %v1659 = vunpack.c.l.b16 %v1561
  %v1660 = vunpack.c.l.b16 %v1562
  %v1661 = vunpack.c.l.b16 %v1563
  %v1662 = vunpack.c.l.b16 %v1564
  %v1663 = vunpack.c.l.b16 %v1565
  %v1664 = vunpack.c.l.b16 %v1566
  %v1665 = vunpack.c.l.b16 %v1567
  %v1666 = vunpack.c.l.b16 %v1568
  %v1667 = vunpack.c.l.b16 %v1569
  %v1668 = vunpack.c.l.b16 %v1570
  %v1669 = vunpack.c.l.b16 %v1571
  %v1670 = vunpack.c.l.b16 %v1572
  %v1671 = vunpack.c.l.b16 %v1573
  %v1672 = vunpack.c.l.b16 %v1574
  %v1673 = vunpack.c.l.b16 %v1575
  %v1674 = vunpack.c.l.b16 %v1576
  %v1675 = vunpack.c.l.b16 %v1577
  %v1676 = vunpack.c.l.b16 %v1578
  %v1677 = vunpack.c.l.b16 %v1579
  %v1678 = vunpack.c.l.b16 %v1580
  %v1679 = vunpack.c.l.b16 %v1581
  %v1680 = vpack.c.b16 %v1632, %v1631
  %v1681 = vpack.c.b16 %v1634, %v1633
  %v1682 = vpack.c.b16 %v1636, %v1635
  %v1683 = vpack.c.b16 %v1638, %v1637
  %v1684 = vpack.c.b16 %v1640, %v1639
  %v1685 = vpack.c.b16 %v1642, %v1641
  %v1686 = vpack.c.b16 %v1644, %v1643
  %v1687 = vpack.c.b16 %v1646, %v1645
  %v1688 = vpack.c.b16 %v1648, %v1647
  %v1689 = vpack.c.b16 %v1650, %v1649
  %v1690 = vpack.c.b16 %v1652, %v1651
  %v1691 = vpack.c.b16 %v1654, %v1653
  %v1692 = vpack.c.b16 %v1656, %v1655
  %v1693 = vpack.c.b16 %v1658, %v1657
  %v1694 = vpack.c.b16 %v1660, %v1659
  %v1695 = vpack.c.b16 %v1662, %v1661
  %v1696 = vpack.c.b16 %v1664, %v1663
  %v1697 = vpack.c.b16 %v1666, %v1665
  %v1698 = vpack.c.b16 %v1668, %v1667
  %v1699 = vpack.c.b16 %v1670, %v1669
  %v1700 = vpack.c.b16 %v1672, %v1671
  %v1701 = vpack.c.b16 %v1674, %v1673
  %v1702 = vpack.c.b16 %v1676, %v1675
  %v1703 = vpack.c.b16 %v1678, %v1677
  %v1704 = vpack.c.b16 %v1679, %v1679
  %v1706 = vsel %vm208, %v1680, 0
  %v1709 = vsel %vm208, %v1681, 0
  %v1712 = vsel %vm208, %v1682, 0
  %v1715 = vsel %vm208, %v1683, 0
  %v1718 = vsel %vm208, %v1684, 0
  %v1721 = vsel %vm208, %v1685, 0
  %v1724 = vsel %vm208, %v1686, 0
  %v1727 = vsel %vm208, %v1687, 0
  %v1730 = vsel %vm208, %v1688, 0
  %v1733 = vsel %vm208, %v1689, 0
  %v1736 = vsel %vm208, %v1690, 0
  %v1739 = vsel %vm208, %v1691, 0
  %v1742 = vsel %vm208, %v1692, 0
  %v1745 = vsel %vm208, %v1693, 0
  %v1748 = vsel %vm208, %v1694, 0
  %v1751 = vsel %vm208, %v1695, 0
  %v1754 = vsel %vm208, %v1696, 0
  %v1757 = vsel %vm208, %v1697, 0
  %v1760 = vsel %vm208, %v1698, 0
  %v1763 = vsel %vm208, %v1699, 0
  %v1766 = vsel %vm208, %v1700, 0
  %v1769 = vsel %vm208, %v1701, 0
  %v1772 = vsel %vm208, %v1702, 0
  %v1775 = vsel %vm208, %v1703, 0
  %v1778 = vsel %vm208, %v1704, 0
  %1780 = vmatpush.bf16.msra.mxu0 0
  %1781 = vmatpush.bf16.msra.mxu0 0
  %1782 = vmatpush.bf16.msra.mxu0 0
  %1783 = vmatpush.bf16.msra.mxu0 0
  %1784 = vmatpush.bf16.msra.mxu0 0
  %1785 = vmatpush.bf16.msra.mxu0 0
  %1786 = vmatpush.bf16.msra.mxu0 0
  %1787 = vmatpush.bf16.msra.mxu0 %v289
  %1788 = vmatmul.bf16.gmra.mxu0 %v1706
  %v1789 = vpop.f32.mrf.mxu0
  %v1790 = vadd.f32 0.0, %v1789
  %v1791 = vpop.f32.mrf.mxu0
  %v1792 = vadd.f32 0.0, %v1791
  %1793 = vmatmul.bf16.gmra.mxu0 %v1709
  %v1794 = vpop.f32.mrf.mxu0
  %v1795 = vadd.f32 0.0, %v1794
  %v1796 = vpop.f32.mrf.mxu0
  %v1797 = vadd.f32 0.0, %v1796
  %1798 = vmatmul.bf16.gmra.mxu0 %v1712
  %v1799 = vpop.f32.mrf.mxu0
  %v1800 = vadd.f32 0.0, %v1799
  %v1801 = vpop.f32.mrf.mxu0
  %v1802 = vadd.f32 0.0, %v1801
  %1803 = vmatmul.bf16.gmra.mxu0 %v1715
  %v1804 = vpop.f32.mrf.mxu0
  %v1805 = vadd.f32 0.0, %v1804
  %v1806 = vpop.f32.mrf.mxu0
  %v1807 = vadd.f32 0.0, %v1806
  %1808 = vmatmul.bf16.gmra.mxu0 %v1718
  %v1809 = vpop.f32.mrf.mxu0
  %v1810 = vadd.f32 0.0, %v1809
  %v1811 = vpop.f32.mrf.mxu0
  %v1812 = vadd.f32 0.0, %v1811
  %1813 = vmatmul.bf16.gmra.mxu0 %v1721
  %v1814 = vpop.f32.mrf.mxu0
  %v1815 = vadd.f32 0.0, %v1814
  %v1816 = vpop.f32.mrf.mxu0
  %v1817 = vadd.f32 0.0, %v1816
  %1818 = vmatmul.bf16.gmra.mxu0 %v1724
  %v1819 = vpop.f32.mrf.mxu0
  %v1820 = vadd.f32 0.0, %v1819
  %v1821 = vpop.f32.mrf.mxu0
  %v1822 = vadd.f32 0.0, %v1821
  %1823 = vmatmul.bf16.gmra.mxu0 %v1727
  %v1824 = vpop.f32.mrf.mxu0
  %v1825 = vadd.f32 0.0, %v1824
  %v1826 = vpop.f32.mrf.mxu0
  %v1827 = vadd.f32 0.0, %v1826
  %1828 = vmatmul.bf16.gmra.mxu0 %v1730
  %v1829 = vpop.f32.mrf.mxu0
  %v1830 = vadd.f32 0.0, %v1829
  %v1831 = vpop.f32.mrf.mxu0
  %v1832 = vadd.f32 0.0, %v1831
  %1833 = vmatmul.bf16.gmra.mxu0 %v1733
  %v1834 = vpop.f32.mrf.mxu0
  %v1835 = vadd.f32 0.0, %v1834
  %v1836 = vpop.f32.mrf.mxu0
  %v1837 = vadd.f32 0.0, %v1836
  %1838 = vmatmul.bf16.gmra.mxu0 %v1736
  %v1839 = vpop.f32.mrf.mxu0
  %v1840 = vadd.f32 0.0, %v1839
  %v1841 = vpop.f32.mrf.mxu0
  %v1842 = vadd.f32 0.0, %v1841
  %1843 = vmatmul.bf16.gmra.mxu0 %v1739
  %v1844 = vpop.f32.mrf.mxu0
  %v1845 = vadd.f32 0.0, %v1844
  %v1846 = vpop.f32.mrf.mxu0
  %v1847 = vadd.f32 0.0, %v1846
  %1848 = vmatmul.bf16.gmra.mxu0 %v1742
  %v1849 = vpop.f32.mrf.mxu0
  %v1850 = vadd.f32 0.0, %v1849
  %v1851 = vpop.f32.mrf.mxu0
  %v1852 = vadd.f32 0.0, %v1851
  %1853 = vmatmul.bf16.gmra.mxu0 %v1745
  %v1854 = vpop.f32.mrf.mxu0
  %v1855 = vadd.f32 0.0, %v1854
  %v1856 = vpop.f32.mrf.mxu0
  %v1857 = vadd.f32 0.0, %v1856
  %1858 = vmatmul.bf16.gmra.mxu0 %v1748
  %v1859 = vpop.f32.mrf.mxu0
  %v1860 = vadd.f32 0.0, %v1859
  %v1861 = vpop.f32.mrf.mxu0
  %v1862 = vadd.f32 0.0, %v1861
  %1863 = vmatmul.bf16.gmra.mxu0 %v1751
  %v1864 = vpop.f32.mrf.mxu0
  %v1865 = vadd.f32 0.0, %v1864
  %v1866 = vpop.f32.mrf.mxu0
  %v1867 = vadd.f32 0.0, %v1866
  %1868 = vmatmul.bf16.gmra.mxu0 %v1754
  %v1869 = vpop.f32.mrf.mxu0
  %v1870 = vadd.f32 0.0, %v1869
  %v1871 = vpop.f32.mrf.mxu0
  %v1872 = vadd.f32 0.0, %v1871
  %1873 = vmatmul.bf16.gmra.mxu0 %v1757
  %v1874 = vpop.f32.mrf.mxu0
  %v1875 = vadd.f32 0.0, %v1874
  %v1876 = vpop.f32.mrf.mxu0
  %v1877 = vadd.f32 0.0, %v1876
  %1878 = vmatmul.bf16.gmra.mxu0 %v1760
  %v1879 = vpop.f32.mrf.mxu0
  %v1880 = vadd.f32 0.0, %v1879
  %v1881 = vpop.f32.mrf.mxu0
  %v1882 = vadd.f32 0.0, %v1881
  %1883 = vmatmul.bf16.gmra.mxu0 %v1763
  %v1884 = vpop.f32.mrf.mxu0
  %v1885 = vadd.f32 0.0, %v1884
  %v1886 = vpop.f32.mrf.mxu0
  %v1887 = vadd.f32 0.0, %v1886
  %1888 = vmatmul.bf16.gmra.mxu0 %v1766
  %v1889 = vpop.f32.mrf.mxu0
  %v1890 = vadd.f32 0.0, %v1889
  %v1891 = vpop.f32.mrf.mxu0
  %v1892 = vadd.f32 0.0, %v1891
  %1893 = vmatmul.bf16.gmra.mxu0 %v1769
  %v1894 = vpop.f32.mrf.mxu0
  %v1895 = vadd.f32 0.0, %v1894
  %v1896 = vpop.f32.mrf.mxu0
  %v1897 = vadd.f32 0.0, %v1896
  %1898 = vmatmul.bf16.gmra.mxu0 %v1772
  %v1899 = vpop.f32.mrf.mxu0
  %v1900 = vadd.f32 0.0, %v1899
  %v1901 = vpop.f32.mrf.mxu0
  %v1902 = vadd.f32 0.0, %v1901
  %1903 = vmatmul.bf16.gmra.mxu0 %v1775
  %v1904 = vpop.f32.mrf.mxu0
  %v1905 = vadd.f32 0.0, %v1904
  %v1906 = vpop.f32.mrf.mxu0
  %v1907 = vadd.f32 0.0, %v1906
  %1908 = vmatmul.bf16.gmra.mxu0 %v1778
  %v1909 = vpop.f32.mrf.mxu0
  %v1910 = vadd.f32 0.0, %v1909
  %v1911 = vpop.f32.mrf.mxu0
  %1912 = vdwg.mxu0
  %v1913 = vmul.f32 %v1790, %v425
  %v1914 = vmul.f32 %v1792, %v425
  %v1915 = vmul.f32 %v1795, %v425
  %v1916 = vmul.f32 %v1797, %v425
  %v1917 = vmul.f32 %v1800, %v425
  %v1918 = vmul.f32 %v1802, %v425
  %v1919 = vmul.f32 %v1805, %v425
  %v1920 = vmul.f32 %v1807, %v425
  %v1921 = vmul.f32 %v1810, %v425
  %v1922 = vmul.f32 %v1812, %v425
  %v1923 = vmul.f32 %v1815, %v425
  %v1924 = vmul.f32 %v1817, %v425
  %v1925 = vmul.f32 %v1820, %v425
  %v1926 = vmul.f32 %v1822, %v425
  %v1927 = vmul.f32 %v1825, %v425
  %v1928 = vmul.f32 %v1827, %v425
  %v1929 = vmul.f32 %v1830, %v425
  %v1930 = vmul.f32 %v1832, %v425
  %v1931 = vmul.f32 %v1835, %v425
  %v1932 = vmul.f32 %v1837, %v425
  %v1933 = vmul.f32 %v1840, %v425
  %v1934 = vmul.f32 %v1842, %v425
  %v1935 = vmul.f32 %v1845, %v425
  %v1936 = vmul.f32 %v1847, %v425
  %v1937 = vmul.f32 %v1850, %v425
  %v1938 = vmul.f32 %v1852, %v425
  %v1939 = vmul.f32 %v1855, %v425
  %v1940 = vmul.f32 %v1857, %v425
  %v1941 = vmul.f32 %v1860, %v425
  %v1942 = vmul.f32 %v1862, %v425
  %v1943 = vmul.f32 %v1865, %v425
  %v1944 = vmul.f32 %v1867, %v425
  %v1945 = vmul.f32 %v1870, %v425
  %v1946 = vmul.f32 %v1872, %v425
  %v1947 = vmul.f32 %v1875, %v425
  %v1948 = vmul.f32 %v1877, %v425
  %v1949 = vmul.f32 %v1880, %v425
  %v1950 = vmul.f32 %v1882, %v425
  %v1951 = vmul.f32 %v1885, %v425
  %v1952 = vmul.f32 %v1887, %v425
  %v1953 = vmul.f32 %v1890, %v425
  %v1954 = vmul.f32 %v1892, %v425
  %v1955 = vmul.f32 %v1895, %v425
  %v1956 = vmul.f32 %v1897, %v425
  %v1957 = vmul.f32 %v1900, %v425
  %v1958 = vmul.f32 %v1902, %v425
  %v1959 = vmul.f32 %v1905, %v425
  %v1960 = vmul.f32 %v1907, %v425
  %v1961 = vmul.f32 %v1910, %v425
  %v1962 = vadd.f32 %v1913, %v477
  %v1963 = vadd.f32 %v1914, %v477
  %v1964 = vadd.f32 %v1915, %v477
  %v1965 = vadd.f32 %v1916, %v477
  %v1966 = vadd.f32 %v1917, %v477
  %v1967 = vadd.f32 %v1918, %v477
  %v1968 = vadd.f32 %v1919, %v477
  %v1969 = vadd.f32 %v1920, %v477
  %v1970 = vadd.f32 %v1921, %v477
  %v1971 = vadd.f32 %v1922, %v477
  %v1972 = vadd.f32 %v1923, %v477
  %v1973 = vadd.f32 %v1924, %v477
  %v1974 = vadd.f32 %v1925, %v477
  %v1975 = vadd.f32 %v1926, %v477
  %v1976 = vadd.f32 %v1927, %v477
  %v1977 = vadd.f32 %v1928, %v477
  %v1978 = vadd.f32 %v1929, %v477
  %v1979 = vadd.f32 %v1930, %v477
  %v1980 = vadd.f32 %v1931, %v477
  %v1981 = vadd.f32 %v1932, %v477
  %v1982 = vadd.f32 %v1933, %v477
  %v1983 = vadd.f32 %v1934, %v477
  %v1984 = vadd.f32 %v1935, %v477
  %v1985 = vadd.f32 %v1936, %v477
  %v1986 = vadd.f32 %v1937, %v477
  %v1987 = vadd.f32 %v1938, %v477
  %v1988 = vadd.f32 %v1939, %v477
  %v1989 = vadd.f32 %v1940, %v477
  %v1990 = vadd.f32 %v1941, %v477
  %v1991 = vadd.f32 %v1942, %v477
  %v1992 = vadd.f32 %v1943, %v477
  %v1993 = vadd.f32 %v1944, %v477
  %v1994 = vadd.f32 %v1945, %v477
  %v1995 = vadd.f32 %v1946, %v477
  %v1996 = vadd.f32 %v1947, %v477
  %v1997 = vadd.f32 %v1948, %v477
  %v1998 = vadd.f32 %v1949, %v477
  %v1999 = vadd.f32 %v1950, %v477
  %v2000 = vadd.f32 %v1951, %v477
  %v2001 = vadd.f32 %v1952, %v477
  %v2002 = vadd.f32 %v1953, %v477
  %v2003 = vadd.f32 %v1954, %v477
  %v2004 = vadd.f32 %v1955, %v477
  %v2005 = vadd.f32 %v1956, %v477
  %v2006 = vadd.f32 %v1957, %v477
  %v2007 = vadd.f32 %v1958, %v477
  %v2008 = vadd.f32 %v1959, %v477
  %v2009 = vadd.f32 %v1960, %v477
  %v2010 = vadd.f32 %v1961, %v477
  %v2011 = vmax.f32 %v1484, %v1962
  %v2012 = vmax.f32 %v1485, %v1963
  %v2013 = vmax.f32 %v1486, %v1964
  %v2014 = vmax.f32 %v1487, %v1965
  %v2015 = vmax.f32 %v1488, %v1966
  %v2016 = vmax.f32 %v1489, %v1967
  %v2017 = vmax.f32 %v1490, %v1968
  %v2018 = vmax.f32 %v1491, %v1969
  %v2019 = vmax.f32 %v1492, %v1970
  %v2020 = vmax.f32 %v1493, %v1971
  %v2021 = vmax.f32 %v1494, %v1972
  %v2022 = vmax.f32 %v1495, %v1973
  %v2023 = vmax.f32 %v1496, %v1974
  %v2024 = vmax.f32 %v1497, %v1975
  %v2025 = vmax.f32 %v1498, %v1976
  %v2026 = vmax.f32 %v1499, %v1977
  %v2027 = vmax.f32 %v1500, %v1978
  %v2028 = vmax.f32 %v1501, %v1979
  %v2029 = vmax.f32 %v1502, %v1980
  %v2030 = vmax.f32 %v1503, %v1981
  %v2031 = vmax.f32 %v1504, %v1982
  %v2032 = vmax.f32 %v1505, %v1983
  %v2033 = vmax.f32 %v1506, %v1984
  %v2034 = vmax.f32 %v1507, %v1985
  %v2035 = vmax.f32 %v1508, %v1986
  %v2036 = vmax.f32 %v1509, %v1987
  %v2037 = vmax.f32 %v1510, %v1988
  %v2038 = vmax.f32 %v1511, %v1989
  %v2039 = vmax.f32 %v1512, %v1990
  %v2040 = vmax.f32 %v1513, %v1991
  %v2041 = vmax.f32 %v1514, %v1992
  %v2042 = vmax.f32 %v1515, %v1993
  %v2043 = vmax.f32 %v1516, %v1994
  %v2044 = vmax.f32 %v1517, %v1995
  %v2045 = vmax.f32 %v1518, %v1996
  %v2046 = vmax.f32 %v1519, %v1997
  %v2047 = vmax.f32 %v1520, %v1998
  %v2048 = vmax.f32 %v1521, %v1999
  %v2049 = vmax.f32 %v1522, %v2000
  %v2050 = vmax.f32 %v1523, %v2001
  %v2051 = vmax.f32 %v1524, %v2002
  %v2052 = vmax.f32 %v1525, %v2003
  %v2053 = vmax.f32 %v1526, %v2004
  %v2054 = vmax.f32 %v1527, %v2005
  %v2055 = vmax.f32 %v1528, %v2006
  %v2056 = vmax.f32 %v1529, %v2007
  %v2057 = vmax.f32 %v1530, %v2008
  %v2058 = vmax.f32 %v1531, %v2009
  %v2059 = vmax.f32 %v1532, %v2010
  %v2060 = vmax.f32 %v1006, %v2011
  %v2061 = vmax.f32 %v1007, %v2012
  %v2062 = vmax.f32 %v1008, %v2013
  %v2063 = vmax.f32 %v1009, %v2014
  %v2064 = vmax.f32 %v1010, %v2015
  %v2065 = vmax.f32 %v1011, %v2016
  %v2066 = vmax.f32 %v1012, %v2017
  %v2067 = vmax.f32 %v1013, %v2018
  %v2068 = vmax.f32 %v1014, %v2019
  %v2069 = vmax.f32 %v1015, %v2020
  %v2070 = vmax.f32 %v1016, %v2021
  %v2071 = vmax.f32 %v1017, %v2022
  %v2072 = vmax.f32 %v1018, %v2023
  %v2073 = vmax.f32 %v1019, %v2024
  %v2074 = vmax.f32 %v1020, %v2025
  %v2075 = vmax.f32 %v1021, %v2026
  %v2076 = vmax.f32 %v1022, %v2027
  %v2077 = vmax.f32 %v1023, %v2028
  %v2078 = vmax.f32 %v1024, %v2029
  %v2079 = vmax.f32 %v1025, %v2030
  %v2080 = vmax.f32 %v1026, %v2031
  %v2081 = vmax.f32 %v1027, %v2032
  %v2082 = vmax.f32 %v1028, %v2033
  %v2083 = vmax.f32 %v1029, %v2034
  %v2084 = vmax.f32 %v1030, %v2035
  %v2085 = vmax.f32 %v1031, %v2036
  %v2086 = vmax.f32 %v1032, %v2037
  %v2087 = vmax.f32 %v1033, %v2038
  %v2088 = vmax.f32 %v1034, %v2039
  %v2089 = vmax.f32 %v1035, %v2040
  %v2090 = vmax.f32 %v1036, %v2041
  %v2091 = vmax.f32 %v1037, %v2042
  %v2092 = vmax.f32 %v1038, %v2043
  %v2093 = vmax.f32 %v1039, %v2044
  %v2094 = vmax.f32 %v1040, %v2045
  %v2095 = vmax.f32 %v1041, %v2046
  %v2096 = vmax.f32 %v1042, %v2047
  %v2097 = vmax.f32 %v1043, %v2048
  %v2098 = vmax.f32 %v1044, %v2049
  %v2099 = vmax.f32 %v1045, %v2050
  %v2100 = vmax.f32 %v1046, %v2051
  %v2101 = vmax.f32 %v1047, %v2052
  %v2102 = vmax.f32 %v1048, %v2053
  %v2103 = vmax.f32 %v1049, %v2054
  %v2104 = vmax.f32 %v1050, %v2055
  %v2105 = vmax.f32 %v1051, %v2056
  %v2106 = vmax.f32 %v1052, %v2057
  %v2107 = vmax.f32 %v1053, %v2058
  %v2108 = vmax.f32 %v1054, %v2059
  %v2109 = vmax.f32 %v2060, 0.0
  %v2110 = vmax.f32 %v2061, 0.0
  %v2111 = vmax.f32 %v2062, 0.0
  %v2112 = vmax.f32 %v2063, 0.0
  %v2113 = vmax.f32 %v2064, 0.0
  %v2114 = vmax.f32 %v2065, 0.0
  %v2115 = vmax.f32 %v2066, 0.0
  %v2116 = vmax.f32 %v2067, 0.0
  %v2117 = vmax.f32 %v2068, 0.0
  %v2118 = vmax.f32 %v2069, 0.0
  %v2119 = vmax.f32 %v2070, 0.0
  %v2120 = vmax.f32 %v2071, 0.0
  %v2121 = vmax.f32 %v2072, 0.0
  %v2122 = vmax.f32 %v2073, 0.0
  %v2123 = vmax.f32 %v2074, 0.0
  %v2124 = vmax.f32 %v2075, 0.0
  %v2125 = vmax.f32 %v2076, 0.0
  %v2126 = vmax.f32 %v2077, 0.0
  %v2127 = vmax.f32 %v2078, 0.0
  %v2128 = vmax.f32 %v2079, 0.0
  %v2129 = vmax.f32 %v2080, 0.0
  %v2130 = vmax.f32 %v2081, 0.0
  %v2131 = vmax.f32 %v2082, 0.0
  %v2132 = vmax.f32 %v2083, 0.0
  %v2133 = vmax.f32 %v2084, 0.0
  %v2134 = vmax.f32 %v2085, 0.0
  %v2135 = vmax.f32 %v2086, 0.0
  %v2136 = vmax.f32 %v2087, 0.0
  %v2137 = vmax.f32 %v2088, 0.0
  %v2138 = vmax.f32 %v2089, 0.0
  %v2139 = vmax.f32 %v2090, 0.0
  %v2140 = vmax.f32 %v2091, 0.0
  %v2141 = vmax.f32 %v2092, 0.0
  %v2142 = vmax.f32 %v2093, 0.0
  %v2143 = vmax.f32 %v2094, 0.0
  %v2144 = vmax.f32 %v2095, 0.0
  %v2145 = vmax.f32 %v2096, 0.0
  %v2146 = vmax.f32 %v2097, 0.0
  %v2147 = vmax.f32 %v2098, 0.0
  %v2148 = vmax.f32 %v2099, 0.0
  %v2149 = vmax.f32 %v2100, 0.0
  %v2150 = vmax.f32 %v2101, 0.0
  %v2151 = vmax.f32 %v2102, 0.0
  %v2152 = vmax.f32 %v2103, 0.0
  %v2153 = vmax.f32 %v2104, 0.0
  %v2154 = vmax.f32 %v2105, 0.0
  %v2155 = vmax.f32 %v2106, 0.0
  %v2156 = vmax.f32 %v2107, 0.0
  %v2157 = vmax.f32 %v2108, 0.0
  %v2158 = vpack.c.bf16 %v2109, %v2109
  %v2159 = vpack.c.bf16 %v2110, %v2110
  %v2160 = vpack.c.bf16 %v2111, %v2111
  %v2161 = vpack.c.bf16 %v2112, %v2112
  %v2162 = vpack.c.bf16 %v2113, %v2113
  %v2163 = vpack.c.bf16 %v2114, %v2114
  %v2164 = vpack.c.bf16 %v2115, %v2115
  %v2165 = vpack.c.bf16 %v2116, %v2116
  %v2166 = vpack.c.bf16 %v2117, %v2117
  %v2167 = vpack.c.bf16 %v2118, %v2118
  %v2168 = vpack.c.bf16 %v2119, %v2119
  %v2169 = vpack.c.bf16 %v2120, %v2120
  %v2170 = vpack.c.bf16 %v2121, %v2121
  %v2171 = vpack.c.bf16 %v2122, %v2122
  %v2172 = vpack.c.bf16 %v2123, %v2123
  %v2173 = vpack.c.bf16 %v2124, %v2124
  %v2174 = vpack.c.bf16 %v2125, %v2125
  %v2175 = vpack.c.bf16 %v2126, %v2126
  %v2176 = vpack.c.bf16 %v2127, %v2127
  %v2177 = vpack.c.bf16 %v2128, %v2128
  %v2178 = vpack.c.bf16 %v2129, %v2129
  %v2179 = vpack.c.bf16 %v2130, %v2130
  %v2180 = vpack.c.bf16 %v2131, %v2131
  %v2181 = vpack.c.bf16 %v2132, %v2132
  %v2182 = vpack.c.bf16 %v2133, %v2133
  %v2183 = vpack.c.bf16 %v2134, %v2134
  %v2184 = vpack.c.bf16 %v2135, %v2135
  %v2185 = vpack.c.bf16 %v2136, %v2136
  %v2186 = vpack.c.bf16 %v2137, %v2137
  %v2187 = vpack.c.bf16 %v2138, %v2138
  %v2188 = vpack.c.bf16 %v2139, %v2139
  %v2189 = vpack.c.bf16 %v2140, %v2140
  %v2190 = vpack.c.bf16 %v2141, %v2141
  %v2191 = vpack.c.bf16 %v2142, %v2142
  %v2192 = vpack.c.bf16 %v2143, %v2143
  %v2193 = vpack.c.bf16 %v2144, %v2144
  %v2194 = vpack.c.bf16 %v2145, %v2145
  %v2195 = vpack.c.bf16 %v2146, %v2146
  %v2196 = vpack.c.bf16 %v2147, %v2147
  %v2197 = vpack.c.bf16 %v2148, %v2148
  %v2198 = vpack.c.bf16 %v2149, %v2149
  %v2199 = vpack.c.bf16 %v2150, %v2150
  %v2200 = vpack.c.bf16 %v2151, %v2151
  %v2201 = vpack.c.bf16 %v2152, %v2152
  %v2202 = vpack.c.bf16 %v2153, %v2153
  %v2203 = vpack.c.bf16 %v2154, %v2154
  %v2204 = vpack.c.bf16 %v2155, %v2155
  %v2205 = vpack.c.bf16 %v2156, %v2156
  %v2206 = vpack.c.bf16 %v2157, %v2157
  %2207 = vst [vmem:[%s7] sm:$0xf] %v2158
  %2208 = vst [vmem:[%s7 + $0x4] sm:$0xf] %v2159
  %2209 = vst [vmem:[%s7 + $0x8] sm:$0xf] %v2160
  %2210 = vst [vmem:[%s7 + $0xc] sm:$0xf] %v2161
  %2211 = vst [vmem:[%s7 + $0x10] sm:$0xf] %v2162
  %2212 = vst [vmem:[%s7 + $0x14] sm:$0xf] %v2163
  %2213 = vst [vmem:[%s7 + $0x18] sm:$0xf] %v2164
  %2214 = vst [vmem:[%s7 + $0x1c] sm:$0xf] %v2165
  %2215 = vst [vmem:[%s7 + $0x20] sm:$0xf] %v2166
  %2216 = vst [vmem:[%s7 + $0x24] sm:$0xf] %v2167
  %2217 = vst [vmem:[%s7 + $0x28] sm:$0xf] %v2168
  %2218 = vst [vmem:[%s7 + $0x2c] sm:$0xf] %v2169
  %2219 = vst [vmem:[%s7 + $0x30] sm:$0xf] %v2170
  %2220 = vst [vmem:[%s7 + $0x34] sm:$0xf] %v2171
  %2221 = vst [vmem:[%s7 + $0x38] sm:$0xf] %v2172
  %2222 = vst [vmem:[%s7 + $0x3c] sm:$0xf] %v2173
  %2223 = vst [vmem:[%s7 + $0x40] sm:$0xf] %v2174
  %2224 = vst [vmem:[%s7 + $0x44] sm:$0xf] %v2175
  %2225 = vst [vmem:[%s7 + $0x48] sm:$0xf] %v2176
  %2226 = vst [vmem:[%s7 + $0x4c] sm:$0xf] %v2177
  %2227 = vst [vmem:[%s7 + $0x50] sm:$0xf] %v2178
  %2228 = vst [vmem:[%s7 + $0x54] sm:$0xf] %v2179
  %2229 = vst [vmem:[%s7 + $0x58] sm:$0xf] %v2180
  %2230 = vst [vmem:[%s7 + $0x5c] sm:$0xf] %v2181
  %2231 = vst [vmem:[%s7 + $0x60] sm:$0xf] %v2182
  %2232 = vst [vmem:[%s7 + $0x64] sm:$0xf] %v2183
  %2233 = vst [vmem:[%s7 + $0x68] sm:$0xf] %v2184
  %2234 = vst [vmem:[%s7 + $0x6c] sm:$0xf] %v2185
  %2235 = vst [vmem:[%s7 + $0x70] sm:$0xf] %v2186
  %2236 = vst [vmem:[%s7 + $0x74] sm:$0xf] %v2187
  %2237 = vst [vmem:[%s7 + $0x78] sm:$0xf] %v2188
  %2238 = vst [vmem:[%s7 + $0x7c] sm:$0xf] %v2189
  %2239 = vst [vmem:[%s7 + $0x80] sm:$0xf] %v2190
  %2240 = vst [vmem:[%s7 + $0x84] sm:$0xf] %v2191
  %2241 = vst [vmem:[%s7 + $0x88] sm:$0xf] %v2192
  %2242 = vst [vmem:[%s7 + $0x8c] sm:$0xf] %v2193
  %2243 = vst [vmem:[%s7 + $0x90] sm:$0xf] %v2194
  %2244 = vst [vmem:[%s7 + $0x94] sm:$0xf] %v2195
  %2245 = vst [vmem:[%s7 + $0x98] sm:$0xf] %v2196
  %2246 = vst [vmem:[%s7 + $0x9c] sm:$0xf] %v2197
  %2247 = vst [vmem:[%s7 + $0xa0] sm:$0xf] %v2198
  %2248 = vst [vmem:[%s7 + $0xa4] sm:$0xf] %v2199
  %2249 = vst [vmem:[%s7 + $0xa8] sm:$0xf] %v2200
  %2250 = vst [vmem:[%s7 + $0xac] sm:$0xf] %v2201
  %2251 = vst [vmem:[%s7 + $0xb0] sm:$0xf] %v2202
  %2252 = vst [vmem:[%s7 + $0xb4] sm:$0xf] %v2203
  %2253 = vst [vmem:[%s7 + $0xb8] sm:$0xf] %v2204
  %2254 = vst [vmem:[%s7 + $0xbc] sm:$0xf] %v2205
  %2255 = vst [vmem:[%s7 + $0xc0] sm:$0xf] %v2206
  // Predicated region
  $region30: #{cnn_pathmnist_forward.4} parent=0 // pred_check
    _
  $region31: #{cnn_pathmnist_forward.4} parent=0 // pred_check_branch
    %2257 = sbr.rel (0) target = $region33
  $region32: #{cnn_pathmnist_forward.4} parent=0 // pred_region
    _
  $region33: #{cnn_pathmnist_forward.4} parent=0 // pred_fallthru
    _
  // Predicated region
  $region34: #{cnn_pathmnist_forward.4} parent=0 // pred_check
    _
  $region35: #{cnn_pathmnist_forward.4} parent=0 // pred_check_branch
    %2259 = sbr.rel (0) target = $region37
  $region36: #{cnn_pathmnist_forward.4} parent=0 // pred_region
    _
  $region37: #{cnn_pathmnist_forward.4} parent=0 // pred_fallthru
    _

// kernel: cnn_pathmnist_forward.5
$region0: #{cnn_pathmnist_forward.5}
  #allocation0 [shape = 'u32[]', space=smem, size = 0x4, offset = 0x4, fixed_abs, tag = 'smem constant byte address 0x4 - core index']
  #allocation1 [shape = 'u32[72,128]{1,0:T(1,128)}', space=vmem, size = 0x9000, scoped, tag = 'internal scratch']
  %s0 = inlined_call_operand.vmem [shape: bf16[104,288], index: 0, kind: input, shape index: {}]
  %s1 = inlined_call_operand.vmem [shape: bf16[104,288], index: 1, kind: input, shape index: {}]
  %s2 = inlined_call_operand.vmem [shape: bf16[104,288], index: 2, kind: input, shape index: {}]
  %s3 = inlined_call_operand.vmem [shape: bf16[104,288], index: 3, kind: input, shape index: {}]
  %s4 = inlined_call_operand.vmem [shape: bf16[288,128], index: 4, kind: input, shape index: {}]
  %s5 = inlined_call_operand.vmem [shape: f32[1,128], index: 5, kind: input, shape index: {}]
  %s6 = inlined_call_operand.vmem [shape: f32[1,128], index: 6, kind: input, shape index: {}]
  %s7 = inlined_call_operand.vmem [shape: bf16[104,128], index: 7, kind: output, shape index: {}]
  %s8 = sld [smem:[#allocation0]]
  $region38: #{cnn_pathmnist_forward.5} parent=0
    _
  %s10 = ssub.s32 1, %s8
  %s11 = scalar_select 0, %s10, %s8
  // Predicated region
  $region2: #{cnn_pathmnist_forward.5} parent=0 // pred_check
    _
  $region3: #{cnn_pathmnist_forward.5} parent=0 // pred_check_branch
    %13 = sbr.rel (0) target = $region5
  $region4: #{cnn_pathmnist_forward.5} parent=0 // pred_region
    _
  $region5: #{cnn_pathmnist_forward.5} parent=0 // pred_fallthru
    _
  // Predicated region
  $region6: #{cnn_pathmnist_forward.5} parent=0 // pred_check
    _
  $region7: #{cnn_pathmnist_forward.5} parent=0 // pred_check_branch
    %15 = sbr.rel (0) target = $region9
  $region8: #{cnn_pathmnist_forward.5} parent=0 // pred_region
    _
  $region9: #{cnn_pathmnist_forward.5} parent=0 // pred_fallthru
    _
  // Predicated region
  $region10: #{cnn_pathmnist_forward.5} parent=0 // pred_check
    _
  $region11: #{cnn_pathmnist_forward.5} parent=0 // pred_check_branch
    %17 = sbr.rel (0) target = $region13
  $region12: #{cnn_pathmnist_forward.5} parent=0 // pred_region
    _
  $region13: #{cnn_pathmnist_forward.5} parent=0 // pred_fallthru
    _
  // Predicated region
  $region14: #{cnn_pathmnist_forward.5} parent=0 // pred_check
    _
  $region15: #{cnn_pathmnist_forward.5} parent=0 // pred_check_branch
    %19 = sbr.rel (0) target = $region17
  $region16: #{cnn_pathmnist_forward.5} parent=0 // pred_region
    _
  $region17: #{cnn_pathmnist_forward.5} parent=0 // pred_fallthru
    _
  // Predicated region
  $region18: #{cnn_pathmnist_forward.5} parent=0 // pred_check
    _
  $region19: #{cnn_pathmnist_forward.5} parent=0 // pred_check_branch
    %21 = sbr.rel (0) target = $region21
  $region20: #{cnn_pathmnist_forward.5} parent=0 // pred_region
    _
  $region21: #{cnn_pathmnist_forward.5} parent=0 // pred_fallthru
    _
  // Predicated region
  $region22: #{cnn_pathmnist_forward.5} parent=0 // pred_check
    _
  $region23: #{cnn_pathmnist_forward.5} parent=0 // pred_check_branch
    %23 = sbr.rel (0) target = $region25
  $region24: #{cnn_pathmnist_forward.5} parent=0 // pred_region
    _
  $region25: #{cnn_pathmnist_forward.5} parent=0 // pred_fallthru
    _
  // Predicated region
  $region26: #{cnn_pathmnist_forward.5} parent=0 // pred_check
    _
  $region27: #{cnn_pathmnist_forward.5} parent=0 // pred_check_branch
    %25 = sbr.rel (0) target = $region29
  $region28: #{cnn_pathmnist_forward.5} parent=0 // pred_region
    _
  $region29: #{cnn_pathmnist_forward.5} parent=0 // pred_fallthru
    _
  %v27 = vld [vmem:[%s4] sm:$0xf]
  %v28 = vld [vmem:[%s4 + $0x4] sm:$0xf]
  %v29 = vld [vmem:[%s4 + $0x8] sm:$0xf]
  %v30 = vld [vmem:[%s4 + $0xc] sm:$0xf]
  %v31 = vld [vmem:[%s4 + $0x10] sm:$0xf]
  %v32 = vld [vmem:[%s4 + $0x14] sm:$0xf]
  %v33 = vld [vmem:[%s4 + $0x18] sm:$0xf]
  %v34 = vld [vmem:[%s4 + $0x1c] sm:$0xf]
  %v35 = vld [vmem:[%s4 + $0x20] sm:$0xf]
  %v36 = vld [vmem:[%s4 + $0x24] sm:$0xf]
  %v37 = vld [vmem:[%s4 + $0x28] sm:$0xf]
  %v38 = vld [vmem:[%s4 + $0x2c] sm:$0xf]
  %v39 = vld [vmem:[%s4 + $0x30] sm:$0xf]
  %v40 = vld [vmem:[%s4 + $0x34] sm:$0xf]
  %v41 = vld [vmem:[%s4 + $0x38] sm:$0xf]
  %v42 = vld [vmem:[%s4 + $0x3c] sm:$0xf]
  %v43 = vld [vmem:[%s4 + $0x40] sm:$0xf]
  %v44 = vld [vmem:[%s4 + $0x44] sm:$0xf]
  %v45 = vld [vmem:[%s4 + $0x48] sm:$0xf]
  %v46 = vld [vmem:[%s4 + $0x4c] sm:$0xf]
  %v47 = vld [vmem:[%s4 + $0x50] sm:$0xf]
  %v48 = vld [vmem:[%s4 + $0x54] sm:$0xf]
  %v49 = vld [vmem:[%s4 + $0x58] sm:$0xf]
  %v50 = vld [vmem:[%s4 + $0x5c] sm:$0xf]
  %v51 = vld [vmem:[%s4 + $0x60] sm:$0xf]
  %v52 = vld [vmem:[%s4 + $0x64] sm:$0xf]
  %v53 = vld [vmem:[%s4 + $0x68] sm:$0xf]
  %v54 = vld [vmem:[%s4 + $0x6c] sm:$0xf]
  %v55 = vld [vmem:[%s4 + $0x70] sm:$0xf]
  %v56 = vld [vmem:[%s4 + $0x74] sm:$0xf]
  %v57 = vld [vmem:[%s4 + $0x78] sm:$0xf]
  %v58 = vld [vmem:[%s4 + $0x7c] sm:$0xf]
  %v59 = vld [vmem:[%s4 + $0x80] sm:$0xf]
  %v60 = vld [vmem:[%s4 + $0x84] sm:$0xf]
  %v61 = vld [vmem:[%s4 + $0x88] sm:$0xf]
  %v62 = vld [vmem:[%s4 + $0x8c] sm:$0xf]
  %v63 = vld [vmem:[%s5] sm:$0x1]
  %v64 = vld [vmem:[%s6] sm:$0x1]
  %v65 = vld [vmem:[%s0] sm:$0xff]
  %v66 = vld [vmem:[%s0 + $0x8] sm:$0xf]
  %v67 = vld [vmem:[%s0 + $0xc] sm:$0xff]
  %v68 = vld [vmem:[%s0 + $0x14] sm:$0xf]
  %v69 = vld [vmem:[%s0 + $0x18] sm:$0xff]
  %v70 = vld [vmem:[%s0 + $0x20] sm:$0xf]
  %v71 = vld [vmem:[%s0 + $0x24] sm:$0xff]
  %v72 = vld [vmem:[%s0 + $0x2c] sm:$0xf]
  %v73 = vld [vmem:[%s0 + $0x30] sm:$0xff]
  %v74 = vld [vmem:[%s0 + $0x38] sm:$0xf]
  %v75 = vld [vmem:[%s0 + $0x3c] sm:$0xff]
  %v76 = vld [vmem:[%s0 + $0x44] sm:$0xf]
  %v77 = vld [vmem:[%s0 + $0x48] sm:$0xff]
  %v78 = vld [vmem:[%s0 + $0x50] sm:$0xf]
  %v79 = vld [vmem:[%s0 + $0x54] sm:$0xff]
  %v80 = vld [vmem:[%s0 + $0x5c] sm:$0xf]
  %v81 = vld [vmem:[%s0 + $0x60] sm:$0xff]
  %v82 = vld [vmem:[%s0 + $0x68] sm:$0xf]
  %v83 = vld [vmem:[%s0 + $0x6c] sm:$0xff]
  %v84 = vld [vmem:[%s0 + $0x74] sm:$0xf]
  %v85 = vld [vmem:[%s0 + $0x78] sm:$0xff]
  %v86 = vld [vmem:[%s0 + $0x80] sm:$0xf]
  %v87 = vld [vmem:[%s0 + $0x84] sm:$0xff]
  %v88 = vld [vmem:[%s0 + $0x8c] sm:$0xf]
  %v89 = vld [vmem:[%s0 + $0x90] sm:$0xff]
  %v90 = vld [vmem:[%s0 + $0x98] sm:$0xf]
  %v117 = vunpack.c.l.b16 %v65
  %v118 = vunpack.c.h.b16 %v65
  %v119 = vunpack.c.l.b16 %v66
  %v120 = vunpack.c.l.b16 %v67
  %v121 = vunpack.c.h.b16 %v67
  %v122 = vunpack.c.l.b16 %v68
  %v123 = vunpack.c.l.b16 %v69
  %v124 = vunpack.c.h.b16 %v69
  %v125 = vunpack.c.l.b16 %v70
  %v126 = vunpack.c.l.b16 %v71
  %v127 = vunpack.c.h.b16 %v71
  %v128 = vunpack.c.l.b16 %v72
  %v129 = vunpack.c.l.b16 %v73
  %v130 = vunpack.c.h.b16 %v73
  %v131 = vunpack.c.l.b16 %v74
  %v132 = vunpack.c.l.b16 %v75
  %v133 = vunpack.c.h.b16 %v75
  %v134 = vunpack.c.l.b16 %v76
  %v135 = vunpack.c.l.b16 %v77
  %v136 = vunpack.c.h.b16 %v77
  %v137 = vunpack.c.l.b16 %v78
  %v138 = vunpack.c.l.b16 %v79
  %v139 = vunpack.c.h.b16 %v79
  %v140 = vunpack.c.l.b16 %v80
  %v141 = vunpack.c.l.b16 %v81
  %v142 = vunpack.c.h.b16 %v81
  %v143 = vunpack.c.l.b16 %v82
  %v144 = vunpack.c.l.b16 %v83
  %v145 = vunpack.c.h.b16 %v83
  %v146 = vunpack.c.l.b16 %v84
  %v147 = vunpack.c.l.b16 %v85
  %v148 = vunpack.c.h.b16 %v85
  %v149 = vunpack.c.l.b16 %v86
  %v150 = vunpack.c.l.b16 %v87
  %v151 = vunpack.c.h.b16 %v87
  %v152 = vunpack.c.l.b16 %v88
  %v153 = vunpack.c.l.b16 %v89
  %v154 = vunpack.c.h.b16 %v89
  %v155 = vunpack.c.l.b16 %v90
  %v156 = vpack.c.b16 %v120, %v117
  %v157 = vpack.c.b16 %v121, %v118
  %v158 = vpack.c.b16 %v122, %v119
  %v159 = vpack.c.b16 %v126, %v123
  %v160 = vpack.c.b16 %v127, %v124
  %v161 = vpack.c.b16 %v128, %v125
  %v162 = vpack.c.b16 %v132, %v129
  %v163 = vpack.c.b16 %v133, %v130
  %v164 = vpack.c.b16 %v134, %v131
  %v165 = vpack.c.b16 %v138, %v135
  %v166 = vpack.c.b16 %v139, %v136
  %v167 = vpack.c.b16 %v140, %v137
  %v168 = vpack.c.b16 %v144, %v141
  %v169 = vpack.c.b16 %v145, %v142
  %v170 = vpack.c.b16 %v146, %v143
  %v171 = vpack.c.b16 %v150, %v147
  %v172 = vpack.c.b16 %v151, %v148
  %v173 = vpack.c.b16 %v152, %v149
  %v174 = vpack.c.b16 %v153, %v153
  %v175 = vpack.c.b16 %v154, %v154
  %v176 = vpack.c.b16 %v155, %v155
  %v227 = vunpack.c.l.b16 %v27
  %v228 = vunpack.c.l.b16 %v28
  %v229 = vunpack.c.l.b16 %v29
  %v230 = vunpack.c.l.b16 %v30
  %v231 = vunpack.c.l.b16 %v31
  %v232 = vunpack.c.l.b16 %v32
  %v233 = vunpack.c.l.b16 %v33
  %v234 = vunpack.c.l.b16 %v34
  %v235 = vunpack.c.l.b16 %v35
  %v236 = vunpack.c.l.b16 %v36
  %v237 = vunpack.c.l.b16 %v37
  %v238 = vunpack.c.l.b16 %v38
  %v239 = vunpack.c.l.b16 %v39
  %v240 = vunpack.c.l.b16 %v40
  %v241 = vunpack.c.l.b16 %v41
  %v242 = vunpack.c.l.b16 %v42
  %v243 = vunpack.c.l.b16 %v43
  %v244 = vunpack.c.l.b16 %v44
  %v245 = vunpack.c.l.b16 %v45
  %v246 = vunpack.c.l.b16 %v46
  %v247 = vunpack.c.l.b16 %v47
  %v248 = vunpack.c.l.b16 %v48
  %v249 = vunpack.c.l.b16 %v49
  %v250 = vunpack.c.l.b16 %v50
  %v251 = vunpack.c.l.b16 %v51
  %v252 = vunpack.c.l.b16 %v52
  %v253 = vunpack.c.l.b16 %v53
  %v254 = vunpack.c.l.b16 %v54
  %v255 = vunpack.c.l.b16 %v55
  %v256 = vunpack.c.l.b16 %v56
  %v257 = vunpack.c.l.b16 %v57
  %v258 = vunpack.c.l.b16 %v58
  %v259 = vunpack.c.l.b16 %v59
  %v260 = vunpack.c.l.b16 %v60
  %v261 = vunpack.c.l.b16 %v61
  %v262 = vunpack.c.l.b16 %v62
  %v263 = vpack.c.b16 %v228, %v227
  %v264 = vpack.c.b16 %v230, %v229
  %v265 = vpack.c.b16 %v232, %v231
  %v266 = vpack.c.b16 %v234, %v233
  %v267 = vpack.c.b16 %v236, %v235
  %v268 = vpack.c.b16 %v238, %v237
  %v269 = vpack.c.b16 %v240, %v239
  %v270 = vpack.c.b16 %v242, %v241
  %v271 = vpack.c.b16 %v244, %v243
  %v272 = vpack.c.b16 %v246, %v245
  %v273 = vpack.c.b16 %v248, %v247
  %v274 = vpack.c.b16 %v250, %v249
  %v275 = vpack.c.b16 %v252, %v251
  %v276 = vpack.c.b16 %v254, %v253
  %v277 = vpack.c.b16 %v256, %v255
  %v278 = vpack.c.b16 %v258, %v257
  %v279 = vpack.c.b16 %v260, %v259
  %v280 = vpack.c.b16 %v262, %v261
  %vm299 = vcmask 261120
  %v301 = vsel %vm299, %v158, 0
  %v304 = vsel %vm299, %v161, 0
  %v307 = vsel %vm299, %v164, 0
  %v310 = vsel %vm299, %v167, 0
  %v313 = vsel %vm299, %v170, 0
  %v316 = vsel %vm299, %v173, 0
  %v319 = vsel %vm299, %v176, 0
  %321 = vmatpush.bf16.msra.mxu0 %v270
  %322 = vmatpush.bf16.msra.mxu0 %v269
  %323 = vmatpush.bf16.msra.mxu0 %v268
  %324 = vmatpush.bf16.msra.mxu0 %v267
  %325 = vmatpush.bf16.msra.mxu0 %v266
  %326 = vmatpush.bf16.msra.mxu0 %v265
  %327 = vmatpush.bf16.msra.mxu0 %v264
  %328 = vmatpush.bf16.msra.mxu0 %v263
  %329 = vmatmul.bf16.gmra.mxu0 %v156
  %v330 = vpop.f32.mrf.mxu0
  %v331 = vadd.f32 0.0, %v330
  %v332 = vpop.f32.mrf.mxu0
  %v333 = vadd.f32 0.0, %v332
  %334 = vmatmul.bf16.gmra.mxu0 %v159
  %v335 = vpop.f32.mrf.mxu0
  %v336 = vadd.f32 0.0, %v335
  %v337 = vpop.f32.mrf.mxu0
  %v338 = vadd.f32 0.0, %v337
  %339 = vmatmul.bf16.gmra.mxu0 %v162
  %v340 = vpop.f32.mrf.mxu0
  %v341 = vadd.f32 0.0, %v340
  %v342 = vpop.f32.mrf.mxu0
  %v343 = vadd.f32 0.0, %v342
  %344 = vmatmul.bf16.gmra.mxu0 %v165
  %v345 = vpop.f32.mrf.mxu0
  %v346 = vadd.f32 0.0, %v345
  %v347 = vpop.f32.mrf.mxu0
  %v348 = vadd.f32 0.0, %v347
  %349 = vmatmul.bf16.gmra.mxu0 %v168
  %v350 = vpop.f32.mrf.mxu0
  %v351 = vadd.f32 0.0, %v350
  %v352 = vpop.f32.mrf.mxu0
  %v353 = vadd.f32 0.0, %v352
  %354 = vmatmul.bf16.gmra.mxu0 %v171
  %v355 = vpop.f32.mrf.mxu0
  %v356 = vadd.f32 0.0, %v355
  %v357 = vpop.f32.mrf.mxu0
  %v358 = vadd.f32 0.0, %v357
  %359 = vmatmul.bf16.gmra.mxu0 %v174
  %v360 = vpop.f32.mrf.mxu0
  %v361 = vadd.f32 0.0, %v360
  %v362 = vpop.f32.mrf.mxu0
  %363 = vdwg.mxu0
  %364 = vmatpush.bf16.msra.mxu0 %v278
  %365 = vmatpush.bf16.msra.mxu0 %v277
  %366 = vmatpush.bf16.msra.mxu0 %v276
  %367 = vmatpush.bf16.msra.mxu0 %v275
  %368 = vmatpush.bf16.msra.mxu0 %v274
  %369 = vmatpush.bf16.msra.mxu0 %v273
  %370 = vmatpush.bf16.msra.mxu0 %v272
  %371 = vmatpush.bf16.msra.mxu0 %v271
  %372 = vmatmul.bf16.gmra.mxu0 %v157
  %v373 = vpop.f32.mrf.mxu0
  %v374 = vadd.f32 %v331, %v373
  %v375 = vpop.f32.mrf.mxu0
  %v376 = vadd.f32 %v333, %v375
  %377 = vmatmul.bf16.gmra.mxu0 %v160
  %v378 = vpop.f32.mrf.mxu0
  %v379 = vadd.f32 %v336, %v378
  %v380 = vpop.f32.mrf.mxu0
  %v381 = vadd.f32 %v338, %v380
  %382 = vmatmul.bf16.gmra.mxu0 %v163
  %v383 = vpop.f32.mrf.mxu0
  %v384 = vadd.f32 %v341, %v383
  %v385 = vpop.f32.mrf.mxu0
  %v386 = vadd.f32 %v343, %v385
  %387 = vmatmul.bf16.gmra.mxu0 %v166
  %v388 = vpop.f32.mrf.mxu0
  %v389 = vadd.f32 %v346, %v388
  %v390 = vpop.f32.mrf.mxu0
  %v391 = vadd.f32 %v348, %v390
  %392 = vmatmul.bf16.gmra.mxu0 %v169
  %v393 = vpop.f32.mrf.mxu0
  %v394 = vadd.f32 %v351, %v393
  %v395 = vpop.f32.mrf.mxu0
  %v396 = vadd.f32 %v353, %v395
  %397 = vmatmul.bf16.gmra.mxu0 %v172
  %v398 = vpop.f32.mrf.mxu0
  %v399 = vadd.f32 %v356, %v398
  %v400 = vpop.f32.mrf.mxu0
  %v401 = vadd.f32 %v358, %v400
  %402 = vmatmul.bf16.gmra.mxu0 %v175
  %v403 = vpop.f32.mrf.mxu0
  %v404 = vadd.f32 %v361, %v403
  %v405 = vpop.f32.mrf.mxu0
  %406 = vdwg.mxu0
  %407 = vmatpush.bf16.msra.mxu0 0
  %408 = vmatpush.bf16.msra.mxu0 0
  %409 = vmatpush.bf16.msra.mxu0 0
  %410 = vmatpush.bf16.msra.mxu0 0
  %411 = vmatpush.bf16.msra.mxu0 0
  %412 = vmatpush.bf16.msra.mxu0 0
  %413 = vmatpush.bf16.msra.mxu0 %v280
  %414 = vmatpush.bf16.msra.mxu0 %v279
  %415 = vmatmul.bf16.gmra.mxu0 %v301
  %v416 = vpop.f32.mrf.mxu0
  %v417 = vadd.f32 %v374, %v416
  %v418 = vpop.f32.mrf.mxu0
  %v419 = vadd.f32 %v376, %v418
  %420 = vmatmul.bf16.gmra.mxu0 %v304
  %v421 = vpop.f32.mrf.mxu0
  %v422 = vadd.f32 %v379, %v421
  %v423 = vpop.f32.mrf.mxu0
  %v424 = vadd.f32 %v381, %v423
  %425 = vmatmul.bf16.gmra.mxu0 %v307
  %v426 = vpop.f32.mrf.mxu0
  %v427 = vadd.f32 %v384, %v426
  %v428 = vpop.f32.mrf.mxu0
  %v429 = vadd.f32 %v386, %v428
  %430 = vmatmul.bf16.gmra.mxu0 %v310
  %v431 = vpop.f32.mrf.mxu0
  %v432 = vadd.f32 %v389, %v431
  %v433 = vpop.f32.mrf.mxu0
  %v434 = vadd.f32 %v391, %v433
  %435 = vmatmul.bf16.gmra.mxu0 %v313
  %v436 = vpop.f32.mrf.mxu0
  %v437 = vadd.f32 %v394, %v436
  %v438 = vpop.f32.mrf.mxu0
  %v439 = vadd.f32 %v396, %v438
  %440 = vmatmul.bf16.gmra.mxu0 %v316
  %v441 = vpop.f32.mrf.mxu0
  %v442 = vadd.f32 %v399, %v441
  %v443 = vpop.f32.mrf.mxu0
  %v444 = vadd.f32 %v401, %v443
  %445 = vmatmul.bf16.gmra.mxu0 %v319
  %v446 = vpop.f32.mrf.mxu0
  %v447 = vadd.f32 %v404, %v446
  %v448 = vpop.f32.mrf.mxu0
  %449 = vdwg.mxu0
  %v451 = vperm.slane %v63, 0
  %v453 = vmul.f32 %v417, %v451
  %v454 = vmul.f32 %v419, %v451
  %v455 = vmul.f32 %v422, %v451
  %v456 = vmul.f32 %v424, %v451
  %v457 = vmul.f32 %v427, %v451
  %v458 = vmul.f32 %v429, %v451
  %v459 = vmul.f32 %v432, %v451
  %v460 = vmul.f32 %v434, %v451
  %v461 = vmul.f32 %v437, %v451
  %v462 = vmul.f32 %v439, %v451
  %v463 = vmul.f32 %v442, %v451
  %v464 = vmul.f32 %v444, %v451
  %v465 = vmul.f32 %v447, %v451
  %v467 = vperm.slane %v64, 0
  %v469 = vadd.f32 %v453, %v467
  %v470 = vadd.f32 %v454, %v467
  %v471 = vadd.f32 %v455, %v467
  %v472 = vadd.f32 %v456, %v467
  %v473 = vadd.f32 %v457, %v467
  %v474 = vadd.f32 %v458, %v467
  %v475 = vadd.f32 %v459, %v467
  %v476 = vadd.f32 %v460, %v467
  %v477 = vadd.f32 %v461, %v467
  %v478 = vadd.f32 %v462, %v467
  %v479 = vadd.f32 %v463, %v467
  %v480 = vadd.f32 %v464, %v467
  %v481 = vadd.f32 %v465, %v467
  %v482 = vld [vmem:[%s1] sm:$0xff]
  %v483 = vld [vmem:[%s1 + $0x8] sm:$0xf]
  %v484 = vld [vmem:[%s1 + $0xc] sm:$0xff]
  %v485 = vld [vmem:[%s1 + $0x14] sm:$0xf]
  %v486 = vld [vmem:[%s1 + $0x18] sm:$0xff]
  %v487 = vld [vmem:[%s1 + $0x20] sm:$0xf]
  %v488 = vld [vmem:[%s1 + $0x24] sm:$0xff]
  %v489 = vld [vmem:[%s1 + $0x2c] sm:$0xf]
  %v490 = vld [vmem:[%s1 + $0x30] sm:$0xff]
  %v491 = vld [vmem:[%s1 + $0x38] sm:$0xf]
  %v492 = vld [vmem:[%s1 + $0x3c] sm:$0xff]
  %v493 = vld [vmem:[%s1 + $0x44] sm:$0xf]
  %v494 = vld [vmem:[%s1 + $0x48] sm:$0xff]
  %v495 = vld [vmem:[%s1 + $0x50] sm:$0xf]
  %v496 = vld [vmem:[%s1 + $0x54] sm:$0xff]
  %v497 = vld [vmem:[%s1 + $0x5c] sm:$0xf]
  %v498 = vld [vmem:[%s1 + $0x60] sm:$0xff]
  %v499 = vld [vmem:[%s1 + $0x68] sm:$0xf]
  %v500 = vld [vmem:[%s1 + $0x6c] sm:$0xff]
  %v501 = vld [vmem:[%s1 + $0x74] sm:$0xf]
  %v502 = vld [vmem:[%s1 + $0x78] sm:$0xff]
  %v503 = vld [vmem:[%s1 + $0x80] sm:$0xf]
  %v504 = vld [vmem:[%s1 + $0x84] sm:$0xff]
  %v505 = vld [vmem:[%s1 + $0x8c] sm:$0xf]
  %v506 = vld [vmem:[%s1 + $0x90] sm:$0xff]
  %v507 = vld [vmem:[%s1 + $0x98] sm:$0xf]
  %v534 = vunpack.c.l.b16 %v482
  %v535 = vunpack.c.h.b16 %v482
  %v536 = vunpack.c.l.b16 %v483
  %v537 = vunpack.c.l.b16 %v484
  %v538 = vunpack.c.h.b16 %v484
  %v539 = vunpack.c.l.b16 %v485
  %v540 = vunpack.c.l.b16 %v486
  %v541 = vunpack.c.h.b16 %v486
  %v542 = vunpack.c.l.b16 %v487
  %v543 = vunpack.c.l.b16 %v488
  %v544 = vunpack.c.h.b16 %v488
  %v545 = vunpack.c.l.b16 %v489
  %v546 = vunpack.c.l.b16 %v490
  %v547 = vunpack.c.h.b16 %v490
  %v548 = vunpack.c.l.b16 %v491
  %v549 = vunpack.c.l.b16 %v492
  %v550 = vunpack.c.h.b16 %v492
  %v551 = vunpack.c.l.b16 %v493
  %v552 = vunpack.c.l.b16 %v494
  %v553 = vunpack.c.h.b16 %v494
  %v554 = vunpack.c.l.b16 %v495
  %v555 = vunpack.c.l.b16 %v496
  %v556 = vunpack.c.h.b16 %v496
  %v557 = vunpack.c.l.b16 %v497
  %v558 = vunpack.c.l.b16 %v498
  %v559 = vunpack.c.h.b16 %v498
  %v560 = vunpack.c.l.b16 %v499
  %v561 = vunpack.c.l.b16 %v500
  %v562 = vunpack.c.h.b16 %v500
  %v563 = vunpack.c.l.b16 %v501
  %v564 = vunpack.c.l.b16 %v502
  %v565 = vunpack.c.h.b16 %v502
  %v566 = vunpack.c.l.b16 %v503
  %v567 = vunpack.c.l.b16 %v504
  %v568 = vunpack.c.h.b16 %v504
  %v569 = vunpack.c.l.b16 %v505
  %v570 = vunpack.c.l.b16 %v506
  %v571 = vunpack.c.h.b16 %v506
  %v572 = vunpack.c.l.b16 %v507
  %v573 = vpack.c.b16 %v537, %v534
  %v574 = vpack.c.b16 %v538, %v535
  %v575 = vpack.c.b16 %v539, %v536
  %v576 = vpack.c.b16 %v543, %v540
  %v577 = vpack.c.b16 %v544, %v541
  %v578 = vpack.c.b16 %v545, %v542
  %v579 = vpack.c.b16 %v549, %v546
  %v580 = vpack.c.b16 %v550, %v547
  %v581 = vpack.c.b16 %v551, %v548
  %v582 = vpack.c.b16 %v555, %v552
  %v583 = vpack.c.b16 %v556, %v553
  %v584 = vpack.c.b16 %v557, %v554
  %v585 = vpack.c.b16 %v561, %v558
  %v586 = vpack.c.b16 %v562, %v559
  %v587 = vpack.c.b16 %v563, %v560
  %v588 = vpack.c.b16 %v567, %v564
  %v589 = vpack.c.b16 %v568, %v565
  %v590 = vpack.c.b16 %v569, %v566
  %v591 = vpack.c.b16 %v570, %v570
  %v592 = vpack.c.b16 %v571, %v571
  %v593 = vpack.c.b16 %v572, %v572
  %v609 = vsel %vm299, %v575, 0
  %v612 = vsel %vm299, %v578, 0
  %v615 = vsel %vm299, %v581, 0
  %v618 = vsel %vm299, %v584, 0
  %v621 = vsel %vm299, %v587, 0
  %v624 = vsel %vm299, %v590, 0
  %v627 = vsel %vm299, %v593, 0
  %629 = vmatpush.bf16.msra.mxu0 %v270
  %630 = vmatpush.bf16.msra.mxu0 %v269
  %631 = vmatpush.bf16.msra.mxu0 %v268
  %632 = vmatpush.bf16.msra.mxu0 %v267
  %633 = vmatpush.bf16.msra.mxu0 %v266
  %634 = vmatpush.bf16.msra.mxu0 %v265
  %635 = vmatpush.bf16.msra.mxu0 %v264
  %636 = vmatpush.bf16.msra.mxu0 %v263
  %637 = vmatmul.bf16.gmra.mxu0 %v573
  %v638 = vpop.f32.mrf.mxu0
  %v639 = vadd.f32 0.0, %v638
  %v640 = vpop.f32.mrf.mxu0
  %v641 = vadd.f32 0.0, %v640
  %642 = vmatmul.bf16.gmra.mxu0 %v576
  %v643 = vpop.f32.mrf.mxu0
  %v644 = vadd.f32 0.0, %v643
  %v645 = vpop.f32.mrf.mxu0
  %v646 = vadd.f32 0.0, %v645
  %647 = vmatmul.bf16.gmra.mxu0 %v579
  %v648 = vpop.f32.mrf.mxu0
  %v649 = vadd.f32 0.0, %v648
  %v650 = vpop.f32.mrf.mxu0
  %v651 = vadd.f32 0.0, %v650
  %652 = vmatmul.bf16.gmra.mxu0 %v582
  %v653 = vpop.f32.mrf.mxu0
  %v654 = vadd.f32 0.0, %v653
  %v655 = vpop.f32.mrf.mxu0
  %v656 = vadd.f32 0.0, %v655
  %657 = vmatmul.bf16.gmra.mxu0 %v585
  %v658 = vpop.f32.mrf.mxu0
  %v659 = vadd.f32 0.0, %v658
  %v660 = vpop.f32.mrf.mxu0
  %v661 = vadd.f32 0.0, %v660
  %662 = vmatmul.bf16.gmra.mxu0 %v588
  %v663 = vpop.f32.mrf.mxu0
  %v664 = vadd.f32 0.0, %v663
  %v665 = vpop.f32.mrf.mxu0
  %v666 = vadd.f32 0.0, %v665
  %667 = vmatmul.bf16.gmra.mxu0 %v591
  %v668 = vpop.f32.mrf.mxu0
  %v669 = vadd.f32 0.0, %v668
  %v670 = vpop.f32.mrf.mxu0
  %671 = vdwg.mxu0
  %672 = vmatpush.bf16.msra.mxu0 %v278
  %673 = vmatpush.bf16.msra.mxu0 %v277
  %674 = vmatpush.bf16.msra.mxu0 %v276
  %675 = vmatpush.bf16.msra.mxu0 %v275
  %676 = vmatpush.bf16.msra.mxu0 %v274
  %677 = vmatpush.bf16.msra.mxu0 %v273
  %678 = vmatpush.bf16.msra.mxu0 %v272
  %679 = vmatpush.bf16.msra.mxu0 %v271
  %680 = vmatmul.bf16.gmra.mxu0 %v574
  %v681 = vpop.f32.mrf.mxu0
  %v682 = vadd.f32 %v639, %v681
  %v683 = vpop.f32.mrf.mxu0
  %v684 = vadd.f32 %v641, %v683
  %685 = vmatmul.bf16.gmra.mxu0 %v577
  %v686 = vpop.f32.mrf.mxu0
  %v687 = vadd.f32 %v644, %v686
  %v688 = vpop.f32.mrf.mxu0
  %v689 = vadd.f32 %v646, %v688
  %690 = vmatmul.bf16.gmra.mxu0 %v580
  %v691 = vpop.f32.mrf.mxu0
  %v692 = vadd.f32 %v649, %v691
  %v693 = vpop.f32.mrf.mxu0
  %v694 = vadd.f32 %v651, %v693
  %695 = vmatmul.bf16.gmra.mxu0 %v583
  %v696 = vpop.f32.mrf.mxu0
  %v697 = vadd.f32 %v654, %v696
  %v698 = vpop.f32.mrf.mxu0
  %v699 = vadd.f32 %v656, %v698
  %700 = vmatmul.bf16.gmra.mxu0 %v586
  %v701 = vpop.f32.mrf.mxu0
  %v702 = vadd.f32 %v659, %v701
  %v703 = vpop.f32.mrf.mxu0
  %v704 = vadd.f32 %v661, %v703
  %705 = vmatmul.bf16.gmra.mxu0 %v589
  %v706 = vpop.f32.mrf.mxu0
  %v707 = vadd.f32 %v664, %v706
  %v708 = vpop.f32.mrf.mxu0
  %v709 = vadd.f32 %v666, %v708
  %710 = vmatmul.bf16.gmra.mxu0 %v592
  %v711 = vpop.f32.mrf.mxu0
  %v712 = vadd.f32 %v669, %v711
  %v713 = vpop.f32.mrf.mxu0
  %714 = vdwg.mxu0
  %715 = vmatpush.bf16.msra.mxu0 0
  %716 = vmatpush.bf16.msra.mxu0 0
  %717 = vmatpush.bf16.msra.mxu0 0
  %718 = vmatpush.bf16.msra.mxu0 0
  %719 = vmatpush.bf16.msra.mxu0 0
  %720 = vmatpush.bf16.msra.mxu0 0
  %721 = vmatpush.bf16.msra.mxu0 %v280
  %722 = vmatpush.bf16.msra.mxu0 %v279
  %723 = vmatmul.bf16.gmra.mxu0 %v609
  %v724 = vpop.f32.mrf.mxu0
  %v725 = vadd.f32 %v682, %v724
  %v726 = vpop.f32.mrf.mxu0
  %v727 = vadd.f32 %v684, %v726
  %728 = vmatmul.bf16.gmra.mxu0 %v612
  %v729 = vpop.f32.mrf.mxu0
  %v730 = vadd.f32 %v687, %v729
  %v731 = vpop.f32.mrf.mxu0
  %v732 = vadd.f32 %v689, %v731
  %733 = vmatmul.bf16.gmra.mxu0 %v615
  %v734 = vpop.f32.mrf.mxu0
  %v735 = vadd.f32 %v692, %v734
  %v736 = vpop.f32.mrf.mxu0
  %v737 = vadd.f32 %v694, %v736
  %738 = vmatmul.bf16.gmra.mxu0 %v618
  %v739 = vpop.f32.mrf.mxu0
  %v740 = vadd.f32 %v697, %v739
  %v741 = vpop.f32.mrf.mxu0
  %v742 = vadd.f32 %v699, %v741
  %743 = vmatmul.bf16.gmra.mxu0 %v621
  %v744 = vpop.f32.mrf.mxu0
  %v745 = vadd.f32 %v702, %v744
  %v746 = vpop.f32.mrf.mxu0
  %v747 = vadd.f32 %v704, %v746
  %748 = vmatmul.bf16.gmra.mxu0 %v624
  %v749 = vpop.f32.mrf.mxu0
  %v750 = vadd.f32 %v707, %v749
  %v751 = vpop.f32.mrf.mxu0
  %v752 = vadd.f32 %v709, %v751
  %753 = vmatmul.bf16.gmra.mxu0 %v627
  %v754 = vpop.f32.mrf.mxu0
  %v755 = vadd.f32 %v712, %v754
  %v756 = vpop.f32.mrf.mxu0
  %757 = vdwg.mxu0
  %v758 = vmul.f32 %v725, %v451
  %v759 = vmul.f32 %v727, %v451
  %v760 = vmul.f32 %v730, %v451
  %v761 = vmul.f32 %v732, %v451
  %v762 = vmul.f32 %v735, %v451
  %v763 = vmul.f32 %v737, %v451
  %v764 = vmul.f32 %v740, %v451
  %v765 = vmul.f32 %v742, %v451
  %v766 = vmul.f32 %v745, %v451
  %v767 = vmul.f32 %v747, %v451
  %v768 = vmul.f32 %v750, %v451
  %v769 = vmul.f32 %v752, %v451
  %v770 = vmul.f32 %v755, %v451
  %v771 = vadd.f32 %v758, %v467
  %v772 = vadd.f32 %v759, %v467
  %v773 = vadd.f32 %v760, %v467
  %v774 = vadd.f32 %v761, %v467
  %v775 = vadd.f32 %v762, %v467
  %v776 = vadd.f32 %v763, %v467
  %v777 = vadd.f32 %v764, %v467
  %v778 = vadd.f32 %v765, %v467
  %v779 = vadd.f32 %v766, %v467
  %v780 = vadd.f32 %v767, %v467
  %v781 = vadd.f32 %v768, %v467
  %v782 = vadd.f32 %v769, %v467
  %v783 = vadd.f32 %v770, %v467
  %v784 = vmax.f32 %v469, %v771
  %v785 = vmax.f32 %v470, %v772
  %v786 = vmax.f32 %v471, %v773
  %v787 = vmax.f32 %v472, %v774
  %v788 = vmax.f32 %v473, %v775
  %v789 = vmax.f32 %v474, %v776
  %v790 = vmax.f32 %v475, %v777
  %v791 = vmax.f32 %v476, %v778
  %v792 = vmax.f32 %v477, %v779
  %v793 = vmax.f32 %v478, %v780
  %v794 = vmax.f32 %v479, %v781
  %v795 = vmax.f32 %v480, %v782
  %v796 = vmax.f32 %v481, %v783
  %v797 = vld [vmem:[%s2] sm:$0xff]
  %v798 = vld [vmem:[%s2 + $0x8] sm:$0xf]
  %v799 = vld [vmem:[%s2 + $0xc] sm:$0xff]
  %v800 = vld [vmem:[%s2 + $0x14] sm:$0xf]
  %v801 = vld [vmem:[%s2 + $0x18] sm:$0xff]
  %v802 = vld [vmem:[%s2 + $0x20] sm:$0xf]
  %v803 = vld [vmem:[%s2 + $0x24] sm:$0xff]
  %v804 = vld [vmem:[%s2 + $0x2c] sm:$0xf]
  %v805 = vld [vmem:[%s2 + $0x30] sm:$0xff]
  %v806 = vld [vmem:[%s2 + $0x38] sm:$0xf]
  %v807 = vld [vmem:[%s2 + $0x3c] sm:$0xff]
  %v808 = vld [vmem:[%s2 + $0x44] sm:$0xf]
  %v809 = vld [vmem:[%s2 + $0x48] sm:$0xff]
  %v810 = vld [vmem:[%s2 + $0x50] sm:$0xf]
  %v811 = vld [vmem:[%s2 + $0x54] sm:$0xff]
  %v812 = vld [vmem:[%s2 + $0x5c] sm:$0xf]
  %v813 = vld [vmem:[%s2 + $0x60] sm:$0xff]
  %v814 = vld [vmem:[%s2 + $0x68] sm:$0xf]
  %v815 = vld [vmem:[%s2 + $0x6c] sm:$0xff]
  %v816 = vld [vmem:[%s2 + $0x74] sm:$0xf]
  %v817 = vld [vmem:[%s2 + $0x78] sm:$0xff]
  %v818 = vld [vmem:[%s2 + $0x80] sm:$0xf]
  %v819 = vld [vmem:[%s2 + $0x84] sm:$0xff]
  %v820 = vld [vmem:[%s2 + $0x8c] sm:$0xf]
  %v821 = vld [vmem:[%s2 + $0x90] sm:$0xff]
  %v822 = vld [vmem:[%s2 + $0x98] sm:$0xf]
  %v849 = vunpack.c.l.b16 %v797
  %v850 = vunpack.c.h.b16 %v797
  %v851 = vunpack.c.l.b16 %v798
  %v852 = vunpack.c.l.b16 %v799
  %v853 = vunpack.c.h.b16 %v799
  %v854 = vunpack.c.l.b16 %v800
  %v855 = vunpack.c.l.b16 %v801
  %v856 = vunpack.c.h.b16 %v801
  %v857 = vunpack.c.l.b16 %v802
  %v858 = vunpack.c.l.b16 %v803
  %v859 = vunpack.c.h.b16 %v803
  %v860 = vunpack.c.l.b16 %v804
  %v861 = vunpack.c.l.b16 %v805
  %v862 = vunpack.c.h.b16 %v805
  %v863 = vunpack.c.l.b16 %v806
  %v864 = vunpack.c.l.b16 %v807
  %v865 = vunpack.c.h.b16 %v807
  %v866 = vunpack.c.l.b16 %v808
  %v867 = vunpack.c.l.b16 %v809
  %v868 = vunpack.c.h.b16 %v809
  %v869 = vunpack.c.l.b16 %v810
  %v870 = vunpack.c.l.b16 %v811
  %v871 = vunpack.c.h.b16 %v811
  %v872 = vunpack.c.l.b16 %v812
  %v873 = vunpack.c.l.b16 %v813
  %v874 = vunpack.c.h.b16 %v813
  %v875 = vunpack.c.l.b16 %v814
  %v876 = vunpack.c.l.b16 %v815
  %v877 = vunpack.c.h.b16 %v815
  %v878 = vunpack.c.l.b16 %v816
  %v879 = vunpack.c.l.b16 %v817
  %v880 = vunpack.c.h.b16 %v817
  %v881 = vunpack.c.l.b16 %v818
  %v882 = vunpack.c.l.b16 %v819
  %v883 = vunpack.c.h.b16 %v819
  %v884 = vunpack.c.l.b16 %v820
  %v885 = vunpack.c.l.b16 %v821
  %v886 = vunpack.c.h.b16 %v821
  %v887 = vunpack.c.l.b16 %v822
  %v888 = vpack.c.b16 %v852, %v849
  %v889 = vpack.c.b16 %v853, %v850
  %v890 = vpack.c.b16 %v854, %v851
  %v891 = vpack.c.b16 %v858, %v855
  %v892 = vpack.c.b16 %v859, %v856
  %v893 = vpack.c.b16 %v860, %v857
  %v894 = vpack.c.b16 %v864, %v861
  %v895 = vpack.c.b16 %v865, %v862
  %v896 = vpack.c.b16 %v866, %v863
  %v897 = vpack.c.b16 %v870, %v867
  %v898 = vpack.c.b16 %v871, %v868
  %v899 = vpack.c.b16 %v872, %v869
  %v900 = vpack.c.b16 %v876, %v873
  %v901 = vpack.c.b16 %v877, %v874
  %v902 = vpack.c.b16 %v878, %v875
  %v903 = vpack.c.b16 %v882, %v879
  %v904 = vpack.c.b16 %v883, %v880
  %v905 = vpack.c.b16 %v884, %v881
  %v906 = vpack.c.b16 %v885, %v885
  %v907 = vpack.c.b16 %v886, %v886
  %v908 = vpack.c.b16 %v887, %v887
  %v924 = vsel %vm299, %v890, 0
  %v927 = vsel %vm299, %v893, 0
  %v930 = vsel %vm299, %v896, 0
  %v933 = vsel %vm299, %v899, 0
  %v936 = vsel %vm299, %v902, 0
  %v939 = vsel %vm299, %v905, 0
  %v942 = vsel %vm299, %v908, 0
  %944 = vmatpush.bf16.msra.mxu0 %v270
  %945 = vmatpush.bf16.msra.mxu0 %v269
  %946 = vmatpush.bf16.msra.mxu0 %v268
  %947 = vmatpush.bf16.msra.mxu0 %v267
  %948 = vmatpush.bf16.msra.mxu0 %v266
  %949 = vmatpush.bf16.msra.mxu0 %v265
  %950 = vmatpush.bf16.msra.mxu0 %v264
  %951 = vmatpush.bf16.msra.mxu0 %v263
  %952 = vmatmul.bf16.gmra.mxu0 %v888
  %v953 = vpop.f32.mrf.mxu0
  %v954 = vadd.f32 0.0, %v953
  %v955 = vpop.f32.mrf.mxu0
  %v956 = vadd.f32 0.0, %v955
  %957 = vmatmul.bf16.gmra.mxu0 %v891
  %v958 = vpop.f32.mrf.mxu0
  %v959 = vadd.f32 0.0, %v958
  %v960 = vpop.f32.mrf.mxu0
  %v961 = vadd.f32 0.0, %v960
  %962 = vmatmul.bf16.gmra.mxu0 %v894
  %v963 = vpop.f32.mrf.mxu0
  %v964 = vadd.f32 0.0, %v963
  %v965 = vpop.f32.mrf.mxu0
  %v966 = vadd.f32 0.0, %v965
  %967 = vmatmul.bf16.gmra.mxu0 %v897
  %v968 = vpop.f32.mrf.mxu0
  %v969 = vadd.f32 0.0, %v968
  %v970 = vpop.f32.mrf.mxu0
  %v971 = vadd.f32 0.0, %v970
  %972 = vmatmul.bf16.gmra.mxu0 %v900
  %v973 = vpop.f32.mrf.mxu0
  %v974 = vadd.f32 0.0, %v973
  %v975 = vpop.f32.mrf.mxu0
  %v976 = vadd.f32 0.0, %v975
  %977 = vmatmul.bf16.gmra.mxu0 %v903
  %v978 = vpop.f32.mrf.mxu0
  %v979 = vadd.f32 0.0, %v978
  %v980 = vpop.f32.mrf.mxu0
  %v981 = vadd.f32 0.0, %v980
  %982 = vmatmul.bf16.gmra.mxu0 %v906
  %v983 = vpop.f32.mrf.mxu0
  %v984 = vadd.f32 0.0, %v983
  %v985 = vpop.f32.mrf.mxu0
  %986 = vdwg.mxu0
  %987 = vmatpush.bf16.msra.mxu0 %v278
  %988 = vmatpush.bf16.msra.mxu0 %v277
  %989 = vmatpush.bf16.msra.mxu0 %v276
  %990 = vmatpush.bf16.msra.mxu0 %v275
  %991 = vmatpush.bf16.msra.mxu0 %v274
  %992 = vmatpush.bf16.msra.mxu0 %v273
  %993 = vmatpush.bf16.msra.mxu0 %v272
  %994 = vmatpush.bf16.msra.mxu0 %v271
  %995 = vmatmul.bf16.gmra.mxu0 %v889
  %v996 = vpop.f32.mrf.mxu0
  %v997 = vadd.f32 %v954, %v996
  %v998 = vpop.f32.mrf.mxu0
  %v999 = vadd.f32 %v956, %v998
  %1000 = vmatmul.bf16.gmra.mxu0 %v892
  %v1001 = vpop.f32.mrf.mxu0
  %v1002 = vadd.f32 %v959, %v1001
  %v1003 = vpop.f32.mrf.mxu0
  %v1004 = vadd.f32 %v961, %v1003
  %1005 = vmatmul.bf16.gmra.mxu0 %v895
  %v1006 = vpop.f32.mrf.mxu0
  %v1007 = vadd.f32 %v964, %v1006
  %v1008 = vpop.f32.mrf.mxu0
  %v1009 = vadd.f32 %v966, %v1008
  %1010 = vmatmul.bf16.gmra.mxu0 %v898
  %v1011 = vpop.f32.mrf.mxu0
  %v1012 = vadd.f32 %v969, %v1011
  %v1013 = vpop.f32.mrf.mxu0
  %v1014 = vadd.f32 %v971, %v1013
  %1015 = vmatmul.bf16.gmra.mxu0 %v901
  %v1016 = vpop.f32.mrf.mxu0
  %v1017 = vadd.f32 %v974, %v1016
  %v1018 = vpop.f32.mrf.mxu0
  %v1019 = vadd.f32 %v976, %v1018
  %1020 = vmatmul.bf16.gmra.mxu0 %v904
  %v1021 = vpop.f32.mrf.mxu0
  %v1022 = vadd.f32 %v979, %v1021
  %v1023 = vpop.f32.mrf.mxu0
  %v1024 = vadd.f32 %v981, %v1023
  %1025 = vmatmul.bf16.gmra.mxu0 %v907
  %v1026 = vpop.f32.mrf.mxu0
  %v1027 = vadd.f32 %v984, %v1026
  %v1028 = vpop.f32.mrf.mxu0
  %1029 = vdwg.mxu0
  %1030 = vmatpush.bf16.msra.mxu0 0
  %1031 = vmatpush.bf16.msra.mxu0 0
  %1032 = vmatpush.bf16.msra.mxu0 0
  %1033 = vmatpush.bf16.msra.mxu0 0
  %1034 = vmatpush.bf16.msra.mxu0 0
  %1035 = vmatpush.bf16.msra.mxu0 0
  %1036 = vmatpush.bf16.msra.mxu0 %v280
  %1037 = vmatpush.bf16.msra.mxu0 %v279
  %1038 = vmatmul.bf16.gmra.mxu0 %v924
  %v1039 = vpop.f32.mrf.mxu0
  %v1040 = vadd.f32 %v997, %v1039
  %v1041 = vpop.f32.mrf.mxu0
  %v1042 = vadd.f32 %v999, %v1041
  %1043 = vmatmul.bf16.gmra.mxu0 %v927
  %v1044 = vpop.f32.mrf.mxu0
  %v1045 = vadd.f32 %v1002, %v1044
  %v1046 = vpop.f32.mrf.mxu0
  %v1047 = vadd.f32 %v1004, %v1046
  %1048 = vmatmul.bf16.gmra.mxu0 %v930
  %v1049 = vpop.f32.mrf.mxu0
  %v1050 = vadd.f32 %v1007, %v1049
  %v1051 = vpop.f32.mrf.mxu0
  %v1052 = vadd.f32 %v1009, %v1051
  %1053 = vmatmul.bf16.gmra.mxu0 %v933
  %v1054 = vpop.f32.mrf.mxu0
  %v1055 = vadd.f32 %v1012, %v1054
  %v1056 = vpop.f32.mrf.mxu0
  %v1057 = vadd.f32 %v1014, %v1056
  %1058 = vmatmul.bf16.gmra.mxu0 %v936
  %v1059 = vpop.f32.mrf.mxu0
  %v1060 = vadd.f32 %v1017, %v1059
  %v1061 = vpop.f32.mrf.mxu0
  %v1062 = vadd.f32 %v1019, %v1061
  %1063 = vmatmul.bf16.gmra.mxu0 %v939
  %v1064 = vpop.f32.mrf.mxu0
  %v1065 = vadd.f32 %v1022, %v1064
  %v1066 = vpop.f32.mrf.mxu0
  %v1067 = vadd.f32 %v1024, %v1066
  %1068 = vmatmul.bf16.gmra.mxu0 %v942
  %v1069 = vpop.f32.mrf.mxu0
  %v1070 = vadd.f32 %v1027, %v1069
  %v1071 = vpop.f32.mrf.mxu0
  %1072 = vdwg.mxu0
  %v1073 = vmul.f32 %v1040, %v451
  %v1074 = vmul.f32 %v1042, %v451
  %v1075 = vmul.f32 %v1045, %v451
  %v1076 = vmul.f32 %v1047, %v451
  %v1077 = vmul.f32 %v1050, %v451
  %v1078 = vmul.f32 %v1052, %v451
  %v1079 = vmul.f32 %v1055, %v451
  %v1080 = vmul.f32 %v1057, %v451
  %v1081 = vmul.f32 %v1060, %v451
  %v1082 = vmul.f32 %v1062, %v451
  %v1083 = vmul.f32 %v1065, %v451
  %v1084 = vmul.f32 %v1067, %v451
  %v1085 = vmul.f32 %v1070, %v451
  %v1086 = vadd.f32 %v1073, %v467
  %v1087 = vadd.f32 %v1074, %v467
  %v1088 = vadd.f32 %v1075, %v467
  %v1089 = vadd.f32 %v1076, %v467
  %v1090 = vadd.f32 %v1077, %v467
  %v1091 = vadd.f32 %v1078, %v467
  %v1092 = vadd.f32 %v1079, %v467
  %v1093 = vadd.f32 %v1080, %v467
  %v1094 = vadd.f32 %v1081, %v467
  %v1095 = vadd.f32 %v1082, %v467
  %v1096 = vadd.f32 %v1083, %v467
  %v1097 = vadd.f32 %v1084, %v467
  %v1098 = vadd.f32 %v1085, %v467
  %v1099 = vld [vmem:[%s3] sm:$0xff]
  %v1100 = vld [vmem:[%s3 + $0x8] sm:$0xf]
  %v1101 = vld [vmem:[%s3 + $0xc] sm:$0xff]
  %v1102 = vld [vmem:[%s3 + $0x14] sm:$0xf]
  %v1103 = vld [vmem:[%s3 + $0x18] sm:$0xff]
  %v1104 = vld [vmem:[%s3 + $0x20] sm:$0xf]
  %v1105 = vld [vmem:[%s3 + $0x24] sm:$0xff]
  %v1106 = vld [vmem:[%s3 + $0x2c] sm:$0xf]
  %v1107 = vld [vmem:[%s3 + $0x30] sm:$0xff]
  %v1108 = vld [vmem:[%s3 + $0x38] sm:$0xf]
  %v1109 = vld [vmem:[%s3 + $0x3c] sm:$0xff]
  %v1110 = vld [vmem:[%s3 + $0x44] sm:$0xf]
  %v1111 = vld [vmem:[%s3 + $0x48] sm:$0xff]
  %v1112 = vld [vmem:[%s3 + $0x50] sm:$0xf]
  %v1113 = vld [vmem:[%s3 + $0x54] sm:$0xff]
  %v1114 = vld [vmem:[%s3 + $0x5c] sm:$0xf]
  %v1115 = vld [vmem:[%s3 + $0x60] sm:$0xff]
  %v1116 = vld [vmem:[%s3 + $0x68] sm:$0xf]
  %v1117 = vld [vmem:[%s3 + $0x6c] sm:$0xff]
  %v1118 = vld [vmem:[%s3 + $0x74] sm:$0xf]
  %v1119 = vld [vmem:[%s3 + $0x78] sm:$0xff]
  %v1120 = vld [vmem:[%s3 + $0x80] sm:$0xf]
  %v1121 = vld [vmem:[%s3 + $0x84] sm:$0xff]
  %v1122 = vld [vmem:[%s3 + $0x8c] sm:$0xf]
  %v1123 = vld [vmem:[%s3 + $0x90] sm:$0xff]
  %v1124 = vld [vmem:[%s3 + $0x98] sm:$0xf]
  %v1151 = vunpack.c.l.b16 %v1099
  %v1152 = vunpack.c.h.b16 %v1099
  %v1153 = vunpack.c.l.b16 %v1100
  %v1154 = vunpack.c.l.b16 %v1101
  %v1155 = vunpack.c.h.b16 %v1101
  %v1156 = vunpack.c.l.b16 %v1102
  %v1157 = vunpack.c.l.b16 %v1103
  %v1158 = vunpack.c.h.b16 %v1103
  %v1159 = vunpack.c.l.b16 %v1104
  %v1160 = vunpack.c.l.b16 %v1105
  %v1161 = vunpack.c.h.b16 %v1105
  %v1162 = vunpack.c.l.b16 %v1106
  %v1163 = vunpack.c.l.b16 %v1107
  %v1164 = vunpack.c.h.b16 %v1107
  %v1165 = vunpack.c.l.b16 %v1108
  %v1166 = vunpack.c.l.b16 %v1109
  %v1167 = vunpack.c.h.b16 %v1109
  %v1168 = vunpack.c.l.b16 %v1110
  %v1169 = vunpack.c.l.b16 %v1111
  %v1170 = vunpack.c.h.b16 %v1111
  %v1171 = vunpack.c.l.b16 %v1112
  %v1172 = vunpack.c.l.b16 %v1113
  %v1173 = vunpack.c.h.b16 %v1113
  %v1174 = vunpack.c.l.b16 %v1114
  %v1175 = vunpack.c.l.b16 %v1115
  %v1176 = vunpack.c.h.b16 %v1115
  %v1177 = vunpack.c.l.b16 %v1116
  %v1178 = vunpack.c.l.b16 %v1117
  %v1179 = vunpack.c.h.b16 %v1117
  %v1180 = vunpack.c.l.b16 %v1118
  %v1181 = vunpack.c.l.b16 %v1119
  %v1182 = vunpack.c.h.b16 %v1119
  %v1183 = vunpack.c.l.b16 %v1120
  %v1184 = vunpack.c.l.b16 %v1121
  %v1185 = vunpack.c.h.b16 %v1121
  %v1186 = vunpack.c.l.b16 %v1122
  %v1187 = vunpack.c.l.b16 %v1123
  %v1188 = vunpack.c.h.b16 %v1123
  %v1189 = vunpack.c.l.b16 %v1124
  %v1190 = vpack.c.b16 %v1154, %v1151
  %v1191 = vpack.c.b16 %v1155, %v1152
  %v1192 = vpack.c.b16 %v1156, %v1153
  %v1193 = vpack.c.b16 %v1160, %v1157
  %v1194 = vpack.c.b16 %v1161, %v1158
  %v1195 = vpack.c.b16 %v1162, %v1159
  %v1196 = vpack.c.b16 %v1166, %v1163
  %v1197 = vpack.c.b16 %v1167, %v1164
  %v1198 = vpack.c.b16 %v1168, %v1165
  %v1199 = vpack.c.b16 %v1172, %v1169
  %v1200 = vpack.c.b16 %v1173, %v1170
  %v1201 = vpack.c.b16 %v1174, %v1171
  %v1202 = vpack.c.b16 %v1178, %v1175
  %v1203 = vpack.c.b16 %v1179, %v1176
  %v1204 = vpack.c.b16 %v1180, %v1177
  %v1205 = vpack.c.b16 %v1184, %v1181
  %v1206 = vpack.c.b16 %v1185, %v1182
  %v1207 = vpack.c.b16 %v1186, %v1183
  %v1208 = vpack.c.b16 %v1187, %v1187
  %v1209 = vpack.c.b16 %v1188, %v1188
  %v1210 = vpack.c.b16 %v1189, %v1189
  %v1226 = vsel %vm299, %v1192, 0
  %v1229 = vsel %vm299, %v1195, 0
  %v1232 = vsel %vm299, %v1198, 0
  %v1235 = vsel %vm299, %v1201, 0
  %v1238 = vsel %vm299, %v1204, 0
  %v1241 = vsel %vm299, %v1207, 0
  %v1244 = vsel %vm299, %v1210, 0
  %1246 = vmatpush.bf16.msra.mxu0 %v270
  %1247 = vmatpush.bf16.msra.mxu0 %v269
  %1248 = vmatpush.bf16.msra.mxu0 %v268
  %1249 = vmatpush.bf16.msra.mxu0 %v267
  %1250 = vmatpush.bf16.msra.mxu0 %v266
  %1251 = vmatpush.bf16.msra.mxu0 %v265
  %1252 = vmatpush.bf16.msra.mxu0 %v264
  %1253 = vmatpush.bf16.msra.mxu0 %v263
  %1254 = vmatmul.bf16.gmra.mxu0 %v1190
  %v1255 = vpop.f32.mrf.mxu0
  %v1256 = vadd.f32 0.0, %v1255
  %v1257 = vpop.f32.mrf.mxu0
  %v1258 = vadd.f32 0.0, %v1257
  %1259 = vmatmul.bf16.gmra.mxu0 %v1193
  %v1260 = vpop.f32.mrf.mxu0
  %v1261 = vadd.f32 0.0, %v1260
  %v1262 = vpop.f32.mrf.mxu0
  %v1263 = vadd.f32 0.0, %v1262
  %1264 = vmatmul.bf16.gmra.mxu0 %v1196
  %v1265 = vpop.f32.mrf.mxu0
  %v1266 = vadd.f32 0.0, %v1265
  %v1267 = vpop.f32.mrf.mxu0
  %v1268 = vadd.f32 0.0, %v1267
  %1269 = vmatmul.bf16.gmra.mxu0 %v1199
  %v1270 = vpop.f32.mrf.mxu0
  %v1271 = vadd.f32 0.0, %v1270
  %v1272 = vpop.f32.mrf.mxu0
  %v1273 = vadd.f32 0.0, %v1272
  %1274 = vmatmul.bf16.gmra.mxu0 %v1202
  %v1275 = vpop.f32.mrf.mxu0
  %v1276 = vadd.f32 0.0, %v1275
  %v1277 = vpop.f32.mrf.mxu0
  %v1278 = vadd.f32 0.0, %v1277
  %1279 = vmatmul.bf16.gmra.mxu0 %v1205
  %v1280 = vpop.f32.mrf.mxu0
  %v1281 = vadd.f32 0.0, %v1280
  %v1282 = vpop.f32.mrf.mxu0
  %v1283 = vadd.f32 0.0, %v1282
  %1284 = vmatmul.bf16.gmra.mxu0 %v1208
  %v1285 = vpop.f32.mrf.mxu0
  %v1286 = vadd.f32 0.0, %v1285
  %v1287 = vpop.f32.mrf.mxu0
  %1288 = vdwg.mxu0
  %1289 = vmatpush.bf16.msra.mxu0 %v278
  %1290 = vmatpush.bf16.msra.mxu0 %v277
  %1291 = vmatpush.bf16.msra.mxu0 %v276
  %1292 = vmatpush.bf16.msra.mxu0 %v275
  %1293 = vmatpush.bf16.msra.mxu0 %v274
  %1294 = vmatpush.bf16.msra.mxu0 %v273
  %1295 = vmatpush.bf16.msra.mxu0 %v272
  %1296 = vmatpush.bf16.msra.mxu0 %v271
  %1297 = vmatmul.bf16.gmra.mxu0 %v1191
  %v1298 = vpop.f32.mrf.mxu0
  %v1299 = vadd.f32 %v1256, %v1298
  %v1300 = vpop.f32.mrf.mxu0
  %v1301 = vadd.f32 %v1258, %v1300
  %1302 = vmatmul.bf16.gmra.mxu0 %v1194
  %v1303 = vpop.f32.mrf.mxu0
  %v1304 = vadd.f32 %v1261, %v1303
  %v1305 = vpop.f32.mrf.mxu0
  %v1306 = vadd.f32 %v1263, %v1305
  %1307 = vmatmul.bf16.gmra.mxu0 %v1197
  %v1308 = vpop.f32.mrf.mxu0
  %v1309 = vadd.f32 %v1266, %v1308
  %v1310 = vpop.f32.mrf.mxu0
  %v1311 = vadd.f32 %v1268, %v1310
  %1312 = vmatmul.bf16.gmra.mxu0 %v1200
  %v1313 = vpop.f32.mrf.mxu0
  %v1314 = vadd.f32 %v1271, %v1313
  %v1315 = vpop.f32.mrf.mxu0
  %v1316 = vadd.f32 %v1273, %v1315
  %1317 = vmatmul.bf16.gmra.mxu0 %v1203
  %v1318 = vpop.f32.mrf.mxu0
  %v1319 = vadd.f32 %v1276, %v1318
  %v1320 = vpop.f32.mrf.mxu0
  %v1321 = vadd.f32 %v1278, %v1320
  %1322 = vmatmul.bf16.gmra.mxu0 %v1206
  %v1323 = vpop.f32.mrf.mxu0
  %v1324 = vadd.f32 %v1281, %v1323
  %v1325 = vpop.f32.mrf.mxu0
  %v1326 = vadd.f32 %v1283, %v1325
  %1327 = vmatmul.bf16.gmra.mxu0 %v1209
  %v1328 = vpop.f32.mrf.mxu0
  %v1329 = vadd.f32 %v1286, %v1328
  %v1330 = vpop.f32.mrf.mxu0
  %1331 = vdwg.mxu0
  %1332 = vmatpush.bf16.msra.mxu0 0
  %1333 = vmatpush.bf16.msra.mxu0 0
  %1334 = vmatpush.bf16.msra.mxu0 0
  %1335 = vmatpush.bf16.msra.mxu0 0
  %1336 = vmatpush.bf16.msra.mxu0 0
  %1337 = vmatpush.bf16.msra.mxu0 0
  %1338 = vmatpush.bf16.msra.mxu0 %v280
  %1339 = vmatpush.bf16.msra.mxu0 %v279
  %1340 = vmatmul.bf16.gmra.mxu0 %v1226
  %v1341 = vpop.f32.mrf.mxu0
  %v1342 = vadd.f32 %v1299, %v1341
  %v1343 = vpop.f32.mrf.mxu0
  %v1344 = vadd.f32 %v1301, %v1343
  %1345 = vmatmul.bf16.gmra.mxu0 %v1229
  %v1346 = vpop.f32.mrf.mxu0
  %v1347 = vadd.f32 %v1304, %v1346
  %v1348 = vpop.f32.mrf.mxu0
  %v1349 = vadd.f32 %v1306, %v1348
  %1350 = vmatmul.bf16.gmra.mxu0 %v1232
  %v1351 = vpop.f32.mrf.mxu0
  %v1352 = vadd.f32 %v1309, %v1351
  %v1353 = vpop.f32.mrf.mxu0
  %v1354 = vadd.f32 %v1311, %v1353
  %1355 = vmatmul.bf16.gmra.mxu0 %v1235
  %v1356 = vpop.f32.mrf.mxu0
  %v1357 = vadd.f32 %v1314, %v1356
  %v1358 = vpop.f32.mrf.mxu0
  %v1359 = vadd.f32 %v1316, %v1358
  %1360 = vmatmul.bf16.gmra.mxu0 %v1238
  %v1361 = vpop.f32.mrf.mxu0
  %v1362 = vadd.f32 %v1319, %v1361
  %v1363 = vpop.f32.mrf.mxu0
  %v1364 = vadd.f32 %v1321, %v1363
  %1365 = vmatmul.bf16.gmra.mxu0 %v1241
  %v1366 = vpop.f32.mrf.mxu0
  %v1367 = vadd.f32 %v1324, %v1366
  %v1368 = vpop.f32.mrf.mxu0
  %v1369 = vadd.f32 %v1326, %v1368
  %1370 = vmatmul.bf16.gmra.mxu0 %v1244
  %v1371 = vpop.f32.mrf.mxu0
  %v1372 = vadd.f32 %v1329, %v1371
  %v1373 = vpop.f32.mrf.mxu0
  %1374 = vdwg.mxu0
  %v1375 = vmul.f32 %v1342, %v451
  %v1376 = vmul.f32 %v1344, %v451
  %v1377 = vmul.f32 %v1347, %v451
  %v1378 = vmul.f32 %v1349, %v451
  %v1379 = vmul.f32 %v1352, %v451
  %v1380 = vmul.f32 %v1354, %v451
  %v1381 = vmul.f32 %v1357, %v451
  %v1382 = vmul.f32 %v1359, %v451
  %v1383 = vmul.f32 %v1362, %v451
  %v1384 = vmul.f32 %v1364, %v451
  %v1385 = vmul.f32 %v1367, %v451
  %v1386 = vmul.f32 %v1369, %v451
  %v1387 = vmul.f32 %v1372, %v451
  %v1388 = vadd.f32 %v1375, %v467
  %v1389 = vadd.f32 %v1376, %v467
  %v1390 = vadd.f32 %v1377, %v467
  %v1391 = vadd.f32 %v1378, %v467
  %v1392 = vadd.f32 %v1379, %v467
  %v1393 = vadd.f32 %v1380, %v467
  %v1394 = vadd.f32 %v1381, %v467
  %v1395 = vadd.f32 %v1382, %v467
  %v1396 = vadd.f32 %v1383, %v467
  %v1397 = vadd.f32 %v1384, %v467
  %v1398 = vadd.f32 %v1385, %v467
  %v1399 = vadd.f32 %v1386, %v467
  %v1400 = vadd.f32 %v1387, %v467
  %v1401 = vmax.f32 %v1086, %v1388
  %v1402 = vmax.f32 %v1087, %v1389
  %v1403 = vmax.f32 %v1088, %v1390
  %v1404 = vmax.f32 %v1089, %v1391
  %v1405 = vmax.f32 %v1090, %v1392
  %v1406 = vmax.f32 %v1091, %v1393
  %v1407 = vmax.f32 %v1092, %v1394
  %v1408 = vmax.f32 %v1093, %v1395
  %v1409 = vmax.f32 %v1094, %v1396
  %v1410 = vmax.f32 %v1095, %v1397
  %v1411 = vmax.f32 %v1096, %v1398
  %v1412 = vmax.f32 %v1097, %v1399
  %v1413 = vmax.f32 %v1098, %v1400
  %v1414 = vmax.f32 %v784, %v1401
  %v1415 = vmax.f32 %v785, %v1402
  %v1416 = vmax.f32 %v786, %v1403
  %v1417 = vmax.f32 %v787, %v1404
  %v1418 = vmax.f32 %v788, %v1405
  %v1419 = vmax.f32 %v789, %v1406
  %v1420 = vmax.f32 %v790, %v1407
  %v1421 = vmax.f32 %v791, %v1408
  %v1422 = vmax.f32 %v792, %v1409
  %v1423 = vmax.f32 %v793, %v1410
  %v1424 = vmax.f32 %v794, %v1411
  %v1425 = vmax.f32 %v795, %v1412
  %v1426 = vmax.f32 %v796, %v1413
  %v1427 = vmax.f32 %v1414, 0.0
  %v1428 = vmax.f32 %v1415, 0.0
  %v1429 = vmax.f32 %v1416, 0.0
  %v1430 = vmax.f32 %v1417, 0.0
  %v1431 = vmax.f32 %v1418, 0.0
  %v1432 = vmax.f32 %v1419, 0.0
  %v1433 = vmax.f32 %v1420, 0.0
  %v1434 = vmax.f32 %v1421, 0.0
  %v1435 = vmax.f32 %v1422, 0.0
  %v1436 = vmax.f32 %v1423, 0.0
  %v1437 = vmax.f32 %v1424, 0.0
  %v1438 = vmax.f32 %v1425, 0.0
  %v1439 = vmax.f32 %v1426, 0.0
  %v1440 = vpack.c.bf16 %v1427, %v1427
  %v1441 = vpack.c.bf16 %v1428, %v1428
  %v1442 = vpack.c.bf16 %v1429, %v1429
  %v1443 = vpack.c.bf16 %v1430, %v1430
  %v1444 = vpack.c.bf16 %v1431, %v1431
  %v1445 = vpack.c.bf16 %v1432, %v1432
  %v1446 = vpack.c.bf16 %v1433, %v1433
  %v1447 = vpack.c.bf16 %v1434, %v1434
  %v1448 = vpack.c.bf16 %v1435, %v1435
  %v1449 = vpack.c.bf16 %v1436, %v1436
  %v1450 = vpack.c.bf16 %v1437, %v1437
  %v1451 = vpack.c.bf16 %v1438, %v1438
  %v1452 = vpack.c.bf16 %v1439, %v1439
  %1453 = vst [vmem:[%s7] sm:$0xf] %v1440
  %1454 = vst [vmem:[%s7 + $0x4] sm:$0xf] %v1441
  %1455 = vst [vmem:[%s7 + $0x8] sm:$0xf] %v1442
  %1456 = vst [vmem:[%s7 + $0xc] sm:$0xf] %v1443
  %1457 = vst [vmem:[%s7 + $0x10] sm:$0xf] %v1444
  %1458 = vst [vmem:[%s7 + $0x14] sm:$0xf] %v1445
  %1459 = vst [vmem:[%s7 + $0x18] sm:$0xf] %v1446
  %1460 = vst [vmem:[%s7 + $0x1c] sm:$0xf] %v1447
  %1461 = vst [vmem:[%s7 + $0x20] sm:$0xf] %v1448
  %1462 = vst [vmem:[%s7 + $0x24] sm:$0xf] %v1449
  %1463 = vst [vmem:[%s7 + $0x28] sm:$0xf] %v1450
  %1464 = vst [vmem:[%s7 + $0x2c] sm:$0xf] %v1451
  %1465 = vst [vmem:[%s7 + $0x30] sm:$0xf] %v1452
  // Predicated region
  $region30: #{cnn_pathmnist_forward.5} parent=0 // pred_check
    _
  $region31: #{cnn_pathmnist_forward.5} parent=0 // pred_check_branch
    %1467 = sbr.rel (0) target = $region33
  $region32: #{cnn_pathmnist_forward.5} parent=0 // pred_region
    _
  $region33: #{cnn_pathmnist_forward.5} parent=0 // pred_fallthru
    _
  // Predicated region
  $region34: #{cnn_pathmnist_forward.5} parent=0 // pred_check
    _
  $region35: #{cnn_pathmnist_forward.5} parent=0 // pred_check_branch
    %1469 = sbr.rel (0) target = $region37
  $region36: #{cnn_pathmnist_forward.5} parent=0 // pred_region
    _
  $region37: #{cnn_pathmnist_forward.5} parent=0 // pred_fallthru
    _

// kernel: cnn_pathmnist_forward.6
$region0: #{cnn_pathmnist_forward.6}
  #allocation0 [shape = 'u32[]', space=smem, size = 0x4, offset = 0x4, fixed_abs, tag = 'smem constant byte address 0x4 - core index']
  #allocation1 [shape = 'u32[72,128]{1,0:T(1,128)}', space=vmem, size = 0x9000, scoped, tag = 'internal scratch']
  %s0 = inlined_call_operand.vmem [shape: bf16[24,576], index: 0, kind: input, shape index: {}]
  %s1 = inlined_call_operand.vmem [shape: bf16[24,576], index: 1, kind: input, shape index: {}]
  %s2 = inlined_call_operand.vmem [shape: bf16[24,576], index: 2, kind: input, shape index: {}]
  %s3 = inlined_call_operand.vmem [shape: bf16[24,576], index: 3, kind: input, shape index: {}]
  %s4 = inlined_call_operand.vmem [shape: bf16[576,128], index: 4, kind: input, shape index: {}]
  %s5 = inlined_call_operand.vmem [shape: f32[1,128], index: 5, kind: input, shape index: {}]
  %s6 = inlined_call_operand.vmem [shape: f32[1,128], index: 6, kind: input, shape index: {}]
  %s7 = inlined_call_operand.vmem [shape: bf16[24,128], index: 7, kind: output, shape index: {}]
  %s8 = sld [smem:[#allocation0]]
  $region38: #{cnn_pathmnist_forward.6} parent=0
    _
  %s10 = ssub.s32 1, %s8
  %s11 = scalar_select 0, %s10, %s8
  // Predicated region
  $region2: #{cnn_pathmnist_forward.6} parent=0 // pred_check
    _
  $region3: #{cnn_pathmnist_forward.6} parent=0 // pred_check_branch
    %13 = sbr.rel (0) target = $region5
  $region4: #{cnn_pathmnist_forward.6} parent=0 // pred_region
    _
  $region5: #{cnn_pathmnist_forward.6} parent=0 // pred_fallthru
    _
  // Predicated region
  $region6: #{cnn_pathmnist_forward.6} parent=0 // pred_check
    _
  $region7: #{cnn_pathmnist_forward.6} parent=0 // pred_check_branch
    %15 = sbr.rel (0) target = $region9
  $region8: #{cnn_pathmnist_forward.6} parent=0 // pred_region
    _
  $region9: #{cnn_pathmnist_forward.6} parent=0 // pred_fallthru
    _
  // Predicated region
  $region10: #{cnn_pathmnist_forward.6} parent=0 // pred_check
    _
  $region11: #{cnn_pathmnist_forward.6} parent=0 // pred_check_branch
    %17 = sbr.rel (0) target = $region13
  $region12: #{cnn_pathmnist_forward.6} parent=0 // pred_region
    _
  $region13: #{cnn_pathmnist_forward.6} parent=0 // pred_fallthru
    _
  // Predicated region
  $region14: #{cnn_pathmnist_forward.6} parent=0 // pred_check
    _
  $region15: #{cnn_pathmnist_forward.6} parent=0 // pred_check_branch
    %19 = sbr.rel (0) target = $region17
  $region16: #{cnn_pathmnist_forward.6} parent=0 // pred_region
    _
  $region17: #{cnn_pathmnist_forward.6} parent=0 // pred_fallthru
    _
  // Predicated region
  $region18: #{cnn_pathmnist_forward.6} parent=0 // pred_check
    _
  $region19: #{cnn_pathmnist_forward.6} parent=0 // pred_check_branch
    %21 = sbr.rel (0) target = $region21
  $region20: #{cnn_pathmnist_forward.6} parent=0 // pred_region
    _
  $region21: #{cnn_pathmnist_forward.6} parent=0 // pred_fallthru
    _
  // Predicated region
  $region22: #{cnn_pathmnist_forward.6} parent=0 // pred_check
    _
  $region23: #{cnn_pathmnist_forward.6} parent=0 // pred_check_branch
    %23 = sbr.rel (0) target = $region25
  $region24: #{cnn_pathmnist_forward.6} parent=0 // pred_region
    _
  $region25: #{cnn_pathmnist_forward.6} parent=0 // pred_fallthru
    _
  // Predicated region
  $region26: #{cnn_pathmnist_forward.6} parent=0 // pred_check
    _
  $region27: #{cnn_pathmnist_forward.6} parent=0 // pred_check_branch
    %25 = sbr.rel (0) target = $region29
  $region28: #{cnn_pathmnist_forward.6} parent=0 // pred_region
    _
  $region29: #{cnn_pathmnist_forward.6} parent=0 // pred_fallthru
    _
  %v27 = vld [vmem:[%s4] sm:$0xf]
  %v28 = vld [vmem:[%s4 + $0x4] sm:$0xf]
  %v29 = vld [vmem:[%s4 + $0x8] sm:$0xf]
  %v30 = vld [vmem:[%s4 + $0xc] sm:$0xf]
  %v31 = vld [vmem:[%s4 + $0x10] sm:$0xf]
  %v32 = vld [vmem:[%s4 + $0x14] sm:$0xf]
  %v33 = vld [vmem:[%s4 + $0x18] sm:$0xf]
  %v34 = vld [vmem:[%s4 + $0x1c] sm:$0xf]
  %v35 = vld [vmem:[%s4 + $0x20] sm:$0xf]
  %v36 = vld [vmem:[%s4 + $0x24] sm:$0xf]
  %v37 = vld [vmem:[%s4 + $0x28] sm:$0xf]
  %v38 = vld [vmem:[%s4 + $0x2c] sm:$0xf]
  %v39 = vld [vmem:[%s4 + $0x30] sm:$0xf]
  %v40 = vld [vmem:[%s4 + $0x34] sm:$0xf]
  %v41 = vld [vmem:[%s4 + $0x38] sm:$0xf]
  %v42 = vld [vmem:[%s4 + $0x3c] sm:$0xf]
  %v43 = vld [vmem:[%s4 + $0x40] sm:$0xf]
  %v44 = vld [vmem:[%s4 + $0x44] sm:$0xf]
  %v45 = vld [vmem:[%s4 + $0x48] sm:$0xf]
  %v46 = vld [vmem:[%s4 + $0x4c] sm:$0xf]
  %v47 = vld [vmem:[%s4 + $0x50] sm:$0xf]
  %v48 = vld [vmem:[%s4 + $0x54] sm:$0xf]
  %v49 = vld [vmem:[%s4 + $0x58] sm:$0xf]
  %v50 = vld [vmem:[%s4 + $0x5c] sm:$0xf]
  %v51 = vld [vmem:[%s4 + $0x60] sm:$0xf]
  %v52 = vld [vmem:[%s4 + $0x64] sm:$0xf]
  %v53 = vld [vmem:[%s4 + $0x68] sm:$0xf]
  %v54 = vld [vmem:[%s4 + $0x6c] sm:$0xf]
  %v55 = vld [vmem:[%s4 + $0x70] sm:$0xf]
  %v56 = vld [vmem:[%s4 + $0x74] sm:$0xf]
  %v57 = vld [vmem:[%s4 + $0x78] sm:$0xf]
  %v58 = vld [vmem:[%s4 + $0x7c] sm:$0xf]
  %v59 = vld [vmem:[%s4 + $0x80] sm:$0xf]
  %v60 = vld [vmem:[%s4 + $0x84] sm:$0xf]
  %v61 = vld [vmem:[%s4 + $0x88] sm:$0xf]
  %v62 = vld [vmem:[%s4 + $0x8c] sm:$0xf]
  %v63 = vld [vmem:[%s4 + $0x90] sm:$0xf]
  %v64 = vld [vmem:[%s4 + $0x94] sm:$0xf]
  %v65 = vld [vmem:[%s4 + $0x98] sm:$0xf]
  %v66 = vld [vmem:[%s4 + $0x9c] sm:$0xf]
  %v67 = vld [vmem:[%s4 + $0xa0] sm:$0xf]
  %v68 = vld [vmem:[%s4 + $0xa4] sm:$0xf]
  %v69 = vld [vmem:[%s4 + $0xa8] sm:$0xf]
  %v70 = vld [vmem:[%s4 + $0xac] sm:$0xf]
  %v71 = vld [vmem:[%s4 + $0xb0] sm:$0xf]
  %v72 = vld [vmem:[%s4 + $0xb4] sm:$0xf]
  %v73 = vld [vmem:[%s4 + $0xb8] sm:$0xf]
  %v74 = vld [vmem:[%s4 + $0xbc] sm:$0xf]
  %v75 = vld [vmem:[%s4 + $0xc0] sm:$0xf]
  %v76 = vld [vmem:[%s4 + $0xc4] sm:$0xf]
  %v77 = vld [vmem:[%s4 + $0xc8] sm:$0xf]
  %v78 = vld [vmem:[%s4 + $0xcc] sm:$0xf]
  %v79 = vld [vmem:[%s4 + $0xd0] sm:$0xf]
  %v80 = vld [vmem:[%s4 + $0xd4] sm:$0xf]
  %v81 = vld [vmem:[%s4 + $0xd8] sm:$0xf]
  %v82 = vld [vmem:[%s4 + $0xdc] sm:$0xf]
  %v83 = vld [vmem:[%s4 + $0xe0] sm:$0xf]
  %v84 = vld [vmem:[%s4 + $0xe4] sm:$0xf]
  %v85 = vld [vmem:[%s4 + $0xe8] sm:$0xf]
  %v86 = vld [vmem:[%s4 + $0xec] sm:$0xf]
  %v87 = vld [vmem:[%s4 + $0xf0] sm:$0xf]
  %v88 = vld [vmem:[%s4 + $0xf4] sm:$0xf]
  %v89 = vld [vmem:[%s4 + $0xf8] sm:$0xf]
  %v90 = vld [vmem:[%s4 + $0xfc] sm:$0xf]
  %v91 = vld [vmem:[%s4 + $0x100] sm:$0xf]
  %v92 = vld [vmem:[%s4 + $0x104] sm:$0xf]
  %v93 = vld [vmem:[%s4 + $0x108] sm:$0xf]
  %v94 = vld [vmem:[%s4 + $0x10c] sm:$0xf]
  %v95 = vld [vmem:[%s4 + $0x110] sm:$0xf]
  %v96 = vld [vmem:[%s4 + $0x114] sm:$0xf]
  %v97 = vld [vmem:[%s4 + $0x118] sm:$0xf]
  %v98 = vld [vmem:[%s4 + $0x11c] sm:$0xf]
  %v99 = vld [vmem:[%s5] sm:$0x1]
  %v100 = vld [vmem:[%s6] sm:$0x1]
  %v101 = vld [vmem:[%s0] sm:$0xff]
  %v102 = vld [vmem:[%s0 + $0x8] sm:$0xff]
  %v103 = vld [vmem:[%s0 + $0x10] sm:$0xf]
  %v104 = vld [vmem:[%s0 + $0x14] sm:$0xff]
  %v105 = vld [vmem:[%s0 + $0x1c] sm:$0xff]
  %v106 = vld [vmem:[%s0 + $0x24] sm:$0xf]
  %v107 = vld [vmem:[%s0 + $0x28] sm:$0xff]
  %v108 = vld [vmem:[%s0 + $0x30] sm:$0xff]
  %v109 = vld [vmem:[%s0 + $0x38] sm:$0xf]
  %v119 = vunpack.c.l.b16 %v101
  %v120 = vunpack.c.h.b16 %v101
  %v121 = vunpack.c.l.b16 %v102
  %v122 = vunpack.c.h.b16 %v102
  %v123 = vunpack.c.l.b16 %v103
  %v124 = vunpack.c.l.b16 %v104
  %v125 = vunpack.c.h.b16 %v104
  %v126 = vunpack.c.l.b16 %v105
  %v127 = vunpack.c.h.b16 %v105
  %v128 = vunpack.c.l.b16 %v106
  %v129 = vunpack.c.l.b16 %v107
  %v130 = vunpack.c.h.b16 %v107
  %v131 = vunpack.c.l.b16 %v108
  %v132 = vunpack.c.h.b16 %v108
  %v133 = vunpack.c.l.b16 %v109
  %v134 = vpack.c.b16 %v124, %v119
  %v135 = vpack.c.b16 %v125, %v120
  %v136 = vpack.c.b16 %v126, %v121
  %v137 = vpack.c.b16 %v127, %v122
  %v138 = vpack.c.b16 %v128, %v123
  %v139 = vpack.c.b16 %v129, %v129
  %v140 = vpack.c.b16 %v130, %v130
  %v141 = vpack.c.b16 %v131, %v131
  %v142 = vpack.c.b16 %v132, %v132
  %v143 = vpack.c.b16 %v133, %v133
  %v224 = vunpack.c.l.b16 %v27
  %v225 = vunpack.c.l.b16 %v28
  %v226 = vunpack.c.l.b16 %v29
  %v227 = vunpack.c.l.b16 %v30
  %v228 = vunpack.c.l.b16 %v31
  %v229 = vunpack.c.l.b16 %v32
  %v230 = vunpack.c.l.b16 %v33
  %v231 = vunpack.c.l.b16 %v34
  %v232 = vunpack.c.l.b16 %v35
  %v233 = vunpack.c.l.b16 %v36
  %v234 = vunpack.c.l.b16 %v37
  %v235 = vunpack.c.l.b16 %v38
  %v236 = vunpack.c.l.b16 %v39
  %v237 = vunpack.c.l.b16 %v40
  %v238 = vunpack.c.l.b16 %v41
  %v239 = vunpack.c.l.b16 %v42
  %v240 = vunpack.c.l.b16 %v43
  %v241 = vunpack.c.l.b16 %v44
  %v242 = vunpack.c.l.b16 %v45
  %v243 = vunpack.c.l.b16 %v46
  %v244 = vunpack.c.l.b16 %v47
  %v245 = vunpack.c.l.b16 %v48
  %v246 = vunpack.c.l.b16 %v49
  %v247 = vunpack.c.l.b16 %v50
  %v248 = vunpack.c.l.b16 %v51
  %v249 = vunpack.c.l.b16 %v52
  %v250 = vunpack.c.l.b16 %v53
  %v251 = vunpack.c.l.b16 %v54
  %v252 = vunpack.c.l.b16 %v55
  %v253 = vunpack.c.l.b16 %v56
  %v254 = vunpack.c.l.b16 %v57
  %v255 = vunpack.c.l.b16 %v58
  %v256 = vunpack.c.l.b16 %v59
  %v257 = vunpack.c.l.b16 %v60
  %v258 = vunpack.c.l.b16 %v61
  %v259 = vunpack.c.l.b16 %v62
  %v260 = vunpack.c.l.b16 %v63
  %v261 = vunpack.c.l.b16 %v64
  %v262 = vunpack.c.l.b16 %v65
  %v263 = vunpack.c.l.b16 %v66
  %v264 = vunpack.c.l.b16 %v67
  %v265 = vunpack.c.l.b16 %v68
  %v266 = vunpack.c.l.b16 %v69
  %v267 = vunpack.c.l.b16 %v70
  %v268 = vunpack.c.l.b16 %v71
  %v269 = vunpack.c.l.b16 %v72
  %v270 = vunpack.c.l.b16 %v73
  %v271 = vunpack.c.l.b16 %v74
  %v272 = vunpack.c.l.b16 %v75
  %v273 = vunpack.c.l.b16 %v76
  %v274 = vunpack.c.l.b16 %v77
  %v275 = vunpack.c.l.b16 %v78
  %v276 = vunpack.c.l.b16 %v79
  %v277 = vunpack.c.l.b16 %v80
  %v278 = vunpack.c.l.b16 %v81
  %v279 = vunpack.c.l.b16 %v82
  %v280 = vunpack.c.l.b16 %v83
  %v281 = vunpack.c.l.b16 %v84
  %v282 = vunpack.c.l.b16 %v85
  %v283 = vunpack.c.l.b16 %v86
  %v284 = vunpack.c.l.b16 %v87
  %v285 = vunpack.c.l.b16 %v88
  %v286 = vunpack.c.l.b16 %v89
  %v287 = vunpack.c.l.b16 %v90
  %v288 = vunpack.c.l.b16 %v91
  %v289 = vunpack.c.l.b16 %v92
  %v290 = vunpack.c.l.b16 %v93
  %v291 = vunpack.c.l.b16 %v94
  %v292 = vunpack.c.l.b16 %v95
  %v293 = vunpack.c.l.b16 %v96
  %v294 = vunpack.c.l.b16 %v97
  %v295 = vunpack.c.l.b16 %v98
  %v296 = vpack.c.b16 %v225, %v224
  %v297 = vpack.c.b16 %v227, %v226
  %v298 = vpack.c.b16 %v229, %v228
  %v299 = vpack.c.b16 %v231, %v230
  %v300 = vpack.c.b16 %v233, %v232
  %v301 = vpack.c.b16 %v235, %v234
  %v302 = vpack.c.b16 %v237, %v236
  %v303 = vpack.c.b16 %v239, %v238
  %v304 = vpack.c.b16 %v241, %v240
  %v305 = vpack.c.b16 %v243, %v242
  %v306 = vpack.c.b16 %v245, %v244
  %v307 = vpack.c.b16 %v247, %v246
  %v308 = vpack.c.b16 %v249, %v248
  %v309 = vpack.c.b16 %v251, %v250
  %v310 = vpack.c.b16 %v253, %v252
  %v311 = vpack.c.b16 %v255, %v254
  %v312 = vpack.c.b16 %v257, %v256
  %v313 = vpack.c.b16 %v259, %v258
  %v314 = vpack.c.b16 %v261, %v260
  %v315 = vpack.c.b16 %v263, %v262
  %v316 = vpack.c.b16 %v265, %v264
  %v317 = vpack.c.b16 %v267, %v266
  %v318 = vpack.c.b16 %v269, %v268
  %v319 = vpack.c.b16 %v271, %v270
  %v320 = vpack.c.b16 %v273, %v272
  %v321 = vpack.c.b16 %v275, %v274
  %v322 = vpack.c.b16 %v277, %v276
  %v323 = vpack.c.b16 %v279, %v278
  %v324 = vpack.c.b16 %v281, %v280
  %v325 = vpack.c.b16 %v283, %v282
  %v326 = vpack.c.b16 %v285, %v284
  %v327 = vpack.c.b16 %v287, %v286
  %v328 = vpack.c.b16 %v289, %v288
  %v329 = vpack.c.b16 %v291, %v290
  %v330 = vpack.c.b16 %v293, %v292
  %v331 = vpack.c.b16 %v295, %v294
  %vm368 = vcmask 523264
  %v370 = vsel %vm368, %v138, 0
  %v373 = vsel %vm368, %v143, 0
  %375 = vmatpush.bf16.msra.mxu0 %v303
  %376 = vmatpush.bf16.msra.mxu0 %v302
  %377 = vmatpush.bf16.msra.mxu0 %v301
  %378 = vmatpush.bf16.msra.mxu0 %v300
  %379 = vmatpush.bf16.msra.mxu0 %v299
  %380 = vmatpush.bf16.msra.mxu0 %v298
  %381 = vmatpush.bf16.msra.mxu0 %v297
  %382 = vmatpush.bf16.msra.mxu0 %v296
  %383 = vmatmul.bf16.gmra.mxu0 %v134
  %v384 = vpop.f32.mrf.mxu0
  %v385 = vadd.f32 0.0, %v384
  %v386 = vpop.f32.mrf.mxu0
  %v387 = vadd.f32 0.0, %v386
  %388 = vmatmul.bf16.gmra.mxu0 %v139
  %v389 = vpop.f32.mrf.mxu0
  %v390 = vadd.f32 0.0, %v389
  %v391 = vpop.f32.mrf.mxu0
  %392 = vdwg.mxu0
  %393 = vmatpush.bf16.msra.mxu0 %v311
  %394 = vmatpush.bf16.msra.mxu0 %v310
  %395 = vmatpush.bf16.msra.mxu0 %v309
  %396 = vmatpush.bf16.msra.mxu0 %v308
  %397 = vmatpush.bf16.msra.mxu0 %v307
  %398 = vmatpush.bf16.msra.mxu0 %v306
  %399 = vmatpush.bf16.msra.mxu0 %v305
  %400 = vmatpush.bf16.msra.mxu0 %v304
  %401 = vmatmul.bf16.gmra.mxu0 %v135
  %v402 = vpop.f32.mrf.mxu0
  %v403 = vadd.f32 %v385, %v402
  %v404 = vpop.f32.mrf.mxu0
  %v405 = vadd.f32 %v387, %v404
  %406 = vmatmul.bf16.gmra.mxu0 %v140
  %v407 = vpop.f32.mrf.mxu0
  %v408 = vadd.f32 %v390, %v407
  %v409 = vpop.f32.mrf.mxu0
  %410 = vdwg.mxu0
  %411 = vmatpush.bf16.msra.mxu0 %v319
  %412 = vmatpush.bf16.msra.mxu0 %v318
  %413 = vmatpush.bf16.msra.mxu0 %v317
  %414 = vmatpush.bf16.msra.mxu0 %v316
  %415 = vmatpush.bf16.msra.mxu0 %v315
  %416 = vmatpush.bf16.msra.mxu0 %v314
  %417 = vmatpush.bf16.msra.mxu0 %v313
  %418 = vmatpush.bf16.msra.mxu0 %v312
  %419 = vmatmul.bf16.gmra.mxu0 %v136
  %v420 = vpop.f32.mrf.mxu0
  %v421 = vadd.f32 %v403, %v420
  %v422 = vpop.f32.mrf.mxu0
  %v423 = vadd.f32 %v405, %v422
  %424 = vmatmul.bf16.gmra.mxu0 %v141
  %v425 = vpop.f32.mrf.mxu0
  %v426 = vadd.f32 %v408, %v425
  %v427 = vpop.f32.mrf.mxu0
  %428 = vdwg.mxu0
  %429 = vmatpush.bf16.msra.mxu0 %v327
  %430 = vmatpush.bf16.msra.mxu0 %v326
  %431 = vmatpush.bf16.msra.mxu0 %v325
  %432 = vmatpush.bf16.msra.mxu0 %v324
  %433 = vmatpush.bf16.msra.mxu0 %v323
  %434 = vmatpush.bf16.msra.mxu0 %v322
  %435 = vmatpush.bf16.msra.mxu0 %v321
  %436 = vmatpush.bf16.msra.mxu0 %v320
  %437 = vmatmul.bf16.gmra.mxu0 %v137
  %v438 = vpop.f32.mrf.mxu0
  %v439 = vadd.f32 %v421, %v438
  %v440 = vpop.f32.mrf.mxu0
  %v441 = vadd.f32 %v423, %v440
  %442 = vmatmul.bf16.gmra.mxu0 %v142
  %v443 = vpop.f32.mrf.mxu0
  %v444 = vadd.f32 %v426, %v443
  %v445 = vpop.f32.mrf.mxu0
  %446 = vdwg.mxu0
  %447 = vmatpush.bf16.msra.mxu0 0
  %448 = vmatpush.bf16.msra.mxu0 0
  %449 = vmatpush.bf16.msra.mxu0 0
  %450 = vmatpush.bf16.msra.mxu0 0
  %451 = vmatpush.bf16.msra.mxu0 %v331
  %452 = vmatpush.bf16.msra.mxu0 %v330
  %453 = vmatpush.bf16.msra.mxu0 %v329
  %454 = vmatpush.bf16.msra.mxu0 %v328
  %455 = vmatmul.bf16.gmra.mxu0 %v370
  %v456 = vpop.f32.mrf.mxu0
  %v457 = vadd.f32 %v439, %v456
  %v458 = vpop.f32.mrf.mxu0
  %v459 = vadd.f32 %v441, %v458
  %460 = vmatmul.bf16.gmra.mxu0 %v373
  %v461 = vpop.f32.mrf.mxu0
  %v462 = vadd.f32 %v444, %v461
  %v463 = vpop.f32.mrf.mxu0
  %464 = vdwg.mxu0
  %v466 = vperm.slane %v99, 0
  %v468 = vmul.f32 %v457, %v466
  %v469 = vmul.f32 %v459, %v466
  %v470 = vmul.f32 %v462, %v466
  %v472 = vperm.slane %v100, 0
  %v474 = vadd.f32 %v468, %v472
  %v475 = vadd.f32 %v469, %v472
  %v476 = vadd.f32 %v470, %v472
  %v477 = vld [vmem:[%s1] sm:$0xff]
  %v478 = vld [vmem:[%s1 + $0x8] sm:$0xff]
  %v479 = vld [vmem:[%s1 + $0x10] sm:$0xf]
  %v480 = vld [vmem:[%s1 + $0x14] sm:$0xff]
  %v481 = vld [vmem:[%s1 + $0x1c] sm:$0xff]
  %v482 = vld [vmem:[%s1 + $0x24] sm:$0xf]
  %v483 = vld [vmem:[%s1 + $0x28] sm:$0xff]
  %v484 = vld [vmem:[%s1 + $0x30] sm:$0xff]
  %v485 = vld [vmem:[%s1 + $0x38] sm:$0xf]
  %v495 = vunpack.c.l.b16 %v477
  %v496 = vunpack.c.h.b16 %v477
  %v497 = vunpack.c.l.b16 %v478
  %v498 = vunpack.c.h.b16 %v478
  %v499 = vunpack.c.l.b16 %v479
  %v500 = vunpack.c.l.b16 %v480
  %v501 = vunpack.c.h.b16 %v480
  %v502 = vunpack.c.l.b16 %v481
  %v503 = vunpack.c.h.b16 %v481
  %v504 = vunpack.c.l.b16 %v482
  %v505 = vunpack.c.l.b16 %v483
  %v506 = vunpack.c.h.b16 %v483
  %v507 = vunpack.c.l.b16 %v484
  %v508 = vunpack.c.h.b16 %v484
  %v509 = vunpack.c.l.b16 %v485
  %v510 = vpack.c.b16 %v500, %v495
  %v511 = vpack.c.b16 %v501, %v496
  %v512 = vpack.c.b16 %v502, %v497
  %v513 = vpack.c.b16 %v503, %v498
  %v514 = vpack.c.b16 %v504, %v499
  %v515 = vpack.c.b16 %v505, %v505
  %v516 = vpack.c.b16 %v506, %v506
  %v517 = vpack.c.b16 %v507, %v507
  %v518 = vpack.c.b16 %v508, %v508
  %v519 = vpack.c.b16 %v509, %v509
  %v529 = vsel %vm368, %v514, 0
  %v532 = vsel %vm368, %v519, 0
  %534 = vmatpush.bf16.msra.mxu0 %v303
  %535 = vmatpush.bf16.msra.mxu0 %v302
  %536 = vmatpush.bf16.msra.mxu0 %v301
  %537 = vmatpush.bf16.msra.mxu0 %v300
  %538 = vmatpush.bf16.msra.mxu0 %v299
  %539 = vmatpush.bf16.msra.mxu0 %v298
  %540 = vmatpush.bf16.msra.mxu0 %v297
  %541 = vmatpush.bf16.msra.mxu0 %v296
  %542 = vmatmul.bf16.gmra.mxu0 %v510
  %v543 = vpop.f32.mrf.mxu0
  %v544 = vadd.f32 0.0, %v543
  %v545 = vpop.f32.mrf.mxu0
  %v546 = vadd.f32 0.0, %v545
  %547 = vmatmul.bf16.gmra.mxu0 %v515
  %v548 = vpop.f32.mrf.mxu0
  %v549 = vadd.f32 0.0, %v548
  %v550 = vpop.f32.mrf.mxu0
  %551 = vdwg.mxu0
  %552 = vmatpush.bf16.msra.mxu0 %v311
  %553 = vmatpush.bf16.msra.mxu0 %v310
  %554 = vmatpush.bf16.msra.mxu0 %v309
  %555 = vmatpush.bf16.msra.mxu0 %v308
  %556 = vmatpush.bf16.msra.mxu0 %v307
  %557 = vmatpush.bf16.msra.mxu0 %v306
  %558 = vmatpush.bf16.msra.mxu0 %v305
  %559 = vmatpush.bf16.msra.mxu0 %v304
  %560 = vmatmul.bf16.gmra.mxu0 %v511
  %v561 = vpop.f32.mrf.mxu0
  %v562 = vadd.f32 %v544, %v561
  %v563 = vpop.f32.mrf.mxu0
  %v564 = vadd.f32 %v546, %v563
  %565 = vmatmul.bf16.gmra.mxu0 %v516
  %v566 = vpop.f32.mrf.mxu0
  %v567 = vadd.f32 %v549, %v566
  %v568 = vpop.f32.mrf.mxu0
  %569 = vdwg.mxu0
  %570 = vmatpush.bf16.msra.mxu0 %v319
  %571 = vmatpush.bf16.msra.mxu0 %v318
  %572 = vmatpush.bf16.msra.mxu0 %v317
  %573 = vmatpush.bf16.msra.mxu0 %v316
  %574 = vmatpush.bf16.msra.mxu0 %v315
  %575 = vmatpush.bf16.msra.mxu0 %v314
  %576 = vmatpush.bf16.msra.mxu0 %v313
  %577 = vmatpush.bf16.msra.mxu0 %v312
  %578 = vmatmul.bf16.gmra.mxu0 %v512
  %v579 = vpop.f32.mrf.mxu0
  %v580 = vadd.f32 %v562, %v579
  %v581 = vpop.f32.mrf.mxu0
  %v582 = vadd.f32 %v564, %v581
  %583 = vmatmul.bf16.gmra.mxu0 %v517
  %v584 = vpop.f32.mrf.mxu0
  %v585 = vadd.f32 %v567, %v584
  %v586 = vpop.f32.mrf.mxu0
  %587 = vdwg.mxu0
  %588 = vmatpush.bf16.msra.mxu0 %v327
  %589 = vmatpush.bf16.msra.mxu0 %v326
  %590 = vmatpush.bf16.msra.mxu0 %v325
  %591 = vmatpush.bf16.msra.mxu0 %v324
  %592 = vmatpush.bf16.msra.mxu0 %v323
  %593 = vmatpush.bf16.msra.mxu0 %v322
  %594 = vmatpush.bf16.msra.mxu0 %v321
  %595 = vmatpush.bf16.msra.mxu0 %v320
  %596 = vmatmul.bf16.gmra.mxu0 %v513
  %v597 = vpop.f32.mrf.mxu0
  %v598 = vadd.f32 %v580, %v597
  %v599 = vpop.f32.mrf.mxu0
  %v600 = vadd.f32 %v582, %v599
  %601 = vmatmul.bf16.gmra.mxu0 %v518
  %v602 = vpop.f32.mrf.mxu0
  %v603 = vadd.f32 %v585, %v602
  %v604 = vpop.f32.mrf.mxu0
  %605 = vdwg.mxu0
  %606 = vmatpush.bf16.msra.mxu0 0
  %607 = vmatpush.bf16.msra.mxu0 0
  %608 = vmatpush.bf16.msra.mxu0 0
  %609 = vmatpush.bf16.msra.mxu0 0
  %610 = vmatpush.bf16.msra.mxu0 %v331
  %611 = vmatpush.bf16.msra.mxu0 %v330
  %612 = vmatpush.bf16.msra.mxu0 %v329
  %613 = vmatpush.bf16.msra.mxu0 %v328
  %614 = vmatmul.bf16.gmra.mxu0 %v529
  %v615 = vpop.f32.mrf.mxu0
  %v616 = vadd.f32 %v598, %v615
  %v617 = vpop.f32.mrf.mxu0
  %v618 = vadd.f32 %v600, %v617
  %619 = vmatmul.bf16.gmra.mxu0 %v532
  %v620 = vpop.f32.mrf.mxu0
  %v621 = vadd.f32 %v603, %v620
  %v622 = vpop.f32.mrf.mxu0
  %623 = vdwg.mxu0
  %v624 = vmul.f32 %v616, %v466
  %v625 = vmul.f32 %v618, %v466
  %v626 = vmul.f32 %v621, %v466
  %v627 = vadd.f32 %v624, %v472
  %v628 = vadd.f32 %v625, %v472
  %v629 = vadd.f32 %v626, %v472
  %v630 = vmax.f32 %v474, %v627
  %v631 = vmax.f32 %v475, %v628
  %v632 = vmax.f32 %v476, %v629
  %v633 = vld [vmem:[%s2] sm:$0xff]
  %v634 = vld [vmem:[%s2 + $0x8] sm:$0xff]
  %v635 = vld [vmem:[%s2 + $0x10] sm:$0xf]
  %v636 = vld [vmem:[%s2 + $0x14] sm:$0xff]
  %v637 = vld [vmem:[%s2 + $0x1c] sm:$0xff]
  %v638 = vld [vmem:[%s2 + $0x24] sm:$0xf]
  %v639 = vld [vmem:[%s2 + $0x28] sm:$0xff]
  %v640 = vld [vmem:[%s2 + $0x30] sm:$0xff]
  %v641 = vld [vmem:[%s2 + $0x38] sm:$0xf]
  %v651 = vunpack.c.l.b16 %v633
  %v652 = vunpack.c.h.b16 %v633
  %v653 = vunpack.c.l.b16 %v634
  %v654 = vunpack.c.h.b16 %v634
  %v655 = vunpack.c.l.b16 %v635
  %v656 = vunpack.c.l.b16 %v636
  %v657 = vunpack.c.h.b16 %v636
  %v658 = vunpack.c.l.b16 %v637
  %v659 = vunpack.c.h.b16 %v637
  %v660 = vunpack.c.l.b16 %v638
  %v661 = vunpack.c.l.b16 %v639
  %v662 = vunpack.c.h.b16 %v639
  %v663 = vunpack.c.l.b16 %v640
  %v664 = vunpack.c.h.b16 %v640
  %v665 = vunpack.c.l.b16 %v641
  %v666 = vpack.c.b16 %v656, %v651
  %v667 = vpack.c.b16 %v657, %v652
  %v668 = vpack.c.b16 %v658, %v653
  %v669 = vpack.c.b16 %v659, %v654
  %v670 = vpack.c.b16 %v660, %v655
  %v671 = vpack.c.b16 %v661, %v661
  %v672 = vpack.c.b16 %v662, %v662
  %v673 = vpack.c.b16 %v663, %v663
  %v674 = vpack.c.b16 %v664, %v664
  %v675 = vpack.c.b16 %v665, %v665
  %v685 = vsel %vm368, %v670, 0
  %v688 = vsel %vm368, %v675, 0
  %690 = vmatpush.bf16.msra.mxu0 %v303
  %691 = vmatpush.bf16.msra.mxu0 %v302
  %692 = vmatpush.bf16.msra.mxu0 %v301
  %693 = vmatpush.bf16.msra.mxu0 %v300
  %694 = vmatpush.bf16.msra.mxu0 %v299
  %695 = vmatpush.bf16.msra.mxu0 %v298
  %696 = vmatpush.bf16.msra.mxu0 %v297
  %697 = vmatpush.bf16.msra.mxu0 %v296
  %698 = vmatmul.bf16.gmra.mxu0 %v666
  %v699 = vpop.f32.mrf.mxu0
  %v700 = vadd.f32 0.0, %v699
  %v701 = vpop.f32.mrf.mxu0
  %v702 = vadd.f32 0.0, %v701
  %703 = vmatmul.bf16.gmra.mxu0 %v671
  %v704 = vpop.f32.mrf.mxu0
  %v705 = vadd.f32 0.0, %v704
  %v706 = vpop.f32.mrf.mxu0
  %707 = vdwg.mxu0
  %708 = vmatpush.bf16.msra.mxu0 %v311
  %709 = vmatpush.bf16.msra.mxu0 %v310
  %710 = vmatpush.bf16.msra.mxu0 %v309
  %711 = vmatpush.bf16.msra.mxu0 %v308
  %712 = vmatpush.bf16.msra.mxu0 %v307
  %713 = vmatpush.bf16.msra.mxu0 %v306
  %714 = vmatpush.bf16.msra.mxu0 %v305
  %715 = vmatpush.bf16.msra.mxu0 %v304
  %716 = vmatmul.bf16.gmra.mxu0 %v667
  %v717 = vpop.f32.mrf.mxu0
  %v718 = vadd.f32 %v700, %v717
  %v719 = vpop.f32.mrf.mxu0
  %v720 = vadd.f32 %v702, %v719
  %721 = vmatmul.bf16.gmra.mxu0 %v672
  %v722 = vpop.f32.mrf.mxu0
  %v723 = vadd.f32 %v705, %v722
  %v724 = vpop.f32.mrf.mxu0
  %725 = vdwg.mxu0
  %726 = vmatpush.bf16.msra.mxu0 %v319
  %727 = vmatpush.bf16.msra.mxu0 %v318
  %728 = vmatpush.bf16.msra.mxu0 %v317
  %729 = vmatpush.bf16.msra.mxu0 %v316
  %730 = vmatpush.bf16.msra.mxu0 %v315
  %731 = vmatpush.bf16.msra.mxu0 %v314
  %732 = vmatpush.bf16.msra.mxu0 %v313
  %733 = vmatpush.bf16.msra.mxu0 %v312
  %734 = vmatmul.bf16.gmra.mxu0 %v668
  %v735 = vpop.f32.mrf.mxu0
  %v736 = vadd.f32 %v718, %v735
  %v737 = vpop.f32.mrf.mxu0
  %v738 = vadd.f32 %v720, %v737
  %739 = vmatmul.bf16.gmra.mxu0 %v673
  %v740 = vpop.f32.mrf.mxu0
  %v741 = vadd.f32 %v723, %v740
  %v742 = vpop.f32.mrf.mxu0
  %743 = vdwg.mxu0
  %744 = vmatpush.bf16.msra.mxu0 %v327
  %745 = vmatpush.bf16.msra.mxu0 %v326
  %746 = vmatpush.bf16.msra.mxu0 %v325
  %747 = vmatpush.bf16.msra.mxu0 %v324
  %748 = vmatpush.bf16.msra.mxu0 %v323
  %749 = vmatpush.bf16.msra.mxu0 %v322
  %750 = vmatpush.bf16.msra.mxu0 %v321
  %751 = vmatpush.bf16.msra.mxu0 %v320
  %752 = vmatmul.bf16.gmra.mxu0 %v669
  %v753 = vpop.f32.mrf.mxu0
  %v754 = vadd.f32 %v736, %v753
  %v755 = vpop.f32.mrf.mxu0
  %v756 = vadd.f32 %v738, %v755
  %757 = vmatmul.bf16.gmra.mxu0 %v674
  %v758 = vpop.f32.mrf.mxu0
  %v759 = vadd.f32 %v741, %v758
  %v760 = vpop.f32.mrf.mxu0
  %761 = vdwg.mxu0
  %762 = vmatpush.bf16.msra.mxu0 0
  %763 = vmatpush.bf16.msra.mxu0 0
  %764 = vmatpush.bf16.msra.mxu0 0
  %765 = vmatpush.bf16.msra.mxu0 0
  %766 = vmatpush.bf16.msra.mxu0 %v331
  %767 = vmatpush.bf16.msra.mxu0 %v330
  %768 = vmatpush.bf16.msra.mxu0 %v329
  %769 = vmatpush.bf16.msra.mxu0 %v328
  %770 = vmatmul.bf16.gmra.mxu0 %v685
  %v771 = vpop.f32.mrf.mxu0
  %v772 = vadd.f32 %v754, %v771
  %v773 = vpop.f32.mrf.mxu0
  %v774 = vadd.f32 %v756, %v773
  %775 = vmatmul.bf16.gmra.mxu0 %v688
  %v776 = vpop.f32.mrf.mxu0
  %v777 = vadd.f32 %v759, %v776
  %v778 = vpop.f32.mrf.mxu0
  %779 = vdwg.mxu0
  %v780 = vmul.f32 %v772, %v466
  %v781 = vmul.f32 %v774, %v466
  %v782 = vmul.f32 %v777, %v466
  %v783 = vadd.f32 %v780, %v472
  %v784 = vadd.f32 %v781, %v472
  %v785 = vadd.f32 %v782, %v472
  %v786 = vld [vmem:[%s3] sm:$0xff]
  %v787 = vld [vmem:[%s3 + $0x8] sm:$0xff]
  %v788 = vld [vmem:[%s3 + $0x10] sm:$0xf]
  %v789 = vld [vmem:[%s3 + $0x14] sm:$0xff]
  %v790 = vld [vmem:[%s3 + $0x1c] sm:$0xff]
  %v791 = vld [vmem:[%s3 + $0x24] sm:$0xf]
  %v792 = vld [vmem:[%s3 + $0x28] sm:$0xff]
  %v793 = vld [vmem:[%s3 + $0x30] sm:$0xff]
  %v794 = vld [vmem:[%s3 + $0x38] sm:$0xf]
  %v804 = vunpack.c.l.b16 %v786
  %v805 = vunpack.c.h.b16 %v786
  %v806 = vunpack.c.l.b16 %v787
  %v807 = vunpack.c.h.b16 %v787
  %v808 = vunpack.c.l.b16 %v788
  %v809 = vunpack.c.l.b16 %v789
  %v810 = vunpack.c.h.b16 %v789
  %v811 = vunpack.c.l.b16 %v790
  %v812 = vunpack.c.h.b16 %v790
  %v813 = vunpack.c.l.b16 %v791
  %v814 = vunpack.c.l.b16 %v792
  %v815 = vunpack.c.h.b16 %v792
  %v816 = vunpack.c.l.b16 %v793
  %v817 = vunpack.c.h.b16 %v793
  %v818 = vunpack.c.l.b16 %v794
  %v819 = vpack.c.b16 %v809, %v804
  %v820 = vpack.c.b16 %v810, %v805
  %v821 = vpack.c.b16 %v811, %v806
  %v822 = vpack.c.b16 %v812, %v807
  %v823 = vpack.c.b16 %v813, %v808
  %v824 = vpack.c.b16 %v814, %v814
  %v825 = vpack.c.b16 %v815, %v815
  %v826 = vpack.c.b16 %v816, %v816
  %v827 = vpack.c.b16 %v817, %v817
  %v828 = vpack.c.b16 %v818, %v818
  %v838 = vsel %vm368, %v823, 0
  %v841 = vsel %vm368, %v828, 0
  %843 = vmatpush.bf16.msra.mxu0 %v303
  %844 = vmatpush.bf16.msra.mxu0 %v302
  %845 = vmatpush.bf16.msra.mxu0 %v301
  %846 = vmatpush.bf16.msra.mxu0 %v300
  %847 = vmatpush.bf16.msra.mxu0 %v299
  %848 = vmatpush.bf16.msra.mxu0 %v298
  %849 = vmatpush.bf16.msra.mxu0 %v297
  %850 = vmatpush.bf16.msra.mxu0 %v296
  %851 = vmatmul.bf16.gmra.mxu0 %v819
  %v852 = vpop.f32.mrf.mxu0
  %v853 = vadd.f32 0.0, %v852
  %v854 = vpop.f32.mrf.mxu0
  %v855 = vadd.f32 0.0, %v854
  %856 = vmatmul.bf16.gmra.mxu0 %v824
  %v857 = vpop.f32.mrf.mxu0
  %v858 = vadd.f32 0.0, %v857
  %v859 = vpop.f32.mrf.mxu0
  %860 = vdwg.mxu0
  %861 = vmatpush.bf16.msra.mxu0 %v311
  %862 = vmatpush.bf16.msra.mxu0 %v310
  %863 = vmatpush.bf16.msra.mxu0 %v309
  %864 = vmatpush.bf16.msra.mxu0 %v308
  %865 = vmatpush.bf16.msra.mxu0 %v307
  %866 = vmatpush.bf16.msra.mxu0 %v306
  %867 = vmatpush.bf16.msra.mxu0 %v305
  %868 = vmatpush.bf16.msra.mxu0 %v304
  %869 = vmatmul.bf16.gmra.mxu0 %v820
  %v870 = vpop.f32.mrf.mxu0
  %v871 = vadd.f32 %v853, %v870
  %v872 = vpop.f32.mrf.mxu0
  %v873 = vadd.f32 %v855, %v872
  %874 = vmatmul.bf16.gmra.mxu0 %v825
  %v875 = vpop.f32.mrf.mxu0
  %v876 = vadd.f32 %v858, %v875
  %v877 = vpop.f32.mrf.mxu0
  %878 = vdwg.mxu0
  %879 = vmatpush.bf16.msra.mxu0 %v319
  %880 = vmatpush.bf16.msra.mxu0 %v318
  %881 = vmatpush.bf16.msra.mxu0 %v317
  %882 = vmatpush.bf16.msra.mxu0 %v316
  %883 = vmatpush.bf16.msra.mxu0 %v315
  %884 = vmatpush.bf16.msra.mxu0 %v314
  %885 = vmatpush.bf16.msra.mxu0 %v313
  %886 = vmatpush.bf16.msra.mxu0 %v312
  %887 = vmatmul.bf16.gmra.mxu0 %v821
  %v888 = vpop.f32.mrf.mxu0
  %v889 = vadd.f32 %v871, %v888
  %v890 = vpop.f32.mrf.mxu0
  %v891 = vadd.f32 %v873, %v890
  %892 = vmatmul.bf16.gmra.mxu0 %v826
  %v893 = vpop.f32.mrf.mxu0
  %v894 = vadd.f32 %v876, %v893
  %v895 = vpop.f32.mrf.mxu0
  %896 = vdwg.mxu0
  %897 = vmatpush.bf16.msra.mxu0 %v327
  %898 = vmatpush.bf16.msra.mxu0 %v326
  %899 = vmatpush.bf16.msra.mxu0 %v325
  %900 = vmatpush.bf16.msra.mxu0 %v324
  %901 = vmatpush.bf16.msra.mxu0 %v323
  %902 = vmatpush.bf16.msra.mxu0 %v322
  %903 = vmatpush.bf16.msra.mxu0 %v321
  %904 = vmatpush.bf16.msra.mxu0 %v320
  %905 = vmatmul.bf16.gmra.mxu0 %v822
  %v906 = vpop.f32.mrf.mxu0
  %v907 = vadd.f32 %v889, %v906
  %v908 = vpop.f32.mrf.mxu0
  %v909 = vadd.f32 %v891, %v908
  %910 = vmatmul.bf16.gmra.mxu0 %v827
  %v911 = vpop.f32.mrf.mxu0
  %v912 = vadd.f32 %v894, %v911
  %v913 = vpop.f32.mrf.mxu0
  %914 = vdwg.mxu0
  %915 = vmatpush.bf16.msra.mxu0 0
  %916 = vmatpush.bf16.msra.mxu0 0
  %917 = vmatpush.bf16.msra.mxu0 0
  %918 = vmatpush.bf16.msra.mxu0 0
  %919 = vmatpush.bf16.msra.mxu0 %v331
  %920 = vmatpush.bf16.msra.mxu0 %v330
  %921 = vmatpush.bf16.msra.mxu0 %v329
  %922 = vmatpush.bf16.msra.mxu0 %v328
  %923 = vmatmul.bf16.gmra.mxu0 %v838
  %v924 = vpop.f32.mrf.mxu0
  %v925 = vadd.f32 %v907, %v924
  %v926 = vpop.f32.mrf.mxu0
  %v927 = vadd.f32 %v909, %v926
  %928 = vmatmul.bf16.gmra.mxu0 %v841
  %v929 = vpop.f32.mrf.mxu0
  %v930 = vadd.f32 %v912, %v929
  %v931 = vpop.f32.mrf.mxu0
  %932 = vdwg.mxu0
  %v933 = vmul.f32 %v925, %v466
  %v934 = vmul.f32 %v927, %v466
  %v935 = vmul.f32 %v930, %v466
  %v936 = vadd.f32 %v933, %v472
  %v937 = vadd.f32 %v934, %v472
  %v938 = vadd.f32 %v935, %v472
  %v939 = vmax.f32 %v783, %v936
  %v940 = vmax.f32 %v784, %v937
  %v941 = vmax.f32 %v785, %v938
  %v942 = vmax.f32 %v630, %v939
  %v943 = vmax.f32 %v631, %v940
  %v944 = vmax.f32 %v632, %v941
  %v945 = vmax.f32 %v942, 0.0
  %v946 = vmax.f32 %v943, 0.0
  %v947 = vmax.f32 %v944, 0.0
  %v948 = vpack.c.bf16 %v945, %v945
  %v949 = vpack.c.bf16 %v946, %v946
  %v950 = vpack.c.bf16 %v947, %v947
  %951 = vst [vmem:[%s7] sm:$0xf] %v948
  %952 = vst [vmem:[%s7 + $0x4] sm:$0xf] %v949
  %953 = vst [vmem:[%s7 + $0x8] sm:$0xf] %v950
  // Predicated region
  $region30: #{cnn_pathmnist_forward.6} parent=0 // pred_check
    _
  $region31: #{cnn_pathmnist_forward.6} parent=0 // pred_check_branch
    %955 = sbr.rel (0) target = $region33
  $region32: #{cnn_pathmnist_forward.6} parent=0 // pred_region
    _
  $region33: #{cnn_pathmnist_forward.6} parent=0 // pred_fallthru
    _
  // Predicated region
  $region34: #{cnn_pathmnist_forward.6} parent=0 // pred_check
    _
  $region35: #{cnn_pathmnist_forward.6} parent=0 // pred_check_branch
    %957 = sbr.rel (0) target = $region37
  $region36: #{cnn_pathmnist_forward.6} parent=0 // pred_region
    _
  $region37: #{cnn_pathmnist_forward.6} parent=0 // pred_fallthru
    _

// kernel: cnn_pathmnist_forward.7
$region0: #{cnn_pathmnist_forward.7}
  #allocation0 [shape = 'u32[]', space=smem, size = 0x4, offset = 0x4, fixed_abs, tag = 'smem constant byte address 0x4 - core index']
  #allocation1 [shape = 'u32[72,128]{1,0:T(1,128)}', space=vmem, size = 0x9000, scoped, tag = 'internal scratch']
  %s0 = inlined_call_operand.vmem [shape: bf16[8,1152], index: 0, kind: input, shape index: {}]
  %s1 = inlined_call_operand.vmem [shape: bf16[1152,128], index: 1, kind: input, shape index: {}]
  %s2 = inlined_call_operand.vmem [shape: f32[1,128], index: 2, kind: input, shape index: {}]
  %s3 = inlined_call_operand.vmem [shape: bf16[128,128], index: 3, kind: input, shape index: {}]
  %s4 = inlined_call_operand.vmem [shape: f32[1,128], index: 4, kind: input, shape index: {}]
  %s5 = inlined_call_operand.vmem [shape: f32[8,128], index: 5, kind: output, shape index: {}]
  %s6 = sld [smem:[#allocation0]]
  $region30: #{cnn_pathmnist_forward.7} parent=0
    _
  %s8 = ssub.s32 1, %s6
  %s9 = scalar_select 0, %s8, %s6
  // Predicated region
  $region2: #{cnn_pathmnist_forward.7} parent=0 // pred_check
    _
  $region3: #{cnn_pathmnist_forward.7} parent=0 // pred_check_branch
    %11 = sbr.rel (0) target = $region5
  $region4: #{cnn_pathmnist_forward.7} parent=0 // pred_region
    _
  $region5: #{cnn_pathmnist_forward.7} parent=0 // pred_fallthru
    _
  // Predicated region
  $region6: #{cnn_pathmnist_forward.7} parent=0 // pred_check
    _
  $region7: #{cnn_pathmnist_forward.7} parent=0 // pred_check_branch
    %13 = sbr.rel (0) target = $region9
  $region8: #{cnn_pathmnist_forward.7} parent=0 // pred_region
    _
  $region9: #{cnn_pathmnist_forward.7} parent=0 // pred_fallthru
    _
  // Predicated region
  $region10: #{cnn_pathmnist_forward.7} parent=0 // pred_check
    _
  $region11: #{cnn_pathmnist_forward.7} parent=0 // pred_check_branch
    %15 = sbr.rel (0) target = $region13
  $region12: #{cnn_pathmnist_forward.7} parent=0 // pred_region
    _
  $region13: #{cnn_pathmnist_forward.7} parent=0 // pred_fallthru
    _
  // Predicated region
  $region14: #{cnn_pathmnist_forward.7} parent=0 // pred_check
    _
  $region15: #{cnn_pathmnist_forward.7} parent=0 // pred_check_branch
    %17 = sbr.rel (0) target = $region17
  $region16: #{cnn_pathmnist_forward.7} parent=0 // pred_region
    _
  $region17: #{cnn_pathmnist_forward.7} parent=0 // pred_fallthru
    _
  // Predicated region
  $region18: #{cnn_pathmnist_forward.7} parent=0 // pred_check
    _
  $region19: #{cnn_pathmnist_forward.7} parent=0 // pred_check_branch
    %19 = sbr.rel (0) target = $region21
  $region20: #{cnn_pathmnist_forward.7} parent=0 // pred_region
    _
  $region21: #{cnn_pathmnist_forward.7} parent=0 // pred_fallthru
    _
  %v20 = vld [vmem:[%s0] sm:$0xff]
  %v21 = vld [vmem:[%s0 + $0x8] sm:$0xff]
  %v22 = vld [vmem:[%s0 + $0x10] sm:$0xff]
  %v23 = vld [vmem:[%s0 + $0x18] sm:$0xff]
  %v24 = vld [vmem:[%s0 + $0x20] sm:$0xf]
  %v25 = vld [vmem:[%s1] sm:$0xf]
  %v26 = vld [vmem:[%s1 + $0x4] sm:$0xf]
  %v27 = vld [vmem:[%s1 + $0x8] sm:$0xf]
  %v28 = vld [vmem:[%s1 + $0xc] sm:$0xf]
  %v29 = vld [vmem:[%s1 + $0x10] sm:$0xf]
  %v30 = vld [vmem:[%s1 + $0x14] sm:$0xf]
  %v31 = vld [vmem:[%s1 + $0x18] sm:$0xf]
  %v32 = vld [vmem:[%s1 + $0x1c] sm:$0xf]
  %v33 = vld [vmem:[%s1 + $0x20] sm:$0xf]
  %v34 = vld [vmem:[%s1 + $0x24] sm:$0xf]
  %v35 = vld [vmem:[%s1 + $0x28] sm:$0xf]
  %v36 = vld [vmem:[%s1 + $0x2c] sm:$0xf]
  %v37 = vld [vmem:[%s1 + $0x30] sm:$0xf]
  %v38 = vld [vmem:[%s1 + $0x34] sm:$0xf]
  %v39 = vld [vmem:[%s1 + $0x38] sm:$0xf]
  %v40 = vld [vmem:[%s1 + $0x3c] sm:$0xf]
  %v41 = vld [vmem:[%s1 + $0x40] sm:$0xf]
  %v42 = vld [vmem:[%s1 + $0x44] sm:$0xf]
  %v43 = vld [vmem:[%s1 + $0x48] sm:$0xf]
  %v44 = vld [vmem:[%s1 + $0x4c] sm:$0xf]
  %v45 = vld [vmem:[%s1 + $0x50] sm:$0xf]
  %v46 = vld [vmem:[%s1 + $0x54] sm:$0xf]
  %v47 = vld [vmem:[%s1 + $0x58] sm:$0xf]
  %v48 = vld [vmem:[%s1 + $0x5c] sm:$0xf]
  %v49 = vld [vmem:[%s1 + $0x60] sm:$0xf]
  %v50 = vld [vmem:[%s1 + $0x64] sm:$0xf]
  %v51 = vld [vmem:[%s1 + $0x68] sm:$0xf]
  %v52 = vld [vmem:[%s1 + $0x6c] sm:$0xf]
  %v53 = vld [vmem:[%s1 + $0x70] sm:$0xf]
  %v54 = vld [vmem:[%s1 + $0x74] sm:$0xf]
  %v55 = vld [vmem:[%s1 + $0x78] sm:$0xf]
  %v56 = vld [vmem:[%s1 + $0x7c] sm:$0xf]
  %v57 = vld [vmem:[%s1 + $0x80] sm:$0xf]
  %v58 = vld [vmem:[%s1 + $0x84] sm:$0xf]
  %v59 = vld [vmem:[%s1 + $0x88] sm:$0xf]
  %v60 = vld [vmem:[%s1 + $0x8c] sm:$0xf]
  %v61 = vld [vmem:[%s1 + $0x90] sm:$0xf]
  %v62 = vld [vmem:[%s1 + $0x94] sm:$0xf]
  %v63 = vld [vmem:[%s1 + $0x98] sm:$0xf]
  %v64 = vld [vmem:[%s1 + $0x9c] sm:$0xf]
  %v65 = vld [vmem:[%s1 + $0xa0] sm:$0xf]
  %v66 = vld [vmem:[%s1 + $0xa4] sm:$0xf]
  %v67 = vld [vmem:[%s1 + $0xa8] sm:$0xf]
  %v68 = vld [vmem:[%s1 + $0xac] sm:$0xf]
  %v69 = vld [vmem:[%s1 + $0xb0] sm:$0xf]
  %v70 = vld [vmem:[%s1 + $0xb4] sm:$0xf]
  %v71 = vld [vmem:[%s1 + $0xb8] sm:$0xf]
  %v72 = vld [vmem:[%s1 + $0xbc] sm:$0xf]
  %v73 = vld [vmem:[%s1 + $0xc0] sm:$0xf]
  %v74 = vld [vmem:[%s1 + $0xc4] sm:$0xf]
  %v75 = vld [vmem:[%s1 + $0xc8] sm:$0xf]
  %v76 = vld [vmem:[%s1 + $0xcc] sm:$0xf]
  %v77 = vld [vmem:[%s1 + $0xd0] sm:$0xf]
  %v78 = vld [vmem:[%s1 + $0xd4] sm:$0xf]
  %v79 = vld [vmem:[%s1 + $0xd8] sm:$0xf]
  %v80 = vld [vmem:[%s1 + $0xdc] sm:$0xf]
  %v81 = vld [vmem:[%s1 + $0xe0] sm:$0xf]
  %v82 = vld [vmem:[%s1 + $0xe4] sm:$0xf]
  %v83 = vld [vmem:[%s1 + $0xe8] sm:$0xf]
  %v84 = vld [vmem:[%s1 + $0xec] sm:$0xf]
  %v85 = vld [vmem:[%s1 + $0xf0] sm:$0xf]
  %v86 = vld [vmem:[%s1 + $0xf4] sm:$0xf]
  %v87 = vld [vmem:[%s1 + $0xf8] sm:$0xf]
  %v88 = vld [vmem:[%s1 + $0xfc] sm:$0xf]
  %v89 = vld [vmem:[%s1 + $0x100] sm:$0xf]
  %v90 = vld [vmem:[%s1 + $0x104] sm:$0xf]
  %v91 = vld [vmem:[%s1 + $0x108] sm:$0xf]
  %v92 = vld [vmem:[%s1 + $0x10c] sm:$0xf]
  %v93 = vld [vmem:[%s1 + $0x110] sm:$0xf]
  %v94 = vld [vmem:[%s1 + $0x114] sm:$0xf]
  %v95 = vld [vmem:[%s1 + $0x118] sm:$0xf]
  %v96 = vld [vmem:[%s1 + $0x11c] sm:$0xf]
  %v97 = vld [vmem:[%s1 + $0x120] sm:$0xf]
  %v98 = vld [vmem:[%s1 + $0x124] sm:$0xf]
  %v99 = vld [vmem:[%s1 + $0x128] sm:$0xf]
  %v100 = vld [vmem:[%s1 + $0x12c] sm:$0xf]
  %v101 = vld [vmem:[%s1 + $0x130] sm:$0xf]
  %v102 = vld [vmem:[%s1 + $0x134] sm:$0xf]
  %v103 = vld [vmem:[%s1 + $0x138] sm:$0xf]
  %v104 = vld [vmem:[%s1 + $0x13c] sm:$0xf]
  %v105 = vld [vmem:[%s1 + $0x140] sm:$0xf]
  %v106 = vld [vmem:[%s1 + $0x144] sm:$0xf]
  %v107 = vld [vmem:[%s1 + $0x148] sm:$0xf]
  %v108 = vld [vmem:[%s1 + $0x14c] sm:$0xf]
  %v109 = vld [vmem:[%s1 + $0x150] sm:$0xf]
  %v110 = vld [vmem:[%s1 + $0x154] sm:$0xf]
  %v111 = vld [vmem:[%s1 + $0x158] sm:$0xf]
  %v112 = vld [vmem:[%s1 + $0x15c] sm:$0xf]
  %v113 = vld [vmem:[%s1 + $0x160] sm:$0xf]
  %v114 = vld [vmem:[%s1 + $0x164] sm:$0xf]
  %v115 = vld [vmem:[%s1 + $0x168] sm:$0xf]
  %v116 = vld [vmem:[%s1 + $0x16c] sm:$0xf]
  %v117 = vld [vmem:[%s1 + $0x170] sm:$0xf]
  %v118 = vld [vmem:[%s1 + $0x174] sm:$0xf]
  %v119 = vld [vmem:[%s1 + $0x178] sm:$0xf]
  %v120 = vld [vmem:[%s1 + $0x17c] sm:$0xf]
  %v121 = vld [vmem:[%s1 + $0x180] sm:$0xf]
  %v122 = vld [vmem:[%s1 + $0x184] sm:$0xf]
  %v123 = vld [vmem:[%s1 + $0x188] sm:$0xf]
  %v124 = vld [vmem:[%s1 + $0x18c] sm:$0xf]
  %v125 = vld [vmem:[%s1 + $0x190] sm:$0xf]
  %v126 = vld [vmem:[%s1 + $0x194] sm:$0xf]
  %v127 = vld [vmem:[%s1 + $0x198] sm:$0xf]
  %v128 = vld [vmem:[%s1 + $0x19c] sm:$0xf]
  %v129 = vld [vmem:[%s1 + $0x1a0] sm:$0xf]
  %v130 = vld [vmem:[%s1 + $0x1a4] sm:$0xf]
  %v131 = vld [vmem:[%s1 + $0x1a8] sm:$0xf]
  %v132 = vld [vmem:[%s1 + $0x1ac] sm:$0xf]
  %v133 = vld [vmem:[%s1 + $0x1b0] sm:$0xf]
  %v134 = vld [vmem:[%s1 + $0x1b4] sm:$0xf]
  %v135 = vld [vmem:[%s1 + $0x1b8] sm:$0xf]
  %v136 = vld [vmem:[%s1 + $0x1bc] sm:$0xf]
  %v137 = vld [vmem:[%s1 + $0x1c0] sm:$0xf]
  %v138 = vld [vmem:[%s1 + $0x1c4] sm:$0xf]
  %v139 = vld [vmem:[%s1 + $0x1c8] sm:$0xf]
  %v140 = vld [vmem:[%s1 + $0x1cc] sm:$0xf]
  %v141 = vld [vmem:[%s1 + $0x1d0] sm:$0xf]
  %v142 = vld [vmem:[%s1 + $0x1d4] sm:$0xf]
  %v143 = vld [vmem:[%s1 + $0x1d8] sm:$0xf]
  %v144 = vld [vmem:[%s1 + $0x1dc] sm:$0xf]
  %v145 = vld [vmem:[%s1 + $0x1e0] sm:$0xf]
  %v146 = vld [vmem:[%s1 + $0x1e4] sm:$0xf]
  %v147 = vld [vmem:[%s1 + $0x1e8] sm:$0xf]
  %v148 = vld [vmem:[%s1 + $0x1ec] sm:$0xf]
  %v149 = vld [vmem:[%s1 + $0x1f0] sm:$0xf]
  %v150 = vld [vmem:[%s1 + $0x1f4] sm:$0xf]
  %v151 = vld [vmem:[%s1 + $0x1f8] sm:$0xf]
  %v152 = vld [vmem:[%s1 + $0x1fc] sm:$0xf]
  %v153 = vld [vmem:[%s1 + $0x200] sm:$0xf]
  %v154 = vld [vmem:[%s1 + $0x204] sm:$0xf]
  %v155 = vld [vmem:[%s1 + $0x208] sm:$0xf]
  %v156 = vld [vmem:[%s1 + $0x20c] sm:$0xf]
  %v157 = vld [vmem:[%s1 + $0x210] sm:$0xf]
  %v158 = vld [vmem:[%s1 + $0x214] sm:$0xf]
  %v159 = vld [vmem:[%s1 + $0x218] sm:$0xf]
  %v160 = vld [vmem:[%s1 + $0x21c] sm:$0xf]
  %v161 = vld [vmem:[%s1 + $0x220] sm:$0xf]
  %v162 = vld [vmem:[%s1 + $0x224] sm:$0xf]
  %v163 = vld [vmem:[%s1 + $0x228] sm:$0xf]
  %v164 = vld [vmem:[%s1 + $0x22c] sm:$0xf]
  %v165 = vld [vmem:[%s1 + $0x230] sm:$0xf]
  %v166 = vld [vmem:[%s1 + $0x234] sm:$0xf]
  %v167 = vld [vmem:[%s1 + $0x238] sm:$0xf]
  %v168 = vld [vmem:[%s1 + $0x23c] sm:$0xf]
  %v169 = vld [vmem:[%s2] sm:$0x1]
  %v171 = vperm.slane %v169, 0
  %v178 = vunpack.c.l.b16 %v20
  %v179 = vunpack.c.h.b16 %v20
  %v180 = vunpack.c.l.b16 %v21
  %v181 = vunpack.c.h.b16 %v21
  %v182 = vunpack.c.l.b16 %v22
  %v183 = vunpack.c.h.b16 %v22
  %v184 = vunpack.c.l.b16 %v23
  %v185 = vunpack.c.h.b16 %v23
  %v186 = vunpack.c.l.b16 %v24
  %v187 = vpack.c.b16 %v178, %v178
  %v188 = vpack.c.b16 %v179, %v179
  %v189 = vpack.c.b16 %v180, %v180
  %v190 = vpack.c.b16 %v181, %v181
  %v191 = vpack.c.b16 %v182, %v182
  %v192 = vpack.c.b16 %v183, %v183
  %v193 = vpack.c.b16 %v184, %v184
  %v194 = vpack.c.b16 %v185, %v185
  %v195 = vpack.c.b16 %v186, %v186
  %v349 = vunpack.c.l.b16 %v25
  %v350 = vunpack.c.l.b16 %v26
  %v351 = vunpack.c.l.b16 %v27
  %v352 = vunpack.c.l.b16 %v28
  %v353 = vunpack.c.l.b16 %v29
  %v354 = vunpack.c.l.b16 %v30
  %v355 = vunpack.c.l.b16 %v31
  %v356 = vunpack.c.l.b16 %v32
  %v357 = vunpack.c.l.b16 %v33
  %v358 = vunpack.c.l.b16 %v34
  %v359 = vunpack.c.l.b16 %v35
  %v360 = vunpack.c.l.b16 %v36
  %v361 = vunpack.c.l.b16 %v37
  %v362 = vunpack.c.l.b16 %v38
  %v363 = vunpack.c.l.b16 %v39
  %v364 = vunpack.c.l.b16 %v40
  %v365 = vunpack.c.l.b16 %v41
  %v366 = vunpack.c.l.b16 %v42
  %v367 = vunpack.c.l.b16 %v43
  %v368 = vunpack.c.l.b16 %v44
  %v369 = vunpack.c.l.b16 %v45
  %v370 = vunpack.c.l.b16 %v46
  %v371 = vunpack.c.l.b16 %v47
  %v372 = vunpack.c.l.b16 %v48
  %v373 = vunpack.c.l.b16 %v49
  %v374 = vunpack.c.l.b16 %v50
  %v375 = vunpack.c.l.b16 %v51
  %v376 = vunpack.c.l.b16 %v52
  %v377 = vunpack.c.l.b16 %v53
  %v378 = vunpack.c.l.b16 %v54
  %v379 = vunpack.c.l.b16 %v55
  %v380 = vunpack.c.l.b16 %v56
  %v381 = vunpack.c.l.b16 %v57
  %v382 = vunpack.c.l.b16 %v58
  %v383 = vunpack.c.l.b16 %v59
  %v384 = vunpack.c.l.b16 %v60
  %v385 = vunpack.c.l.b16 %v61
  %v386 = vunpack.c.l.b16 %v62
  %v387 = vunpack.c.l.b16 %v63
  %v388 = vunpack.c.l.b16 %v64
  %v389 = vunpack.c.l.b16 %v65
  %v390 = vunpack.c.l.b16 %v66
  %v391 = vunpack.c.l.b16 %v67
  %v392 = vunpack.c.l.b16 %v68
  %v393 = vunpack.c.l.b16 %v69
  %v394 = vunpack.c.l.b16 %v70
  %v395 = vunpack.c.l.b16 %v71
  %v396 = vunpack.c.l.b16 %v72
  %v397 = vunpack.c.l.b16 %v73
  %v398 = vunpack.c.l.b16 %v74
  %v399 = vunpack.c.l.b16 %v75
  %v400 = vunpack.c.l.b16 %v76
  %v401 = vunpack.c.l.b16 %v77
  %v402 = vunpack.c.l.b16 %v78
  %v403 = vunpack.c.l.b16 %v79
  %v404 = vunpack.c.l.b16 %v80
  %v405 = vunpack.c.l.b16 %v81
  %v406 = vunpack.c.l.b16 %v82
  %v407 = vunpack.c.l.b16 %v83
  %v408 = vunpack.c.l.b16 %v84
  %v409 = vunpack.c.l.b16 %v85
  %v410 = vunpack.c.l.b16 %v86
  %v411 = vunpack.c.l.b16 %v87
  %v412 = vunpack.c.l.b16 %v88
  %v413 = vunpack.c.l.b16 %v89
  %v414 = vunpack.c.l.b16 %v90
  %v415 = vunpack.c.l.b16 %v91
  %v416 = vunpack.c.l.b16 %v92
  %v417 = vunpack.c.l.b16 %v93
  %v418 = vunpack.c.l.b16 %v94
  %v419 = vunpack.c.l.b16 %v95
  %v420 = vunpack.c.l.b16 %v96
  %v421 = vunpack.c.l.b16 %v97
  %v422 = vunpack.c.l.b16 %v98
  %v423 = vunpack.c.l.b16 %v99
  %v424 = vunpack.c.l.b16 %v100
  %v425 = vunpack.c.l.b16 %v101
  %v426 = vunpack.c.l.b16 %v102
  %v427 = vunpack.c.l.b16 %v103
  %v428 = vunpack.c.l.b16 %v104
  %v429 = vunpack.c.l.b16 %v105
  %v430 = vunpack.c.l.b16 %v106
  %v431 = vunpack.c.l.b16 %v107
  %v432 = vunpack.c.l.b16 %v108
  %v433 = vunpack.c.l.b16 %v109
  %v434 = vunpack.c.l.b16 %v110
  %v435 = vunpack.c.l.b16 %v111
  %v436 = vunpack.c.l.b16 %v112
  %v437 = vunpack.c.l.b16 %v113
  %v438 = vunpack.c.l.b16 %v114
  %v439 = vunpack.c.l.b16 %v115
  %v440 = vunpack.c.l.b16 %v116
  %v441 = vunpack.c.l.b16 %v117
  %v442 = vunpack.c.l.b16 %v118
  %v443 = vunpack.c.l.b16 %v119
  %v444 = vunpack.c.l.b16 %v120
  %v445 = vunpack.c.l.b16 %v121
  %v446 = vunpack.c.l.b16 %v122
  %v447 = vunpack.c.l.b16 %v123
  %v448 = vunpack.c.l.b16 %v124
  %v449 = vunpack.c.l.b16 %v125
  %v450 = vunpack.c.l.b16 %v126
  %v451 = vunpack.c.l.b16 %v127
  %v452 = vunpack.c.l.b16 %v128
  %v453 = vunpack.c.l.b16 %v129
  %v454 = vunpack.c.l.b16 %v130
  %v455 = vunpack.c.l.b16 %v131
  %v456 = vunpack.c.l.b16 %v132
  %v457 = vunpack.c.l.b16 %v133
  %v458 = vunpack.c.l.b16 %v134
  %v459 = vunpack.c.l.b16 %v135
  %v460 = vunpack.c.l.b16 %v136
  %v461 = vunpack.c.l.b16 %v137
  %v462 = vunpack.c.l.b16 %v138
  %v463 = vunpack.c.l.b16 %v139
  %v464 = vunpack.c.l.b16 %v140
  %v465 = vunpack.c.l.b16 %v141
  %v466 = vunpack.c.l.b16 %v142
  %v467 = vunpack.c.l.b16 %v143
  %v468 = vunpack.c.l.b16 %v144
  %v469 = vunpack.c.l.b16 %v145
  %v470 = vunpack.c.l.b16 %v146
  %v471 = vunpack.c.l.b16 %v147
  %v472 = vunpack.c.l.b16 %v148
  %v473 = vunpack.c.l.b16 %v149
  %v474 = vunpack.c.l.b16 %v150
  %v475 = vunpack.c.l.b16 %v151
  %v476 = vunpack.c.l.b16 %v152
  %v477 = vunpack.c.l.b16 %v153
  %v478 = vunpack.c.l.b16 %v154
  %v479 = vunpack.c.l.b16 %v155
  %v480 = vunpack.c.l.b16 %v156
  %v481 = vunpack.c.l.b16 %v157
  %v482 = vunpack.c.l.b16 %v158
  %v483 = vunpack.c.l.b16 %v159
  %v484 = vunpack.c.l.b16 %v160
  %v485 = vunpack.c.l.b16 %v161
  %v486 = vunpack.c.l.b16 %v162
  %v487 = vunpack.c.l.b16 %v163
  %v488 = vunpack.c.l.b16 %v164
  %v489 = vunpack.c.l.b16 %v165
  %v490 = vunpack.c.l.b16 %v166
  %v491 = vunpack.c.l.b16 %v167
  %v492 = vunpack.c.l.b16 %v168
  %v493 = vpack.c.b16 %v350, %v349
  %v494 = vpack.c.b16 %v352, %v351
  %v495 = vpack.c.b16 %v354, %v353
  %v496 = vpack.c.b16 %v356, %v355
  %v497 = vpack.c.b16 %v358, %v357
  %v498 = vpack.c.b16 %v360, %v359
  %v499 = vpack.c.b16 %v362, %v361
  %v500 = vpack.c.b16 %v364, %v363
  %v501 = vpack.c.b16 %v366, %v365
  %v502 = vpack.c.b16 %v368, %v367
  %v503 = vpack.c.b16 %v370, %v369
  %v504 = vpack.c.b16 %v372, %v371
  %v505 = vpack.c.b16 %v374, %v373
  %v506 = vpack.c.b16 %v376, %v375
  %v507 = vpack.c.b16 %v378, %v377
  %v508 = vpack.c.b16 %v380, %v379
  %v509 = vpack.c.b16 %v382, %v381
  %v510 = vpack.c.b16 %v384, %v383
  %v511 = vpack.c.b16 %v386, %v385
  %v512 = vpack.c.b16 %v388, %v387
  %v513 = vpack.c.b16 %v390, %v389
  %v514 = vpack.c.b16 %v392, %v391
  %v515 = vpack.c.b16 %v394, %v393
  %v516 = vpack.c.b16 %v396, %v395
  %v517 = vpack.c.b16 %v398, %v397
  %v518 = vpack.c.b16 %v400, %v399
  %v519 = vpack.c.b16 %v402, %v401
  %v520 = vpack.c.b16 %v404, %v403
  %v521 = vpack.c.b16 %v406, %v405
  %v522 = vpack.c.b16 %v408, %v407
  %v523 = vpack.c.b16 %v410, %v409
  %v524 = vpack.c.b16 %v412, %v411
  %v525 = vpack.c.b16 %v414, %v413
  %v526 = vpack.c.b16 %v416, %v415
  %v527 = vpack.c.b16 %v418, %v417
  %v528 = vpack.c.b16 %v420, %v419
  %v529 = vpack.c.b16 %v422, %v421
  %v530 = vpack.c.b16 %v424, %v423
  %v531 = vpack.c.b16 %v426, %v425
  %v532 = vpack.c.b16 %v428, %v427
  %v533 = vpack.c.b16 %v430, %v429
  %v534 = vpack.c.b16 %v432, %v431
  %v535 = vpack.c.b16 %v434, %v433
  %v536 = vpack.c.b16 %v436, %v435
  %v537 = vpack.c.b16 %v438, %v437
  %v538 = vpack.c.b16 %v440, %v439
  %v539 = vpack.c.b16 %v442, %v441
  %v540 = vpack.c.b16 %v444, %v443
  %v541 = vpack.c.b16 %v446, %v445
  %v542 = vpack.c.b16 %v448, %v447
  %v543 = vpack.c.b16 %v450, %v449
  %v544 = vpack.c.b16 %v452, %v451
  %v545 = vpack.c.b16 %v454, %v453
  %v546 = vpack.c.b16 %v456, %v455
  %v547 = vpack.c.b16 %v458, %v457
  %v548 = vpack.c.b16 %v460, %v459
  %v549 = vpack.c.b16 %v462, %v461
  %v550 = vpack.c.b16 %v464, %v463
  %v551 = vpack.c.b16 %v466, %v465
  %v552 = vpack.c.b16 %v468, %v467
  %v553 = vpack.c.b16 %v470, %v469
  %v554 = vpack.c.b16 %v472, %v471
  %v555 = vpack.c.b16 %v474, %v473
  %v556 = vpack.c.b16 %v476, %v475
  %v557 = vpack.c.b16 %v478, %v477
  %v558 = vpack.c.b16 %v480, %v479
  %v559 = vpack.c.b16 %v482, %v481
  %v560 = vpack.c.b16 %v484, %v483
  %v561 = vpack.c.b16 %v486, %v485
  %v562 = vpack.c.b16 %v488, %v487
  %v563 = vpack.c.b16 %v490, %v489
  %v564 = vpack.c.b16 %v492, %v491
  %637 = vmatpush.bf16.msra.mxu0 %v500
  %638 = vmatpush.bf16.msra.mxu0 %v499
  %639 = vmatpush.bf16.msra.mxu0 %v498
  %640 = vmatpush.bf16.msra.mxu0 %v497
  %641 = vmatpush.bf16.msra.mxu0 %v496
  %642 = vmatpush.bf16.msra.mxu0 %v495
  %643 = vmatpush.bf16.msra.mxu0 %v494
  %644 = vmatpush.bf16.msra.mxu0 %v493
  %645 = vmatmul.bf16.gmra.mxu0 %v187
  %v646 = vpop.f32.mrf.mxu0
  %v647 = vadd.f32 %v171, %v646
  %v648 = vpop.f32.mrf.mxu0
  %649 = vdwg.mxu0
  %650 = vmatpush.bf16.msra.mxu0 %v508
  %651 = vmatpush.bf16.msra.mxu0 %v507
  %652 = vmatpush.bf16.msra.mxu0 %v506
  %653 = vmatpush.bf16.msra.mxu0 %v505
  %654 = vmatpush.bf16.msra.mxu0 %v504
  %655 = vmatpush.bf16.msra.mxu0 %v503
  %656 = vmatpush.bf16.msra.mxu0 %v502
  %657 = vmatpush.bf16.msra.mxu0 %v501
  %658 = vmatmul.bf16.gmra.mxu0 %v188
  %v659 = vpop.f32.mrf.mxu0
  %v660 = vadd.f32 %v647, %v659
  %v661 = vpop.f32.mrf.mxu0
  %662 = vdwg.mxu0
  %663 = vmatpush.bf16.msra.mxu0 %v516
  %664 = vmatpush.bf16.msra.mxu0 %v515
  %665 = vmatpush.bf16.msra.mxu0 %v514
  %666 = vmatpush.bf16.msra.mxu0 %v513
  %667 = vmatpush.bf16.msra.mxu0 %v512
  %668 = vmatpush.bf16.msra.mxu0 %v511
  %669 = vmatpush.bf16.msra.mxu0 %v510
  %670 = vmatpush.bf16.msra.mxu0 %v509
  %671 = vmatmul.bf16.gmra.mxu0 %v189
  %v672 = vpop.f32.mrf.mxu0
  %v673 = vadd.f32 %v660, %v672
  %v674 = vpop.f32.mrf.mxu0
  %675 = vdwg.mxu0
  %676 = vmatpush.bf16.msra.mxu0 %v524
  %677 = vmatpush.bf16.msra.mxu0 %v523
  %678 = vmatpush.bf16.msra.mxu0 %v522
  %679 = vmatpush.bf16.msra.mxu0 %v521
  %680 = vmatpush.bf16.msra.mxu0 %v520
  %681 = vmatpush.bf16.msra.mxu0 %v519
  %682 = vmatpush.bf16.msra.mxu0 %v518
  %683 = vmatpush.bf16.msra.mxu0 %v517
  %684 = vmatmul.bf16.gmra.mxu0 %v190
  %v685 = vpop.f32.mrf.mxu0
  %v686 = vadd.f32 %v673, %v685
  %v687 = vpop.f32.mrf.mxu0
  %688 = vdwg.mxu0
  %689 = vmatpush.bf16.msra.mxu0 %v532
  %690 = vmatpush.bf16.msra.mxu0 %v531
  %691 = vmatpush.bf16.msra.mxu0 %v530
  %692 = vmatpush.bf16.msra.mxu0 %v529
  %693 = vmatpush.bf16.msra.mxu0 %v528
  %694 = vmatpush.bf16.msra.mxu0 %v527
  %695 = vmatpush.bf16.msra.mxu0 %v526
  %696 = vmatpush.bf16.msra.mxu0 %v525
  %697 = vmatmul.bf16.gmra.mxu0 %v191
  %v698 = vpop.f32.mrf.mxu0
  %v699 = vadd.f32 %v686, %v698
  %v700 = vpop.f32.mrf.mxu0
  %701 = vdwg.mxu0
  %702 = vmatpush.bf16.msra.mxu0 %v540
  %703 = vmatpush.bf16.msra.mxu0 %v539
  %704 = vmatpush.bf16.msra.mxu0 %v538
  %705 = vmatpush.bf16.msra.mxu0 %v537
  %706 = vmatpush.bf16.msra.mxu0 %v536
  %707 = vmatpush.bf16.msra.mxu0 %v535
  %708 = vmatpush.bf16.msra.mxu0 %v534
  %709 = vmatpush.bf16.msra.mxu0 %v533
  %710 = vmatmul.bf16.gmra.mxu0 %v192
  %v711 = vpop.f32.mrf.mxu0
  %v712 = vadd.f32 %v699, %v711
  %v713 = vpop.f32.mrf.mxu0
  %714 = vdwg.mxu0
  %715 = vmatpush.bf16.msra.mxu0 %v548
  %716 = vmatpush.bf16.msra.mxu0 %v547
  %717 = vmatpush.bf16.msra.mxu0 %v546
  %718 = vmatpush.bf16.msra.mxu0 %v545
  %719 = vmatpush.bf16.msra.mxu0 %v544
  %720 = vmatpush.bf16.msra.mxu0 %v543
  %721 = vmatpush.bf16.msra.mxu0 %v542
  %722 = vmatpush.bf16.msra.mxu0 %v541
  %723 = vmatmul.bf16.gmra.mxu0 %v193
  %v724 = vpop.f32.mrf.mxu0
  %v725 = vadd.f32 %v712, %v724
  %v726 = vpop.f32.mrf.mxu0
  %727 = vdwg.mxu0
  %728 = vmatpush.bf16.msra.mxu0 %v556
  %729 = vmatpush.bf16.msra.mxu0 %v555
  %730 = vmatpush.bf16.msra.mxu0 %v554
  %731 = vmatpush.bf16.msra.mxu0 %v553
  %732 = vmatpush.bf16.msra.mxu0 %v552
  %733 = vmatpush.bf16.msra.mxu0 %v551
  %734 = vmatpush.bf16.msra.mxu0 %v550
  %735 = vmatpush.bf16.msra.mxu0 %v549
  %736 = vmatmul.bf16.gmra.mxu0 %v194
  %v737 = vpop.f32.mrf.mxu0
  %v738 = vadd.f32 %v725, %v737
  %v739 = vpop.f32.mrf.mxu0
  %740 = vdwg.mxu0
  %741 = vmatpush.bf16.msra.mxu0 %v564
  %742 = vmatpush.bf16.msra.mxu0 %v563
  %743 = vmatpush.bf16.msra.mxu0 %v562
  %744 = vmatpush.bf16.msra.mxu0 %v561
  %745 = vmatpush.bf16.msra.mxu0 %v560
  %746 = vmatpush.bf16.msra.mxu0 %v559
  %747 = vmatpush.bf16.msra.mxu0 %v558
  %748 = vmatpush.bf16.msra.mxu0 %v557
  %749 = vmatmul.bf16.gmra.mxu0 %v195
  %v750 = vpop.f32.mrf.mxu0
  %v751 = vadd.f32 %v738, %v750
  %v752 = vpop.f32.mrf.mxu0
  %753 = vdwg.mxu0
  %v754 = vmax.f32 %v751, 0.0
  %v755 = vpack.c.bf16 %v754, %v754
  %v756 = vld [vmem:[%s3] sm:$0xf]
  %v757 = vld [vmem:[%s3 + $0x4] sm:$0xf]
  %v758 = vld [vmem:[%s3 + $0x8] sm:$0xf]
  %v759 = vld [vmem:[%s3 + $0xc] sm:$0xf]
  %v760 = vld [vmem:[%s3 + $0x10] sm:$0xf]
  %v761 = vld [vmem:[%s3 + $0x14] sm:$0xf]
  %v762 = vld [vmem:[%s3 + $0x18] sm:$0xf]
  %v763 = vld [vmem:[%s3 + $0x1c] sm:$0xf]
  %v764 = vld [vmem:[%s3 + $0x20] sm:$0xf]
  %v765 = vld [vmem:[%s3 + $0x24] sm:$0xf]
  %v766 = vld [vmem:[%s3 + $0x28] sm:$0xf]
  %v767 = vld [vmem:[%s3 + $0x2c] sm:$0xf]
  %v768 = vld [vmem:[%s3 + $0x30] sm:$0xf]
  %v769 = vld [vmem:[%s3 + $0x34] sm:$0xf]
  %v770 = vld [vmem:[%s3 + $0x38] sm:$0xf]
  %v771 = vld [vmem:[%s3 + $0x3c] sm:$0xf]
  %v772 = vld [vmem:[%s4] sm:$0x1]
  %v774 = vperm.slane %v772, 0
  %v792 = vunpack.c.l.b16 %v756
  %v793 = vunpack.c.l.b16 %v757
  %v794 = vunpack.c.l.b16 %v758
  %v795 = vunpack.c.l.b16 %v759
  %v796 = vunpack.c.l.b16 %v760
  %v797 = vunpack.c.l.b16 %v761
  %v798 = vunpack.c.l.b16 %v762
  %v799 = vunpack.c.l.b16 %v763
  %v800 = vunpack.c.l.b16 %v764
  %v801 = vunpack.c.l.b16 %v765
  %v802 = vunpack.c.l.b16 %v766
  %v803 = vunpack.c.l.b16 %v767
  %v804 = vunpack.c.l.b16 %v768
  %v805 = vunpack.c.l.b16 %v769
  %v806 = vunpack.c.l.b16 %v770
  %v807 = vunpack.c.l.b16 %v771
  %v808 = vpack.c.b16 %v793, %v792
  %v809 = vpack.c.b16 %v795, %v794
  %v810 = vpack.c.b16 %v797, %v796
  %v811 = vpack.c.b16 %v799, %v798
  %v812 = vpack.c.b16 %v801, %v800
  %v813 = vpack.c.b16 %v803, %v802
  %v814 = vpack.c.b16 %v805, %v804
  %v815 = vpack.c.b16 %v807, %v806
  %824 = vmatpush.bf16.msra.mxu0 %v815
  %825 = vmatpush.bf16.msra.mxu0 %v814
  %826 = vmatpush.bf16.msra.mxu0 %v813
  %827 = vmatpush.bf16.msra.mxu0 %v812
  %828 = vmatpush.bf16.msra.mxu0 %v811
  %829 = vmatpush.bf16.msra.mxu0 %v810
  %830 = vmatpush.bf16.msra.mxu0 %v809
  %831 = vmatpush.bf16.msra.mxu0 %v808
  %832 = vmatmul.bf16.gmra.mxu0 %v755
  %v833 = vpop.f32.mrf.mxu0
  %v834 = vadd.f32 %v774, %v833
  %v835 = vpop.f32.mrf.mxu0
  %836 = vdwg.mxu0
  %837 = vmax.xlane.f32.xlu0 %v834
  %v838 = vpop.xlane.xlu0 %837
  %v839 = vsub.f32 %v834, %v838
  %v840 = vmul.f32 %v839, 1.442695
  %v841 = vpow.pop %v840
  %842 = vadd.xlane.f32.xlu0 %v841
  %v843 = vpop.xlane.xlu0 %842
  %v844 = vlog2.pop %v843
  %v845 = vmul.f32 %v844, 0.6931472
  %v846 = vadd.f32 %v838, %v845
  %v847 = vsub.f32 %v834, %v846
  %848 = vst [vmem:[%s5] sm:$0xff] %v847
  // Predicated region
  $region22: #{cnn_pathmnist_forward.7} parent=0 // pred_check
    _
  $region23: #{cnn_pathmnist_forward.7} parent=0 // pred_check_branch
    %850 = sbr.rel (0) target = $region25
  $region24: #{cnn_pathmnist_forward.7} parent=0 // pred_region
    _
  $region25: #{cnn_pathmnist_forward.7} parent=0 // pred_fallthru
    _
  // Predicated region
  $region26: #{cnn_pathmnist_forward.7} parent=0 // pred_check
    _
  $region27: #{cnn_pathmnist_forward.7} parent=0 // pred_check_branch
    %852 = sbr.rel (0) target = $region29
  $region28: #{cnn_pathmnist_forward.7} parent=0 // pred_region
    _
  $region29: #{cnn_pathmnist_forward.7} parent=0 // pred_fallthru
    _

</llo_original>
